<compile_context>
chip_gen: v6e
topology: v6e:2x2x1
jax: 0.10.0
libtpu: 0.0.40
codegen_flags: <defaults>
</compile_context>

<pallas_src>
import jax
import jax.numpy as jnp
from jax.experimental import pallas as pl
from jax.experimental.pallas import tpu as pltpu

BN_EPS = 1e-5          # PyTorch BatchNorm default


def _round_up(x, m):
    return ((x + m - 1) // m) * m


def _vmem_capacity_bytes():
    try:
        info = pltpu.get_tpu_info()
        cap = getattr(info, "vmem_capacity_bytes", None)
        if cap:
            return int(cap)
    except Exception:
        pass
    return 64 << 20                       # conservative default (v7x)


_VMEM_BYTES = _vmem_capacity_bytes()
_BIG_VMEM = _VMEM_BYTES >= (128 << 20)    # v5e / v6e
_VMEM_LIMIT = min((_VMEM_BYTES * 3) // 4, 100 << 20)
_BLOCK_BYTES = (16 << 20) if _BIG_VMEM else (4 << 20)   # soft per-block budget
MM_TILE_ROWS = 2048 if _BIG_VMEM else 512
BN_TILE_ROWS = 2048 if _BIG_VMEM else 1024


def _cparams(*sems):
    return pltpu.CompilerParams(dimension_semantics=sems,
                                vmem_limit_bytes=_VMEM_LIMIT)


# --------------------------------------------------------------------------- #
# Kernel 1: upconv matmul (ConvTranspose3d k=2 s=2 == per-voxel matmul) with
#           fused per-column sum / sum-of-squares partials (BN statistics).
# --------------------------------------------------------------------------- #
def _mm_stats_kernel(a_ref, b_ref, o_ref, st_ref):
    y = jnp.dot(a_ref[...], b_ref[...], preferred_element_type=jnp.float32)
    o_ref[...] = y.astype(o_ref.dtype)                    # bf16 write-back
    s = jnp.sum(y, axis=0, keepdims=True)
    sq = jnp.sum(y * y, axis=0, keepdims=True)
    st_ref[0] = jnp.concatenate([s, sq], axis=0)          # f32 stats


def matmul_with_stats(a, b, tile_rows=None):
    """bf16 (M, K) @ (K, N) -> bf16 (M, N) with f32 accumulation; also returns
    the per-column [sum; sum_sq] (2, N) of the f32 product (fused BN stats)."""
    if tile_rows is None:
        tile_rows = MM_TILE_ROWS
    M, K = a.shape
    N = b.shape[1]
    # bytes/step ~ 2*(tr*K + tr*N)*2 (dbl-buffered bf16 A + out) + 2*K*N*2 (B)
    cap = max(16, ((_BLOCK_BYTES - 4 * K * N) // (8 * (K + N)) // 16) * 16)
    tr = min(tile_rows, cap, _round_up(M, 16))
    Mp = _round_up(M, tr)
    a = a.astype(jnp.bfloat16)
    b = b.astype(jnp.bfloat16)
    if Mp != M:
        a = jnp.pad(a, ((0, Mp - M), (0, 0)))   # zero rows: no effect on stats
    grid_m = Mp // tr
    out, st = pl.pallas_call(
        _mm_stats_kernel,
        out_shape=(jax.ShapeDtypeStruct((Mp, N), jnp.bfloat16),
                   jax.ShapeDtypeStruct((grid_m, 2, N), jnp.float32)),
        grid=(grid_m,),
        in_specs=[pl.BlockSpec((tr, K), lambda i: (i, 0)),
                  pl.BlockSpec((K, N), lambda i: (0, 0))],
        out_specs=(pl.BlockSpec((tr, N), lambda i: (i, 0)),
                   pl.BlockSpec((1, 2, N), lambda i: (i, 0, 0))),
        compiler_params=_cparams("parallel"),
    )(a, b)
    st = jnp.sum(st, axis=0)                    # (2, N)
    if Mp != M:
        out = out[:M]
    return out, st


# --------------------------------------------------------------------------- #
# Kernel 2: normalize + affine + ReLU, bf16 in / bf16 out, lane-dense when
#           possible (f32 math inside the kernel).
# --------------------------------------------------------------------------- #
def _bn_relu_kernel(x_ref, sc_ref, sh_ref, o_ref):
    x = x_ref[...].astype(jnp.float32)
    o_ref[...] = jnp.maximum(x * sc_ref[...] + sh_ref[...], 0.0).astype(o_ref.dtype)


def _bn_relu_call(x, sc, sh, tile_rows):
    R, C = x.shape
    # bytes/step ~ 2*(tr*C)*2 (in, bf16) + 2*(tr*C)*2 (out, bf16)
    cap = max(16, ((_BLOCK_BYTES // (8 * C)) // 16) * 16)
    tr = min(tile_rows, cap, _round_up(R, 16))
    Rp = _round_up(R, tr)
    if Rp != R:
        x = jnp.pad(x, ((0, Rp - R), (0, 0)))
    out = pl.pallas_call(
        _bn_relu_kernel,
        out_shape=jax.ShapeDtypeStruct((Rp, C), x.dtype),
        grid=(Rp // tr,),
        in_specs=[pl.BlockSpec((tr, C), lambda i: (i, 0)),
                  pl.BlockSpec((1, C), lambda i: (0, 0)),   # constant block idx
                  pl.BlockSpec((1, C), lambda i: (0, 0))],  # -> loaded once
        out_specs=pl.BlockSpec((tr, C), lambda i: (i, 0)),
        compiler_params=_cparams("parallel"),
    )(x, sc.reshape(1, C).astype(jnp.float32), sh.reshape(1, C).astype(jnp.float32))
    return out[:R] if Rp != R else out


def bn_relu_apply(x2d, scale_cols, shift_cols, tile_rows=None):
    """relu(x * scale_col + shift_col) on a bf16 (M, C) matrix.  When
    128 % C == 0 the matrix is viewed as (M*C/128, 128) so loads/stores are
    full-lane-width."""
    if tile_rows is None:
        tile_rows = BN_TILE_ROWS
    x2d = x2d.astype(jnp.bfloat16)
    M, C = x2d.shape
    if C < 128 and 128 % C == 0 and (M * C) % 128 == 0:
        reps = 128 // C
        out = _bn_relu_call(x2d.reshape(M * C // 128, 128),
                            jnp.tile(scale_cols, reps),
                            jnp.tile(shift_cols, reps), tile_rows)
        return out.reshape(M, C)
    return _bn_relu_call(x2d, scale_cols, shift_cols, tile_rows)


# --------------------------------------------------------------------------- #
# Kernel 3: fused 3x3x3 "same" convolution over one or more input tensors
#           (contributions summed -> the channel concat is never materialized),
#           bf16 x bf16 -> f32 MXU matmuls, fused BN-stat partials, bf16 output.
# --------------------------------------------------------------------------- #
def _make_conv_kernel(n_inputs, Ho, wco_t):
    def kernel(*refs):
        o_ref, st_ref = refs[-2], refs[-1]
        acc = jnp.zeros((Ho, wco_t), jnp.float32)
        for t in range(n_inputs):
            x0, x1, x2, wb = refs[4 * t: 4 * t + 4]
            for kd, xr in enumerate((x0, x1, x2)):       # 3 depth taps (views)
                xs = xr[0, 0]                            # (Hp, Wp*Cin) bf16 slab
                for kh in range(3):                      # 3 height taps
                    acc = acc + jnp.dot(xs[kh:kh + Ho, :], wb[kd, kh],
                                        preferred_element_type=jnp.float32)
        o_ref[0, 0] = acc.astype(o_ref.dtype)            # bf16 write-back
        s = jnp.sum(acc, axis=0, keepdims=True)
        sq = jnp.sum(acc * acc, axis=0, keepdims=True)
        st_ref[0, 0] = jnp.concatenate([s, sq], axis=0)  # f32 stats
    return kernel


def _banded_weight(w, Wo, Wp):
    """w: (Cout, Cin, 3, 3, 3) torch layout -> bf16 (3, 3, Wp*Cin, Wo*Cout)
    banded matrix folding the 3 width taps:
      B[kd,kh, wi*Cin+c, wo*Cout+co] = w[co, c, kd, kh, wi-wo] for 0<=wi-wo<=2.
    Built with a single vectorized gather + band mask (no scatter loop)."""
    Cout, Cin = w.shape[0], w.shape[1]
    wt = jnp.transpose(w, (2, 3, 4, 1, 0))                      # (kd,kh,kw,Cin,Cout)
    kw = jnp.arange(Wp)[:, None] - jnp.arange(Wo)[None, :]      # (Wp, Wo)
    valid = (kw >= 0) & (kw <= 2)
    B = wt[:, :, jnp.clip(kw, 0, 2)]                            # (3,3,Wp,Wo,Cin,Cout)
    B = B * valid[None, None, :, :, None, None].astype(wt.dtype)
    B = jnp.transpose(B, (0, 1, 2, 4, 3, 5))                    # (3,3,Wp,Cin,Wo,Cout)
    return B.reshape(3, 3, Wp * Cin, Wo * Cout).astype(jnp.bfloat16)


def _pick_wco_tile(WCo, banded_rows_total, Ho):
    """Largest multiple-of-128 divisor of WCo (or WCo itself when small) whose
    double-buffered bf16 weight blocks + f32 accumulator + bf16 output block
    fit the soft per-block VMEM budget."""
    per_col = 4 * banded_rows_total + 4 * Ho + 4 * Ho       # weights(2x buf) + acc + out(2x)
    cap = max(1, _BLOCK_BYTES // per_col)
    if WCo <= cap or WCo <= 128:
        return WCo
    t = min((cap // 128) * 128, (WCo // 128) * 128)
    t = max(t, 128)
    while t >= 128:
        if WCo % t == 0:
            return t
        t -= 128
    return WCo          # fallback: full width (vmem_limit_bytes still applies)


def conv3d_3x3_fused(inputs):
    """inputs: list of (x, w) with x (N, Do, Ho, Wo, Cin) channels-last and
    w (Cout, Cin, 3, 3, 3).  Returns the summed 'same' convolution
    (N, Do, Ho, Wo*Cout) in bf16, per-output-channel [sum; sum_sq] (2, Cout)
    of the f32 accumulator, and the element count per channel (for BN)."""
    N, Do, Ho, Wo, _ = inputs[0][0].shape
    Cout = inputs[0][1].shape[0]
    Hp, Wp = Ho + 2, Wo + 2
    WCo = Wo * Cout

    cin_total = sum(int(x.shape[-1]) for x, _ in inputs)
    wco_t = _pick_wco_tile(WCo, 9 * Wp * cin_total, Ho)
    n_wt = WCo // wco_t

    operands, in_specs = [], []
    for x, w in inputs:
        Cin = x.shape[-1]
        xp = jnp.pad(x.astype(jnp.bfloat16),
                     ((0, 0), (1, 1), (1, 1), (1, 1), (0, 0)))
        xp = xp.reshape(N, Do + 2, Hp, Wp * Cin)
        wb = _banded_weight(w, Wo, Wp)                    # bf16
        # TODO(synk): the 3 depth-shifted views re-DMA each padded plane ~3x; a
        # manual rolling 3-plane VMEM window (pl.ANY + make_async_copy) would
        # cut activation HBM traffic ~3x. Also TODO: tile H for huge volumes.
        for kd in range(3):
            operands.append(xp)                           # same buffer, 3 views
            in_specs.append(pl.BlockSpec(
                (1, 1, Hp, Wp * Cin), lambda n, d, j, kd=kd: (n, d + kd, 0, 0)))
        operands.append(wb)
        in_specs.append(pl.BlockSpec(
            (3, 3, Wp * Cin, wco_t), lambda n, d, j: (0, 0, 0, j)))

    # Grid: (batch, out-depth, WCo tile); all axes write disjoint blocks, so
    # every axis is "parallel" (megacore/v7x friendly).  The WCo-tile axis is
    # innermost so the activation slabs stay VMEM-resident across it.
    out, st = pl.pallas_call(
        _make_conv_kernel(len(inputs), Ho, wco_t),
        out_shape=(jax.ShapeDtypeStruct((N, Do, Ho, WCo), jnp.bfloat16),
                   jax.ShapeDtypeStruct((N, Do, 2, WCo), jnp.float32)),
        grid=(N, Do, n_wt),
        in_specs=in_specs,
        out_specs=(pl.BlockSpec((1, 1, Ho, wco_t), lambda n, d, j: (n, d, 0, j)),
                   pl.BlockSpec((1, 1, 2, wco_t), lambda n, d, j: (n, d, 0, j))),
        compiler_params=_cparams("parallel", "parallel", "parallel"),
    )(*operands)

    st = jnp.sum(st, axis=(0, 1)).reshape(2, Wo, Cout).sum(axis=1)   # (2, Cout)
    return out, st, N * Do * Ho * Wo


# ----------------------------- BN helpers ----------------------------------- #
def _bn_scale_shift(stats, count, gamma, beta):
    mean = stats[0] / count
    var = jnp.maximum(stats[1] / count - mean * mean, 0.0)   # clamp cancellation
    inv_std = jax.lax.rsqrt(var + BN_EPS)
    scale = gamma * inv_std
    return scale, beta - mean * scale


# ----------------------------- ExpansionBlock ------------------------------- #
def init_params(key, n_input_channels, n_filters):
    ks = jax.random.split(key, 9)
    return {
        "up_w": 0.1 * jax.random.normal(ks[0], (n_input_channels, n_filters, 2, 2, 2), jnp.float32),
        "up_gamma": 1.0 + 0.05 * jax.random.normal(ks[1], (n_filters,), jnp.float32),
        "up_beta": 0.02 * jax.random.normal(ks[2], (n_filters,), jnp.float32),
        "c1_w": 0.1 * jax.random.normal(ks[3], (n_filters, 2 * n_filters, 3, 3, 3), jnp.float32),
        "c1_gamma": 1.0 + 0.05 * jax.random.normal(ks[4], (n_filters,), jnp.float32),
        "c1_beta": 0.02 * jax.random.normal(ks[5], (n_filters,), jnp.float32),
        "c2_w": 0.1 * jax.random.normal(ks[6], (n_filters, n_filters, 3, 3, 3), jnp.float32),
        "c2_gamma": 1.0 + 0.05 * jax.random.normal(ks[7], (n_filters,), jnp.float32),
        "c2_beta": 0.02 * jax.random.normal(ks[8], (n_filters,), jnp.float32),
    }


def expansion_block_forward(params, incoming, skip_connection):
    """incoming: (N, Cin, D, H, W); skip_connection: (N, nf, 2D, 2H, 2W).
    Returns (N, nf, 2D, 2H, 2W), matching the PyTorch module (dropout=None)."""
    nf = params["up_gamma"].shape[0]
    x = jnp.transpose(incoming, (0, 2, 3, 4, 1)).astype(jnp.bfloat16)        # NDHWC
    s = jnp.transpose(skip_connection, (0, 2, 3, 4, 1)).astype(jnp.bfloat16)
    N, D, H, W, Cin = x.shape
    D2, H2, W2 = 2 * D, 2 * H, 2 * W

    # --- upconv: ConvTranspose3d(k=2, s=2) -> BN -> ReLU (stats fused) -------
    y, st8 = matmul_with_stats(x.reshape(N * D * H * W, Cin),
                               params["up_w"].reshape(Cin, nf * 8))
    st = st8.reshape(2, nf, 8).sum(axis=-1)
    scale, shift = _bn_scale_shift(st, (N * D * H * W) * 8,
                                   params["up_gamma"], params["up_beta"])
    # BN+ReLU on the pre-interleave (M, nf*8) layout (lane-dense pass); then a
    # single XLA transpose performs the 2x2x2 spatial interleave (now in bf16).
    y = bn_relu_apply(y, jnp.repeat(scale, 8), jnp.repeat(shift, 8))
    y = y.reshape(N, D, H, W, nf, 2, 2, 2)
    y = jnp.transpose(y, (0, 1, 5, 2, 6, 3, 7, 4)).reshape(N, D2, H2, W2, nf)

    # TODO(synk): optional nn.Dropout(p=dropout) between conv blocks is omitted
    # (module was constructed with dropout=None).

    # --- conv3x3 #1: Conv3d(cat([y, skip]) -> nf) -> BN -> ReLU --------------
    # cat is never materialized: conv(cat) == conv(y, w[:, :nf]) + conv(s, w[:, nf:])
    z, st, cnt = conv3d_3x3_fused([(y, params["c1_w"][:, :nf]),
                                   (s, params["c1_w"][:, nf:])])
    scale, shift = _bn_scale_shift(st, cnt, params["c1_gamma"], params["c1_beta"])
    z = bn_relu_apply(z.reshape(N * D2 * H2, W2 * nf),
                      jnp.tile(scale, W2), jnp.tile(shift, W2))
    z = z.reshape(N, D2, H2, W2, nf)

    # --- conv3x3 #2: Conv3d(nf -> nf) -> BN -> ReLU --------------------------
    o, st, cnt = conv3d_3x3_fused([(z, params["c2_w"])])
    scale, shift = _bn_scale_shift(st, cnt, params["c2_gamma"], params["c2_beta"])
    o = bn_relu_apply(o.reshape(N * D2 * H2, W2 * nf),
                      jnp.tile(scale, W2), jnp.tile(shift, W2))
    o = o.reshape(N, D2, H2, W2, nf)

    return jnp.transpose(o, (0, 4, 1, 2, 3)).astype(jnp.float32)              # NCDHW


# --------------------------- pure-JAX reference ----------------------------- #
def _reference_forward(params, incoming, skip_connection):
    x = jnp.transpose(incoming, (0, 2, 3, 4, 1)).astype(jnp.float32)
    s = jnp.transpose(skip_connection, (0, 2, 3, 4, 1)).astype(jnp.float32)
    N, D, H, W, _ = x.shape
    nf = params["up_gamma"].shape[0]

    def bn_relu(t, gamma, beta):
        m = jnp.mean(t, axis=(0, 1, 2, 3))
        v = jnp.mean((t - m) ** 2, axis=(0, 1, 2, 3))
        return jnp.maximum((t - m) * jax.lax.rsqrt(v + BN_EPS) * gamma + beta, 0.0)

    def conv3(t, w):
        return jax.lax.conv_general_dilated(
            t, jnp.transpose(w, (2, 3, 4, 1, 0)), (1, 1, 1), "SAME",
            dimension_numbers=("NDHWC", "DHWIO", "NDHWC"),
            precision=jax.lax.Precision.HIGHEST)

    y = jnp.einsum("ndhwc,cokpq->ndkhpwqo", x, params["up_w"],
                   precision=jax.lax.Precision.HIGHEST)
    y = y.reshape(N, 2 * D, 2 * H, 2 * W, nf)
    y = bn_relu(y, params["up_gamma"], params["up_beta"])
    z = bn_relu(conv3(jnp.concatenate([y, s], axis=-1), params["c1_w"]),
                params["c1_gamma"], params["c1_beta"])
    o = bn_relu(conv3(z, params["c2_w"]), params["c2_gamma"], params["c2_beta"])
    return jnp.transpose(o, (0, 4, 1, 2, 3))


if __name__ == "__main__":
    key = jax.random.PRNGKey(0)
    n_input_channels, n_filters = 8, 4
    N, D, H, W = 2, 4, 4, 4

    kx, ks, kp = jax.random.split(key, 3)
    incoming = jax.random.normal(kx, (N, n_input_channels, D, H, W), jnp.float32)
    skip = jax.random.normal(ks, (N, n_filters, 2 * D, 2 * H, 2 * W), jnp.float32)
    params = init_params(kp, n_input_channels, n_filters)

    fwd = jax.jit(expansion_block_forward)
    out = jax.block_until_ready(fwd(params, incoming, skip))
    assert out.shape == (N, n_filters, 2 * D, 2 * H, 2 * W), out.shape
    assert bool(jnp.all(jnp.isfinite(out)))

    ref = jax.block_until_ready(_reference_forward(params, incoming, skip))
    err = float(jnp.max(jnp.abs(out - ref)))
    assert err < 0.1, f"max abs error vs reference too large: {err}"

    print("KERNEL_OK")
</pallas_src>

<mosaic_0001>
module attributes {stable_mosaic.version = 11 : i64} {
  func.func @_mm_stats_kernel(%arg0: i32, %arg1: memref<128x8xbf16, #tpu.memory_space<vmem>>, %arg2: memref<8x32xbf16, #tpu.memory_space<vmem>>, %arg3: memref<128x32xbf16, #tpu.memory_space<vmem>>, %arg4: memref<1x2x32xf32, #tpu.memory_space<vmem>>) attributes {dimension_semantics = [#tpu.dimension_semantics<parallel>], iteration_bounds = array<i64: 1>, scalar_prefetch = 0 : i64, scratch_operands = 0 : i64, tpu.core_type = #tpu.core_type<tc>, window_params = [{transform_indices = @transform_0, window_bounds = array<i64: 128, 8>}, {pipeline_mode = #tpu.pipeline_mode<synchronous>, transform_indices = @transform_1, window_bounds = array<i64: 8, 32>}, {transform_indices = @transform_2, window_bounds = array<i64: 128, 32>}, {transform_indices = @transform_3, window_bounds = array<i64: 1, 2, 32>}]} {
    %c0 = arith.constant 0 : index
    %c0_0 = arith.constant 0 : index
    %0 = vector.load %arg1[%c0, %c0_0] : memref<128x8xbf16, #tpu.memory_space<vmem>>, vector<128x8xbf16>
    %c0_1 = arith.constant 0 : index
    %c0_2 = arith.constant 0 : index
    %1 = vector.load %arg2[%c0_1, %c0_2] : memref<8x32xbf16, #tpu.memory_space<vmem>>, vector<8x32xbf16>
    %cst = arith.constant dense<0.000000e+00> : vector<128x32xf32>
    %2 = tpu.matmul %0, %1, %cst {dimension_numbers = #tpu.dot_dimension_numbers<[1], [0], [0], [1], [0, 0, 1, 1], [], []>} : vector<128x8xbf16>, vector<8x32xbf16>, vector<128x32xf32> -> vector<128x32xf32>
    %3 = arith.truncf %2 : vector<128x32xf32> to vector<128x32xbf16>
    %c0_3 = arith.constant 0 : index
    %c0_4 = arith.constant 0 : index
    %4 = vector.load %arg3[%c0_3, %c0_4] : memref<128x32xbf16, #tpu.memory_space<vmem>>, vector<128x32xbf16>
    tpu.vector_store %arg3[%c0_3, %c0_4], %3 {strides = array<i32>} : memref<128x32xbf16, #tpu.memory_space<vmem>>, vector<128x32xbf16>,
    %cst_5 = arith.constant dense<0.000000e+00> : vector<32xf32>
    %5 = vector.multi_reduction <add>, %2, %cst_5 [0] : vector<128x32xf32> to vector<32xf32>
    %6 = vector.shape_cast %5 : vector<32xf32> to vector<1x32xf32>
    %7 = arith.mulf %2, %2 : vector<128x32xf32>
    %cst_6 = arith.constant dense<0.000000e+00> : vector<32xf32>
    %8 = vector.multi_reduction <add>, %7, %cst_6 [0] : vector<128x32xf32> to vector<32xf32>
    %9 = vector.shape_cast %8 : vector<32xf32> to vector<1x32xf32>
    %10 = tpu.concatenate %6, %9 in 0 : vector<1x32xf32>, vector<1x32xf32> -> vector<2x32xf32>
    %c0_7 = arith.constant 0 : index
    %c0_8 = arith.constant 0 : index
    %c0_9 = arith.constant 0 : index
    %11 = vector.load %arg4[%c0_7, %c0_8, %c0_9] : memref<1x2x32xf32, #tpu.memory_space<vmem>>, vector<1x2x32xf32>
    %12 = vector.shape_cast %11 : vector<1x2x32xf32> to vector<2x32xf32>
    %13 = vector.shape_cast %10 : vector<2x32xf32> to vector<1x2x32xf32>
    tpu.vector_store %arg4[%c0_7, %c0_8, %c0_9], %13 {strides = array<i32>} : memref<1x2x32xf32, #tpu.memory_space<vmem>>, vector<1x2x32xf32>,
    return
  }
  func.func @transform_0(%arg0: i32) -> (i32, i32) {
    %c0_i32 = arith.constant 0 : i32
    %c0_i32_0 = arith.constant 0 : i32
    return %arg0, %c0_i32 : i32, i32
  }
  func.func @transform_1(%arg0: i32) -> (i32, i32) {
    %c0_i32 = arith.constant 0 : i32
    %c0_i32_0 = arith.constant 0 : i32
    %c0_i32_1 = arith.constant 0 : i32
    return %c0_i32, %c0_i32_0 : i32, i32
  }
  func.func @transform_2(%arg0: i32) -> (i32, i32) {
    %c0_i32 = arith.constant 0 : i32
    %c0_i32_0 = arith.constant 0 : i32
    return %arg0, %c0_i32 : i32, i32
  }
  func.func @transform_3(%arg0: i32) -> (i32, i32, i32) {
    %c0_i32 = arith.constant 0 : i32
    %c0_i32_0 = arith.constant 0 : i32
    %c0_i32_1 = arith.constant 0 : i32
    return %arg0, %c0_i32, %c0_i32_0 : i32, i32, i32
  }
}

module attributes {stable_mosaic.version = 11 : i64} {
  func.func @_bn_relu_kernel(%arg0: i32, %arg1: memref<32x128xbf16, #tpu.memory_space<vmem>>, %arg2: memref<1x128xf32, #tpu.memory_space<vmem>>, %arg3: memref<1x128xf32, #tpu.memory_space<vmem>>, %arg4: memref<32x128xbf16, #tpu.memory_space<vmem>>) attributes {dimension_semantics = [#tpu.dimension_semantics<parallel>], iteration_bounds = array<i64: 1>, scalar_prefetch = 0 : i64, scratch_operands = 0 : i64, tpu.core_type = #tpu.core_type<tc>, window_params = [{transform_indices = @transform_0, window_bounds = array<i64: 32, 128>}, {pipeline_mode = #tpu.pipeline_mode<synchronous>, transform_indices = @transform_1, window_bounds = array<i64: 1, 128>}, {pipeline_mode = #tpu.pipeline_mode<synchronous>, transform_indices = @transform_2, window_bounds = array<i64: 1, 128>}, {transform_indices = @transform_3, window_bounds = array<i64: 32, 128>}]} {
    %c0 = arith.constant 0 : index
    %c0_0 = arith.constant 0 : index
    %0 = vector.load %arg1[%c0, %c0_0] : memref<32x128xbf16, #tpu.memory_space<vmem>>, vector<32x128xbf16>
    %1 = arith.extf %0 : vector<32x128xbf16> to vector<32x128xf32>
    %c0_1 = arith.constant 0 : index
    %c0_2 = arith.constant 0 : index
    %2 = vector.load %arg2[%c0_1, %c0_2] : memref<1x128xf32, #tpu.memory_space<vmem>>, vector<1x128xf32>
    %3 = vector.broadcast %2 : vector<1x128xf32> to vector<32x128xf32>
    %4 = arith.mulf %1, %3 : vector<32x128xf32>
    %c0_3 = arith.constant 0 : index
    %c0_4 = arith.constant 0 : index
    %5 = vector.load %arg3[%c0_3, %c0_4] : memref<1x128xf32, #tpu.memory_space<vmem>>, vector<1x128xf32>
    %6 = vector.broadcast %5 : vector<1x128xf32> to vector<32x128xf32>
    %7 = arith.addf %4, %6 : vector<32x128xf32>
    %cst = arith.constant 0.000000e+00 : f32
    %8 = vector.broadcast %cst : f32 to vector<32x128xf32>
    %9 = arith.maximumf %7, %8 : vector<32x128xf32>
    %10 = arith.truncf %9 : vector<32x128xf32> to vector<32x128xbf16>
    %c0_5 = arith.constant 0 : index
    %c0_6 = arith.constant 0 : index
    %11 = vector.load %arg4[%c0_5, %c0_6] : memref<32x128xbf16, #tpu.memory_space<vmem>>, vector<32x128xbf16>
    tpu.vector_store %arg4[%c0_5, %c0_6], %10 {strides = array<i32>} : memref<32x128xbf16, #tpu.memory_space<vmem>>, vector<32x128xbf16>,
    return
  }
  func.func @transform_0(%arg0: i32) -> (i32, i32) {
    %c0_i32 = arith.constant 0 : i32
    %c0_i32_0 = arith.constant 0 : i32
    return %arg0, %c0_i32 : i32, i32
  }
  func.func @transform_1(%arg0: i32) -> (i32, i32) {
    %c0_i32 = arith.constant 0 : i32
    %c0_i32_0 = arith.constant 0 : i32
    %c0_i32_1 = arith.constant 0 : i32
    return %c0_i32, %c0_i32_0 : i32, i32
  }
  func.func @transform_2(%arg0: i32) -> (i32, i32) {
    %c0_i32 = arith.constant 0 : i32
    %c0_i32_0 = arith.constant 0 : i32
    %c0_i32_1 = arith.constant 0 : i32
    return %c0_i32, %c0_i32_0 : i32, i32
  }
  func.func @transform_3(%arg0: i32) -> (i32, i32) {
    %c0_i32 = arith.constant 0 : i32
    %c0_i32_0 = arith.constant 0 : i32
    return %arg0, %c0_i32 : i32, i32
  }
}

module attributes {stable_mosaic.version = 11 : i64} {
  func.func @kernel(%arg0: i32, %arg1: i32, %arg2: i32, %arg3: memref<1x1x10x40xbf16, #tpu.memory_space<vmem>>, %arg4: memref<1x1x10x40xbf16, #tpu.memory_space<vmem>>, %arg5: memref<1x1x10x40xbf16, #tpu.memory_space<vmem>>, %arg6: memref<3x3x40x32xbf16, #tpu.memory_space<vmem>>, %arg7: memref<1x1x10x40xbf16, #tpu.memory_space<vmem>>, %arg8: memref<1x1x10x40xbf16, #tpu.memory_space<vmem>>, %arg9: memref<1x1x10x40xbf16, #tpu.memory_space<vmem>>, %arg10: memref<3x3x40x32xbf16, #tpu.memory_space<vmem>>, %arg11: memref<1x1x8x32xbf16, #tpu.memory_space<vmem>>, %arg12: memref<1x1x2x32xf32, #tpu.memory_space<vmem>>) attributes {dimension_semantics = [#tpu.dimension_semantics<parallel>, #tpu.dimension_semantics<parallel>, #tpu.dimension_semantics<parallel>], iteration_bounds = array<i64: 2, 8, 1>, scalar_prefetch = 0 : i64, scratch_operands = 0 : i64, tpu.core_type = #tpu.core_type<tc>, window_params = [{transform_indices = @transform_0, window_bounds = array<i64: 1, 1, 10, 40>}, {transform_indices = @transform_1, window_bounds = array<i64: 1, 1, 10, 40>}, {transform_indices = @transform_2, window_bounds = array<i64: 1, 1, 10, 40>}, {transform_indices = @transform_3, window_bounds = array<i64: 3, 3, 40, 32>}, {transform_indices = @transform_4, window_bounds = array<i64: 1, 1, 10, 40>}, {transform_indices = @transform_5, window_bounds = array<i64: 1, 1, 10, 40>}, {transform_indices = @transform_6, window_bounds = array<i64: 1, 1, 10, 40>}, {transform_indices = @transform_7, window_bounds = array<i64: 3, 3, 40, 32>}, {transform_indices = @transform_8, window_bounds = array<i64: 1, 1, 8, 32>}, {transform_indices = @transform_9, window_bounds = array<i64: 1, 1, 2, 32>}]} {
    %cst = arith.constant 0.000000e+00 : f32
    %0 = vector.broadcast %cst : f32 to vector<8x32xf32>
    %c0 = arith.constant 0 : index
    %c0_0 = arith.constant 0 : index
    %c0_1 = arith.constant 0 : index
    %c0_2 = arith.constant 0 : index
    %1 = vector.load %arg3[%c0, %c0_0, %c0_1, %c0_2] : memref<1x1x10x40xbf16, #tpu.memory_space<vmem>>, vector<1x1x10x40xbf16>
    %2 = vector.shape_cast %1 : vector<1x1x10x40xbf16> to vector<10x40xbf16>
    %3 = vector.extract_strided_slice %2 {offsets = [0, 0], sizes = [8, 40], strides = [1, 1]} : vector<10x40xbf16> to vector<8x40xbf16>
    %c0_3 = arith.constant 0 : index
    %c0_4 = arith.constant 0 : index
    %c0_5 = arith.constant 0 : index
    %c0_6 = arith.constant 0 : index
    %4 = vector.load %arg6[%c0_3, %c0_4, %c0_5, %c0_6] : memref<3x3x40x32xbf16, #tpu.memory_space<vmem>>, vector<1x1x40x32xbf16>
    %5 = vector.shape_cast %4 : vector<1x1x40x32xbf16> to vector<40x32xbf16>
    %cst_7 = arith.constant dense<0.000000e+00> : vector<8x32xf32>
    %6 = tpu.matmul %3, %5, %cst_7 {dimension_numbers = #tpu.dot_dimension_numbers<[1], [0], [0], [1], [0, 0, 1, 1], [], []>} : vector<8x40xbf16>, vector<40x32xbf16>, vector<8x32xf32> -> vector<8x32xf32>
    %7 = arith.addf %0, %6 : vector<8x32xf32>
    %8 = vector.extract_strided_slice %2 {offsets = [1, 0], sizes = [8, 40], strides = [1, 1]} : vector<10x40xbf16> to vector<8x40xbf16>
    %c0_8 = arith.constant 0 : index
    %c1 = arith.constant 1 : index
    %c0_9 = arith.constant 0 : index
    %c0_10 = arith.constant 0 : index
    %9 = vector.load %arg6[%c0_8, %c1, %c0_9, %c0_10] : memref<3x3x40x32xbf16, #tpu.memory_space<vmem>>, vector<1x1x40x32xbf16>
    %10 = vector.shape_cast %9 : vector<1x1x40x32xbf16> to vector<40x32xbf16>
    %cst_11 = arith.constant dense<0.000000e+00> : vector<8x32xf32>
    %11 = tpu.matmul %8, %10, %cst_11 {dimension_numbers = #tpu.dot_dimension_numbers<[1], [0], [0], [1], [0, 0, 1, 1], [], []>} : vector<8x40xbf16>, vector<40x32xbf16>, vector<8x32xf32> -> vector<8x32xf32>
    %12 = arith.addf %7, %11 : vector<8x32xf32>
    %13 = vector.extract_strided_slice %2 {offsets = [2, 0], sizes = [8, 40], strides = [1, 1]} : vector<10x40xbf16> to vector<8x40xbf16>
    %c0_12 = arith.constant 0 : index
    %c2 = arith.constant 2 : index
    %c0_13 = arith.constant 0 : index
    %c0_14 = arith.constant 0 : index
    %14 = vector.load %arg6[%c0_12, %c2, %c0_13, %c0_14] : memref<3x3x40x32xbf16, #tpu.memory_space<vmem>>, vector<1x1x40x32xbf16>
    %15 = vector.shape_cast %14 : vector<1x1x40x32xbf16> to vector<40x32xbf16>
    %cst_15 = arith.constant dense<0.000000e+00> : vector<8x32xf32>
    %16 = tpu.matmul %13, %15, %cst_15 {dimension_numbers = #tpu.dot_dimension_numbers<[1], [0], [0], [1], [0, 0, 1, 1], [], []>} : vector<8x40xbf16>, vector<40x32xbf16>, vector<8x32xf32> -> vector<8x32xf32>
    %17 = arith.addf %12, %16 : vector<8x32xf32>
    %c0_16 = arith.constant 0 : index
    %c0_17 = arith.constant 0 : index
    %c0_18 = arith.constant 0 : index
    %c0_19 = arith.constant 0 : index
    %18 = vector.load %arg4[%c0_16, %c0_17, %c0_18, %c0_19] : memref<1x1x10x40xbf16, #tpu.memory_space<vmem>>, vector<1x1x10x40xbf16>
    %19 = vector.shape_cast %18 : vector<1x1x10x40xbf16> to vector<10x40xbf16>
    %20 = vector.extract_strided_slice %19 {offsets = [0, 0], sizes = [8, 40], strides = [1, 1]} : vector<10x40xbf16> to vector<8x40xbf16>
    %c1_20 = arith.constant 1 : index
    %c0_21 = arith.constant 0 : index
    %c0_22 = arith.constant 0 : index
    %c0_23 = arith.constant 0 : index
    %21 = vector.load %arg6[%c1_20, %c0_21, %c0_22, %c0_23] : memref<3x3x40x32xbf16, #tpu.memory_space<vmem>>, vector<1x1x40x32xbf16>
    %22 = vector.shape_cast %21 : vector<1x1x40x32xbf16> to vector<40x32xbf16>
    %cst_24 = arith.constant dense<0.000000e+00> : vector<8x32xf32>
    %23 = tpu.matmul %20, %22, %cst_24 {dimension_numbers = #tpu.dot_dimension_numbers<[1], [0], [0], [1], [0, 0, 1, 1], [], []>} : vector<8x40xbf16>, vector<40x32xbf16>, vector<8x32xf32> -> vector<8x32xf32>
    %24 = arith.addf %17, %23 : vector<8x32xf32>
    %25 = vector.extract_strided_slice %19 {offsets = [1, 0], sizes = [8, 40], strides = [1, 1]} : vector<10x40xbf16> to vector<8x40xbf16>
    %c1_25 = arith.constant 1 : index
    %c1_26 = arith.constant 1 : index
    %c0_27 = arith.constant 0 : index
    %c0_28 = arith.constant 0 : index
    %26 = vector.load %arg6[%c1_25, %c1_26, %c0_27, %c0_28] : memref<3x3x40x32xbf16, #tpu.memory_space<vmem>>, vector<1x1x40x32xbf16>
    %27 = vector.shape_cast %26 : vector<1x1x40x32xbf16> to vector<40x32xbf16>
    %cst_29 = arith.constant dense<0.000000e+00> : vector<8x32xf32>
    %28 = tpu.matmul %25, %27, %cst_29 {dimension_numbers = #tpu.dot_dimension_numbers<[1], [0], [0], [1], [0, 0, 1, 1], [], []>} : vector<8x40xbf16>, vector<40x32xbf16>, vector<8x32xf32> -> vector<8x32xf32>
    %29 = arith.addf %24, %28 : vector<8x32xf32>
    %30 = vector.extract_strided_slice %19 {offsets = [2, 0], sizes = [8, 40], strides = [1, 1]} : vector<10x40xbf16> to vector<8x40xbf16>
    %c1_30 = arith.constant 1 : index
    %c2_31 = arith.constant 2 : index
    %c0_32 = arith.constant 0 : index
    %c0_33 = arith.constant 0 : index
    %31 = vector.load %arg6[%c1_30, %c2_31, %c0_32, %c0_33] : memref<3x3x40x32xbf16, #tpu.memory_space<vmem>>, vector<1x1x40x32xbf16>
    %32 = vector.shape_cast %31 : vector<1x1x40x32xbf16> to vector<40x32xbf16>
    %cst_34 = arith.constant dense<0.000000e+00> : vector<8x32xf32>
    %33 = tpu.matmul %30, %32, %cst_34 {dimension_numbers = #tpu.dot_dimension_numbers<[1], [0], [0], [1], [0, 0, 1, 1], [], []>} : vector<8x40xbf16>, vector<40x32xbf16>, vector<8x32xf32> -> vector<8x32xf32>
    %34 = arith.addf %29, %33 : vector<8x32xf32>
    %c0_35 = arith.constant 0 : index
    %c0_36 = arith.constant 0 : index
    %c0_37 = arith.constant 0 : index
    %c0_38 = arith.constant 0 : index
    %35 = vector.load %arg5[%c0_35, %c0_36, %c0_37, %c0_38] : memref<1x1x10x40xbf16, #tpu.memory_space<vmem>>, vector<1x1x10x40xbf16>
    %36 = vector.shape_cast %35 : vector<1x1x10x40xbf16> to vector<10x40xbf16>
    %37 = vector.extract_strided_slice %36 {offsets = [0, 0], sizes = [8, 40], strides = [1, 1]} : vector<10x40xbf16> to vector<8x40xbf16>
    %c2_39 = arith.constant 2 : index
    %c0_40 = arith.constant 0 : index
    %c0_41 = arith.constant 0 : index
    %c0_42 = arith.constant 0 : index
    %38 = vector.load %arg6[%c2_39, %c0_40, %c0_41, %c0_42] : memref<3x3x40x32xbf16, #tpu.memory_space<vmem>>, vector<1x1x40x32xbf16>
    %39 = vector.shape_cast %38 : vector<1x1x40x32xbf16> to vector<40x32xbf16>
    %cst_43 = arith.constant dense<0.000000e+00> : vector<8x32xf32>
    %40 = tpu.matmul %37, %39, %cst_43 {dimension_numbers = #tpu.dot_dimension_numbers<[1], [0], [0], [1], [0, 0, 1, 1], [], []>} : vector<8x40xbf16>, vector<40x32xbf16>, vector<8x32xf32> -> vector<8x32xf32>
    %41 = arith.addf %34, %40 : vector<8x32xf32>
    %42 = vector.extract_strided_slice %36 {offsets = [1, 0], sizes = [8, 40], strides = [1, 1]} : vector<10x40xbf16> to vector<8x40xbf16>
    %c2_44 = arith.constant 2 : index
    %c1_45 = arith.constant 1 : index
    %c0_46 = arith.constant 0 : index
    %c0_47 = arith.constant 0 : index
    %43 = vector.load %arg6[%c2_44, %c1_45, %c0_46, %c0_47] : memref<3x3x40x32xbf16, #tpu.memory_space<vmem>>, vector<1x1x40x32xbf16>
    %44 = vector.shape_cast %43 : vector<1x1x40x32xbf16> to vector<40x32xbf16>
    %cst_48 = arith.constant dense<0.000000e+00> : vector<8x32xf32>
    %45 = tpu.matmul %42, %44, %cst_48 {dimension_numbers = #tpu.dot_dimension_numbers<[1], [0], [0], [1], [0, 0, 1, 1], [], []>} : vector<8x40xbf16>, vector<40x32xbf16>, vector<8x32xf32> -> vector<8x32xf32>
    %46 = arith.addf %41, %45 : vector<8x32xf32>
    %47 = vector.extract_strided_slice %36 {offsets = [2, 0], sizes = [8, 40], strides = [1, 1]} : vector<10x40xbf16> to vector<8x40xbf16>
    %c2_49 = arith.constant 2 : index
    %c2_50 = arith.constant 2 : index
    %c0_51 = arith.constant 0 : index
    %c0_52 = arith.constant 0 : index
    %48 = vector.load %arg6[%c2_49, %c2_50, %c0_51, %c0_52] : memref<3x3x40x32xbf16, #tpu.memory_space<vmem>>, vector<1x1x40x32xbf16>
    %49 = vector.shape_cast %48 : vector<1x1x40x32xbf16> to vector<40x32xbf16>
    %cst_53 = arith.constant dense<0.000000e+00> : vector<8x32xf32>
    %50 = tpu.matmul %47, %49, %cst_53 {dimension_numbers = #tpu.dot_dimension_numbers<[1], [0], [0], [1], [0, 0, 1, 1], [], []>} : vector<8x40xbf16>, vector<40x32xbf16>, vector<8x32xf32> -> vector<8x32xf32>
    %51 = arith.addf %46, %50 : vector<8x32xf32>
    %c0_54 = arith.constant 0 : index
    %c0_55 = arith.constant 0 : index
    %c0_56 = arith.constant 0 : index
    %c0_57 = arith.constant 0 : index
    %52 = vector.load %arg7[%c0_54, %c0_55, %c0_56, %c0_57] : memref<1x1x10x40xbf16, #tpu.memory_space<vmem>>, vector<1x1x10x40xbf16>
    %53 = vector.shape_cast %52 : vector<1x1x10x40xbf16> to vector<10x40xbf16>
    %54 = vector.extract_strided_slice %53 {offsets = [0, 0], sizes = [8, 40], strides = [1, 1]} : vector<10x40xbf16> to vector<8x40xbf16>
    %c0_58 = arith.constant 0 : index
    %c0_59 = arith.constant 0 : index
    %c0_60 = arith.constant 0 : index
    %c0_61 = arith.constant 0 : index
    %55 = vector.load %arg10[%c0_58, %c0_59, %c0_60, %c0_61] : memref<3x3x40x32xbf16, #tpu.memory_space<vmem>>, vector<1x1x40x32xbf16>
    %56 = vector.shape_cast %55 : vector<1x1x40x32xbf16> to vector<40x32xbf16>
    %cst_62 = arith.constant dense<0.000000e+00> : vector<8x32xf32>
    %57 = tpu.matmul %54, %56, %cst_62 {dimension_numbers = #tpu.dot_dimension_numbers<[1], [0], [0], [1], [0, 0, 1, 1], [], []>} : vector<8x40xbf16>, vector<40x32xbf16>, vector<8x32xf32> -> vector<8x32xf32>
    %58 = arith.addf %51, %57 : vector<8x32xf32>
    %59 = vector.extract_strided_slice %53 {offsets = [1, 0], sizes = [8, 40], strides = [1, 1]} : vector<10x40xbf16> to vector<8x40xbf16>
    %c0_63 = arith.constant 0 : index
    %c1_64 = arith.constant 1 : index
    %c0_65 = arith.constant 0 : index
    %c0_66 = arith.constant 0 : index
    %60 = vector.load %arg10[%c0_63, %c1_64, %c0_65, %c0_66] : memref<3x3x40x32xbf16, #tpu.memory_space<vmem>>, vector<1x1x40x32xbf16>
    %61 = vector.shape_cast %60 : vector<1x1x40x32xbf16> to vector<40x32xbf16>
    %cst_67 = arith.constant dense<0.000000e+00> : vector<8x32xf32>
    %62 = tpu.matmul %59, %61, %cst_67 {dimension_numbers = #tpu.dot_dimension_numbers<[1], [0], [0], [1], [0, 0, 1, 1], [], []>} : vector<8x40xbf16>, vector<40x32xbf16>, vector<8x32xf32> -> vector<8x32xf32>
    %63 = arith.addf %58, %62 : vector<8x32xf32>
    %64 = vector.extract_strided_slice %53 {offsets = [2, 0], sizes = [8, 40], strides = [1, 1]} : vector<10x40xbf16> to vector<8x40xbf16>
    %c0_68 = arith.constant 0 : index
    %c2_69 = arith.constant 2 : index
    %c0_70 = arith.constant 0 : index
    %c0_71 = arith.constant 0 : index
    %65 = vector.load %arg10[%c0_68, %c2_69, %c0_70, %c0_71] : memref<3x3x40x32xbf16, #tpu.memory_space<vmem>>, vector<1x1x40x32xbf16>
    %66 = vector.shape_cast %65 : vector<1x1x40x32xbf16> to vector<40x32xbf16>
    %cst_72 = arith.constant dense<0.000000e+00> : vector<8x32xf32>
    %67 = tpu.matmul %64, %66, %cst_72 {dimension_numbers = #tpu.dot_dimension_numbers<[1], [0], [0], [1], [0, 0, 1, 1], [], []>} : vector<8x40xbf16>, vector<40x32xbf16>, vector<8x32xf32> -> vector<8x32xf32>
    %68 = arith.addf %63, %67 : vector<8x32xf32>
    %c0_73 = arith.constant 0 : index
    %c0_74 = arith.constant 0 : index
    %c0_75 = arith.constant 0 : index
    %c0_76 = arith.constant 0 : index
    %69 = vector.load %arg8[%c0_73, %c0_74, %c0_75, %c0_76] : memref<1x1x10x40xbf16, #tpu.memory_space<vmem>>, vector<1x1x10x40xbf16>
    %70 = vector.shape_cast %69 : vector<1x1x10x40xbf16> to vector<10x40xbf16>
    %71 = vector.extract_strided_slice %70 {offsets = [0, 0], sizes = [8, 40], strides = [1, 1]} : vector<10x40xbf16> to vector<8x40xbf16>
    %c1_77 = arith.constant 1 : index
    %c0_78 = arith.constant 0 : index
    %c0_79 = arith.constant 0 : index
    %c0_80 = arith.constant 0 : index
    %72 = vector.load %arg10[%c1_77, %c0_78, %c0_79, %c0_80] : memref<3x3x40x32xbf16, #tpu.memory_space<vmem>>, vector<1x1x40x32xbf16>
    %73 = vector.shape_cast %72 : vector<1x1x40x32xbf16> to vector<40x32xbf16>
    %cst_81 = arith.constant dense<0.000000e+00> : vector<8x32xf32>
    %74 = tpu.matmul %71, %73, %cst_81 {dimension_numbers = #tpu.dot_dimension_numbers<[1], [0], [0], [1], [0, 0, 1, 1], [], []>} : vector<8x40xbf16>, vector<40x32xbf16>, vector<8x32xf32> -> vector<8x32xf32>
    %75 = arith.addf %68, %74 : vector<8x32xf32>
    %76 = vector.extract_strided_slice %70 {offsets = [1, 0], sizes = [8, 40], strides = [1, 1]} : vector<10x40xbf16> to vector<8x40xbf16>
    %c1_82 = arith.constant 1 : index
    %c1_83 = arith.constant 1 : index
    %c0_84 = arith.constant 0 : index
    %c0_85 = arith.constant 0 : index
    %77 = vector.load %arg10[%c1_82, %c1_83, %c0_84, %c0_85] : memref<3x3x40x32xbf16, #tpu.memory_space<vmem>>, vector<1x1x40x32xbf16>
    %78 = vector.shape_cast %77 : vector<1x1x40x32xbf16> to vector<40x32xbf16>
    %cst_86 = arith.constant dense<0.000000e+00> : vector<8x32xf32>
    %79 = tpu.matmul %76, %78, %cst_86 {dimension_numbers = #tpu.dot_dimension_numbers<[1], [0], [0], [1], [0, 0, 1, 1], [], []>} : vector<8x40xbf16>, vector<40x32xbf16>, vector<8x32xf32> -> vector<8x32xf32>
    %80 = arith.addf %75, %79 : vector<8x32xf32>
    %81 = vector.extract_strided_slice %70 {offsets = [2, 0], sizes = [8, 40], strides = [1, 1]} : vector<10x40xbf16> to vector<8x40xbf16>
    %c1_87 = arith.constant 1 : index
    %c2_88 = arith.constant 2 : index
    %c0_89 = arith.constant 0 : index
    %c0_90 = arith.constant 0 : index
    %82 = vector.load %arg10[%c1_87, %c2_88, %c0_89, %c0_90] : memref<3x3x40x32xbf16, #tpu.memory_space<vmem>>, vector<1x1x40x32xbf16>
    %83 = vector.shape_cast %82 : vector<1x1x40x32xbf16> to vector<40x32xbf16>
    %cst_91 = arith.constant dense<0.000000e+00> : vector<8x32xf32>
    %84 = tpu.matmul %81, %83, %cst_91 {dimension_numbers = #tpu.dot_dimension_numbers<[1], [0], [0], [1], [0, 0, 1, 1], [], []>} : vector<8x40xbf16>, vector<40x32xbf16>, vector<8x32xf32> -> vector<8x32xf32>
    %85 = arith.addf %80, %84 : vector<8x32xf32>
    %c0_92 = arith.constant 0 : index
    %c0_93 = arith.constant 0 : index
    %c0_94 = arith.constant 0 : index
    %c0_95 = arith.constant 0 : index
    %86 = vector.load %arg9[%c0_92, %c0_93, %c0_94, %c0_95] : memref<1x1x10x40xbf16, #tpu.memory_space<vmem>>, vector<1x1x10x40xbf16>
    %87 = vector.shape_cast %86 : vector<1x1x10x40xbf16> to vector<10x40xbf16>
    %88 = vector.extract_strided_slice %87 {offsets = [0, 0], sizes = [8, 40], strides = [1, 1]} : vector<10x40xbf16> to vector<8x40xbf16>
    %c2_96 = arith.constant 2 : index
    %c0_97 = arith.constant 0 : index
    %c0_98 = arith.constant 0 : index
    %c0_99 = arith.constant 0 : index
    %89 = vector.load %arg10[%c2_96, %c0_97, %c0_98, %c0_99] : memref<3x3x40x32xbf16, #tpu.memory_space<vmem>>, vector<1x1x40x32xbf16>
    %90 = vector.shape_cast %89 : vector<1x1x40x32xbf16> to vector<40x32xbf16>
    %cst_100 = arith.constant dense<0.000000e+00> : vector<8x32xf32>
    %91 = tpu.matmul %88, %90, %cst_100 {dimension_numbers = #tpu.dot_dimension_numbers<[1], [0], [0], [1], [0, 0, 1, 1], [], []>} : vector<8x40xbf16>, vector<40x32xbf16>, vector<8x32xf32> -> vector<8x32xf32>
    %92 = arith.addf %85, %91 : vector<8x32xf32>
    %93 = vector.extract_strided_slice %87 {offsets = [1, 0], sizes = [8, 40], strides = [1, 1]} : vector<10x40xbf16> to vector<8x40xbf16>
    %c2_101 = arith.constant 2 : index
    %c1_102 = arith.constant 1 : index
    %c0_103 = arith.constant 0 : index
    %c0_104 = arith.constant 0 : index
    %94 = vector.load %arg10[%c2_101, %c1_102, %c0_103, %c0_104] : memref<3x3x40x32xbf16, #tpu.memory_space<vmem>>, vector<1x1x40x32xbf16>
    %95 = vector.shape_cast %94 : vector<1x1x40x32xbf16> to vector<40x32xbf16>
    %cst_105 = arith.constant dense<0.000000e+00> : vector<8x32xf32>
    %96 = tpu.matmul %93, %95, %cst_105 {dimension_numbers = #tpu.dot_dimension_numbers<[1], [0], [0], [1], [0, 0, 1, 1], [], []>} : vector<8x40xbf16>, vector<40x32xbf16>, vector<8x32xf32> -> vector<8x32xf32>
    %97 = arith.addf %92, %96 : vector<8x32xf32>
    %98 = vector.extract_strided_slice %87 {offsets = [2, 0], sizes = [8, 40], strides = [1, 1]} : vector<10x40xbf16> to vector<8x40xbf16>
    %c2_106 = arith.constant 2 : index
    %c2_107 = arith.constant 2 : index
    %c0_108 = arith.constant 0 : index
    %c0_109 = arith.constant 0 : index
    %99 = vector.load %arg10[%c2_106, %c2_107, %c0_108, %c0_109] : memref<3x3x40x32xbf16, #tpu.memory_space<vmem>>, vector<1x1x40x32xbf16>
    %100 = vector.shape_cast %99 : vector<1x1x40x32xbf16> to vector<40x32xbf16>
    %cst_110 = arith.constant dense<0.000000e+00> : vector<8x32xf32>
    %101 = tpu.matmul %98, %100, %cst_110 {dimension_numbers = #tpu.dot_dimension_numbers<[1], [0], [0], [1], [0, 0, 1, 1], [], []>} : vector<8x40xbf16>, vector<40x32xbf16>, vector<8x32xf32> -> vector<8x32xf32>
    %102 = arith.addf %97, %101 : vector<8x32xf32>
    %103 = arith.truncf %102 : vector<8x32xf32> to vector<8x32xbf16>
    %c0_111 = arith.constant 0 : index
    %c0_112 = arith.constant 0 : index
    %c0_113 = arith.constant 0 : index
    %c0_114 = arith.constant 0 : index
    %104 = vector.load %arg11[%c0_111, %c0_112, %c0_113, %c0_114] : memref<1x1x8x32xbf16, #tpu.memory_space<vmem>>, vector<1x1x8x32xbf16>
    %105 = vector.shape_cast %104 : vector<1x1x8x32xbf16> to vector<8x32xbf16>
    %106 = vector.shape_cast %103 : vector<8x32xbf16> to vector<1x1x8x32xbf16>
    tpu.vector_store %arg11[%c0_111, %c0_112, %c0_113, %c0_114], %106 {strides = array<i32>} : memref<1x1x8x32xbf16, #tpu.memory_space<vmem>>, vector<1x1x8x32xbf16>,
    %cst_115 = arith.constant dense<0.000000e+00> : vector<32xf32>
    %107 = vector.multi_reduction <add>, %102, %cst_115 [0] : vector<8x32xf32> to vector<32xf32>
    %108 = vector.shape_cast %107 : vector<32xf32> to vector<1x32xf32>
    %109 = arith.mulf %102, %102 : vector<8x32xf32>
    %cst_116 = arith.constant dense<0.000000e+00> : vector<32xf32>
    %110 = vector.multi_reduction <add>, %109, %cst_116 [0] : vector<8x32xf32> to vector<32xf32>
    %111 = vector.shape_cast %110 : vector<32xf32> to vector<1x32xf32>
    %112 = tpu.concatenate %108, %111 in 0 : vector<1x32xf32>, vector<1x32xf32> -> vector<2x32xf32>
    %c0_117 = arith.constant 0 : index
    %c0_118 = arith.constant 0 : index
    %c0_119 = arith.constant 0 : index
    %c0_120 = arith.constant 0 : index
    %113 = vector.load %arg12[%c0_117, %c0_118, %c0_119, %c0_120] : memref<1x1x2x32xf32, #tpu.memory_space<vmem>>, vector<1x1x2x32xf32>
    %114 = vector.shape_cast %113 : vector<1x1x2x32xf32> to vector<2x32xf32>
    %115 = vector.shape_cast %112 : vector<2x32xf32> to vector<1x1x2x32xf32>
    tpu.vector_store %arg12[%c0_117, %c0_118, %c0_119, %c0_120], %115 {strides = array<i32>} : memref<1x1x2x32xf32, #tpu.memory_space<vmem>>, vector<1x1x2x32xf32>,
    return
  }
  func.func @transform_0(%arg0: i32, %arg1: i32, %arg2: i32) -> (i32, i32, i32, i32) {
    %c0_i32 = arith.constant 0 : i32
    %0 = arith.addi %arg1, %c0_i32 : i32
    %c0_i32_0 = arith.constant 0 : i32
    %c0_i32_1 = arith.constant 0 : i32
    %c0_i32_2 = arith.constant 0 : i32
    return %arg0, %0, %c0_i32_0, %c0_i32_1 : i32, i32, i32, i32
  }
  func.func @transform_1(%arg0: i32, %arg1: i32, %arg2: i32) -> (i32, i32, i32, i32) {
    %c1_i32 = arith.constant 1 : i32
    %0 = arith.addi %arg1, %c1_i32 : i32
    %c0_i32 = arith.constant 0 : i32
    %c0_i32_0 = arith.constant 0 : i32
    %c0_i32_1 = arith.constant 0 : i32
    return %arg0, %0, %c0_i32, %c0_i32_0 : i32, i32, i32, i32
  }
  func.func @transform_2(%arg0: i32, %arg1: i32, %arg2: i32) -> (i32, i32, i32, i32) {
    %c2_i32 = arith.constant 2 : i32
    %0 = arith.addi %arg1, %c2_i32 : i32
    %c0_i32 = arith.constant 0 : i32
    %c0_i32_0 = arith.constant 0 : i32
    %c0_i32_1 = arith.constant 0 : i32
    return %arg0, %0, %c0_i32, %c0_i32_0 : i32, i32, i32, i32
  }
  func.func @transform_3(%arg0: i32, %arg1: i32, %arg2: i32) -> (i32, i32, i32, i32) {
    %c0_i32 = arith.constant 0 : i32
    %c0_i32_0 = arith.constant 0 : i32
    %c0_i32_1 = arith.constant 0 : i32
    %c0_i32_2 = arith.constant 0 : i32
    return %c0_i32, %c0_i32_0, %c0_i32_1, %arg2 : i32, i32, i32, i32
  }
  func.func @transform_4(%arg0: i32, %arg1: i32, %arg2: i32) -> (i32, i32, i32, i32) {
    %c0_i32 = arith.constant 0 : i32
    %0 = arith.addi %arg1, %c0_i32 : i32
    %c0_i32_0 = arith.constant 0 : i32
    %c0_i32_1 = arith.constant 0 : i32
    %c0_i32_2 = arith.constant 0 : i32
    return %arg0, %0, %c0_i32_0, %c0_i32_1 : i32, i32, i32, i32
  }
  func.func @transform_5(%arg0: i32, %arg1: i32, %arg2: i32) -> (i32, i32, i32, i32) {
    %c1_i32 = arith.constant 1 : i32
    %0 = arith.addi %arg1, %c1_i32 : i32
    %c0_i32 = arith.constant 0 : i32
    %c0_i32_0 = arith.constant 0 : i32
    %c0_i32_1 = arith.constant 0 : i32
    return %arg0, %0, %c0_i32, %c0_i32_0 : i32, i32, i32, i32
  }
  func.func @transform_6(%arg0: i32, %arg1: i32, %arg2: i32) -> (i32, i32, i32, i32) {
    %c2_i32 = arith.constant 2 : i32
    %0 = arith.addi %arg1, %c2_i32 : i32
    %c0_i32 = arith.constant 0 : i32
    %c0_i32_0 = arith.constant 0 : i32
    %c0_i32_1 = arith.constant 0 : i32
    return %arg0, %0, %c0_i32, %c0_i32_0 : i32, i32, i32, i32
  }
  func.func @transform_7(%arg0: i32, %arg1: i32, %arg2: i32) -> (i32, i32, i32, i32) {
    %c0_i32 = arith.constant 0 : i32
    %c0_i32_0 = arith.constant 0 : i32
    %c0_i32_1 = arith.constant 0 : i32
    %c0_i32_2 = arith.constant 0 : i32
    return %c0_i32, %c0_i32_0, %c0_i32_1, %arg2 : i32, i32, i32, i32
  }
  func.func @transform_8(%arg0: i32, %arg1: i32, %arg2: i32) -> (i32, i32, i32, i32) {
    %c0_i32 = arith.constant 0 : i32
    %c0_i32_0 = arith.constant 0 : i32
    return %arg0, %arg1, %c0_i32, %arg2 : i32, i32, i32, i32
  }
  func.func @transform_9(%arg0: i32, %arg1: i32, %arg2: i32) -> (i32, i32, i32, i32) {
    %c0_i32 = arith.constant 0 : i32
    %c0_i32_0 = arith.constant 0 : i32
    return %arg0, %arg1, %c0_i32, %arg2 : i32, i32, i32, i32
  }
}

module attributes {stable_mosaic.version = 11 : i64} {
  func.func @kernel(%arg0: i32, %arg1: i32, %arg2: i32, %arg3: memref<1x1x10x40xbf16, #tpu.memory_space<vmem>>, %arg4: memref<1x1x10x40xbf16, #tpu.memory_space<vmem>>, %arg5: memref<1x1x10x40xbf16, #tpu.memory_space<vmem>>, %arg6: memref<3x3x40x32xbf16, #tpu.memory_space<vmem>>, %arg7: memref<1x1x8x32xbf16, #tpu.memory_space<vmem>>, %arg8: memref<1x1x2x32xf32, #tpu.memory_space<vmem>>) attributes {dimension_semantics = [#tpu.dimension_semantics<parallel>, #tpu.dimension_semantics<parallel>, #tpu.dimension_semantics<parallel>], iteration_bounds = array<i64: 2, 8, 1>, scalar_prefetch = 0 : i64, scratch_operands = 0 : i64, tpu.core_type = #tpu.core_type<tc>, window_params = [{transform_indices = @transform_0, window_bounds = array<i64: 1, 1, 10, 40>}, {transform_indices = @transform_1, window_bounds = array<i64: 1, 1, 10, 40>}, {transform_indices = @transform_2, window_bounds = array<i64: 1, 1, 10, 40>}, {transform_indices = @transform_3, window_bounds = array<i64: 3, 3, 40, 32>}, {transform_indices = @transform_4, window_bounds = array<i64: 1, 1, 8, 32>}, {transform_indices = @transform_5, window_bounds = array<i64: 1, 1, 2, 32>}]} {
    %cst = arith.constant 0.000000e+00 : f32
    %0 = vector.broadcast %cst : f32 to vector<8x32xf32>
    %c0 = arith.constant 0 : index
    %c0_0 = arith.constant 0 : index
    %c0_1 = arith.constant 0 : index
    %c0_2 = arith.constant 0 : index
    %1 = vector.load %arg3[%c0, %c0_0, %c0_1, %c0_2] : memref<1x1x10x40xbf16, #tpu.memory_space<vmem>>, vector<1x1x10x40xbf16>
    %2 = vector.shape_cast %1 : vector<1x1x10x40xbf16> to vector<10x40xbf16>
    %3 = vector.extract_strided_slice %2 {offsets = [0, 0], sizes = [8, 40], strides = [1, 1]} : vector<10x40xbf16> to vector<8x40xbf16>
    %c0_3 = arith.constant 0 : index
    %c0_4 = arith.constant 0 : index
    %c0_5 = arith.constant 0 : index
    %c0_6 = arith.constant 0 : index
    %4 = vector.load %arg6[%c0_3, %c0_4, %c0_5, %c0_6] : memref<3x3x40x32xbf16, #tpu.memory_space<vmem>>, vector<1x1x40x32xbf16>
    %5 = vector.shape_cast %4 : vector<1x1x40x32xbf16> to vector<40x32xbf16>
    %cst_7 = arith.constant dense<0.000000e+00> : vector<8x32xf32>
    %6 = tpu.matmul %3, %5, %cst_7 {dimension_numbers = #tpu.dot_dimension_numbers<[1], [0], [0], [1], [0, 0, 1, 1], [], []>} : vector<8x40xbf16>, vector<40x32xbf16>, vector<8x32xf32> -> vector<8x32xf32>
    %7 = arith.addf %0, %6 : vector<8x32xf32>
    %8 = vector.extract_strided_slice %2 {offsets = [1, 0], sizes = [8, 40], strides = [1, 1]} : vector<10x40xbf16> to vector<8x40xbf16>
    %c0_8 = arith.constant 0 : index
    %c1 = arith.constant 1 : index
    %c0_9 = arith.constant 0 : index
    %c0_10 = arith.constant 0 : index
    %9 = vector.load %arg6[%c0_8, %c1, %c0_9, %c0_10] : memref<3x3x40x32xbf16, #tpu.memory_space<vmem>>, vector<1x1x40x32xbf16>
    %10 = vector.shape_cast %9 : vector<1x1x40x32xbf16> to vector<40x32xbf16>
    %cst_11 = arith.constant dense<0.000000e+00> : vector<8x32xf32>
    %11 = tpu.matmul %8, %10, %cst_11 {dimension_numbers = #tpu.dot_dimension_numbers<[1], [0], [0], [1], [0, 0, 1, 1], [], []>} : vector<8x40xbf16>, vector<40x32xbf16>, vector<8x32xf32> -> vector<8x32xf32>
    %12 = arith.addf %7, %11 : vector<8x32xf32>
    %13 = vector.extract_strided_slice %2 {offsets = [2, 0], sizes = [8, 40], strides = [1, 1]} : vector<10x40xbf16> to vector<8x40xbf16>
    %c0_12 = arith.constant 0 : index
    %c2 = arith.constant 2 : index
    %c0_13 = arith.constant 0 : index
    %c0_14 = arith.constant 0 : index
    %14 = vector.load %arg6[%c0_12, %c2, %c0_13, %c0_14] : memref<3x3x40x32xbf16, #tpu.memory_space<vmem>>, vector<1x1x40x32xbf16>
    %15 = vector.shape_cast %14 : vector<1x1x40x32xbf16> to vector<40x32xbf16>
    %cst_15 = arith.constant dense<0.000000e+00> : vector<8x32xf32>
    %16 = tpu.matmul %13, %15, %cst_15 {dimension_numbers = #tpu.dot_dimension_numbers<[1], [0], [0], [1], [0, 0, 1, 1], [], []>} : vector<8x40xbf16>, vector<40x32xbf16>, vector<8x32xf32> -> vector<8x32xf32>
    %17 = arith.addf %12, %16 : vector<8x32xf32>
    %c0_16 = arith.constant 0 : index
    %c0_17 = arith.constant 0 : index
    %c0_18 = arith.constant 0 : index
    %c0_19 = arith.constant 0 : index
    %18 = vector.load %arg4[%c0_16, %c0_17, %c0_18, %c0_19] : memref<1x1x10x40xbf16, #tpu.memory_space<vmem>>, vector<1x1x10x40xbf16>
    %19 = vector.shape_cast %18 : vector<1x1x10x40xbf16> to vector<10x40xbf16>
    %20 = vector.extract_strided_slice %19 {offsets = [0, 0], sizes = [8, 40], strides = [1, 1]} : vector<10x40xbf16> to vector<8x40xbf16>
    %c1_20 = arith.constant 1 : index
    %c0_21 = arith.constant 0 : index
    %c0_22 = arith.constant 0 : index
    %c0_23 = arith.constant 0 : index
    %21 = vector.load %arg6[%c1_20, %c0_21, %c0_22, %c0_23] : memref<3x3x40x32xbf16, #tpu.memory_space<vmem>>, vector<1x1x40x32xbf16>
    %22 = vector.shape_cast %21 : vector<1x1x40x32xbf16> to vector<40x32xbf16>
    %cst_24 = arith.constant dense<0.000000e+00> : vector<8x32xf32>
    %23 = tpu.matmul %20, %22, %cst_24 {dimension_numbers = #tpu.dot_dimension_numbers<[1], [0], [0], [1], [0, 0, 1, 1], [], []>} : vector<8x40xbf16>, vector<40x32xbf16>, vector<8x32xf32> -> vector<8x32xf32>
    %24 = arith.addf %17, %23 : vector<8x32xf32>
    %25 = vector.extract_strided_slice %19 {offsets = [1, 0], sizes = [8, 40], strides = [1, 1]} : vector<10x40xbf16> to vector<8x40xbf16>
    %c1_25 = arith.constant 1 : index
    %c1_26 = arith.constant 1 : index
    %c0_27 = arith.constant 0 : index
    %c0_28 = arith.constant 0 : index
    %26 = vector.load %arg6[%c1_25, %c1_26, %c0_27, %c0_28] : memref<3x3x40x32xbf16, #tpu.memory_space<vmem>>, vector<1x1x40x32xbf16>
    %27 = vector.shape_cast %26 : vector<1x1x40x32xbf16> to vector<40x32xbf16>
    %cst_29 = arith.constant dense<0.000000e+00> : vector<8x32xf32>
    %28 = tpu.matmul %25, %27, %cst_29 {dimension_numbers = #tpu.dot_dimension_numbers<[1], [0], [0], [1], [0, 0, 1, 1], [], []>} : vector<8x40xbf16>, vector<40x32xbf16>, vector<8x32xf32> -> vector<8x32xf32>
    %29 = arith.addf %24, %28 : vector<8x32xf32>
    %30 = vector.extract_strided_slice %19 {offsets = [2, 0], sizes = [8, 40], strides = [1, 1]} : vector<10x40xbf16> to vector<8x40xbf16>
    %c1_30 = arith.constant 1 : index
    %c2_31 = arith.constant 2 : index
    %c0_32 = arith.constant 0 : index
    %c0_33 = arith.constant 0 : index
    %31 = vector.load %arg6[%c1_30, %c2_31, %c0_32, %c0_33] : memref<3x3x40x32xbf16, #tpu.memory_space<vmem>>, vector<1x1x40x32xbf16>
    %32 = vector.shape_cast %31 : vector<1x1x40x32xbf16> to vector<40x32xbf16>
    %cst_34 = arith.constant dense<0.000000e+00> : vector<8x32xf32>
    %33 = tpu.matmul %30, %32, %cst_34 {dimension_numbers = #tpu.dot_dimension_numbers<[1], [0], [0], [1], [0, 0, 1, 1], [], []>} : vector<8x40xbf16>, vector<40x32xbf16>, vector<8x32xf32> -> vector<8x32xf32>
    %34 = arith.addf %29, %33 : vector<8x32xf32>
    %c0_35 = arith.constant 0 : index
    %c0_36 = arith.constant 0 : index
    %c0_37 = arith.constant 0 : index
    %c0_38 = arith.constant 0 : index
    %35 = vector.load %arg5[%c0_35, %c0_36, %c0_37, %c0_38] : memref<1x1x10x40xbf16, #tpu.memory_space<vmem>>, vector<1x1x10x40xbf16>
    %36 = vector.shape_cast %35 : vector<1x1x10x40xbf16> to vector<10x40xbf16>
    %37 = vector.extract_strided_slice %36 {offsets = [0, 0], sizes = [8, 40], strides = [1, 1]} : vector<10x40xbf16> to vector<8x40xbf16>
    %c2_39 = arith.constant 2 : index
    %c0_40 = arith.constant 0 : index
    %c0_41 = arith.constant 0 : index
    %c0_42 = arith.constant 0 : index
    %38 = vector.load %arg6[%c2_39, %c0_40, %c0_41, %c0_42] : memref<3x3x40x32xbf16, #tpu.memory_space<vmem>>, vector<1x1x40x32xbf16>
    %39 = vector.shape_cast %38 : vector<1x1x40x32xbf16> to vector<40x32xbf16>
    %cst_43 = arith.constant dense<0.000000e+00> : vector<8x32xf32>
    %40 = tpu.matmul %37, %39, %cst_43 {dimension_numbers = #tpu.dot_dimension_numbers<[1], [0], [0], [1], [0, 0, 1, 1], [], []>} : vector<8x40xbf16>, vector<40x32xbf16>, vector<8x32xf32> -> vector<8x32xf32>
    %41 = arith.addf %34, %40 : vector<8x32xf32>
    %42 = vector.extract_strided_slice %36 {offsets = [1, 0], sizes = [8, 40], strides = [1, 1]} : vector<10x40xbf16> to vector<8x40xbf16>
    %c2_44 = arith.constant 2 : index
    %c1_45 = arith.constant 1 : index
    %c0_46 = arith.constant 0 : index
    %c0_47 = arith.constant 0 : index
    %43 = vector.load %arg6[%c2_44, %c1_45, %c0_46, %c0_47] : memref<3x3x40x32xbf16, #tpu.memory_space<vmem>>, vector<1x1x40x32xbf16>
    %44 = vector.shape_cast %43 : vector<1x1x40x32xbf16> to vector<40x32xbf16>
    %cst_48 = arith.constant dense<0.000000e+00> : vector<8x32xf32>
    %45 = tpu.matmul %42, %44, %cst_48 {dimension_numbers = #tpu.dot_dimension_numbers<[1], [0], [0], [1], [0, 0, 1, 1], [], []>} : vector<8x40xbf16>, vector<40x32xbf16>, vector<8x32xf32> -> vector<8x32xf32>
    %46 = arith.addf %41, %45 : vector<8x32xf32>
    %47 = vector.extract_strided_slice %36 {offsets = [2, 0], sizes = [8, 40], strides = [1, 1]} : vector<10x40xbf16> to vector<8x40xbf16>
    %c2_49 = arith.constant 2 : index
    %c2_50 = arith.constant 2 : index
    %c0_51 = arith.constant 0 : index
    %c0_52 = arith.constant 0 : index
    %48 = vector.load %arg6[%c2_49, %c2_50, %c0_51, %c0_52] : memref<3x3x40x32xbf16, #tpu.memory_space<vmem>>, vector<1x1x40x32xbf16>
    %49 = vector.shape_cast %48 : vector<1x1x40x32xbf16> to vector<40x32xbf16>
    %cst_53 = arith.constant dense<0.000000e+00> : vector<8x32xf32>
    %50 = tpu.matmul %47, %49, %cst_53 {dimension_numbers = #tpu.dot_dimension_numbers<[1], [0], [0], [1], [0, 0, 1, 1], [], []>} : vector<8x40xbf16>, vector<40x32xbf16>, vector<8x32xf32> -> vector<8x32xf32>
    %51 = arith.addf %46, %50 : vector<8x32xf32>
    %52 = arith.truncf %51 : vector<8x32xf32> to vector<8x32xbf16>
    %c0_54 = arith.constant 0 : index
    %c0_55 = arith.constant 0 : index
    %c0_56 = arith.constant 0 : index
    %c0_57 = arith.constant 0 : index
    %53 = vector.load %arg7[%c0_54, %c0_55, %c0_56, %c0_57] : memref<1x1x8x32xbf16, #tpu.memory_space<vmem>>, vector<1x1x8x32xbf16>
    %54 = vector.shape_cast %53 : vector<1x1x8x32xbf16> to vector<8x32xbf16>
    %55 = vector.shape_cast %52 : vector<8x32xbf16> to vector<1x1x8x32xbf16>
    tpu.vector_store %arg7[%c0_54, %c0_55, %c0_56, %c0_57], %55 {strides = array<i32>} : memref<1x1x8x32xbf16, #tpu.memory_space<vmem>>, vector<1x1x8x32xbf16>,
    %cst_58 = arith.constant dense<0.000000e+00> : vector<32xf32>
    %56 = vector.multi_reduction <add>, %51, %cst_58 [0] : vector<8x32xf32> to vector<32xf32>
    %57 = vector.shape_cast %56 : vector<32xf32> to vector<1x32xf32>
    %58 = arith.mulf %51, %51 : vector<8x32xf32>
    %cst_59 = arith.constant dense<0.000000e+00> : vector<32xf32>
    %59 = vector.multi_reduction <add>, %58, %cst_59 [0] : vector<8x32xf32> to vector<32xf32>
    %60 = vector.shape_cast %59 : vector<32xf32> to vector<1x32xf32>
    %61 = tpu.concatenate %57, %60 in 0 : vector<1x32xf32>, vector<1x32xf32> -> vector<2x32xf32>
    %c0_60 = arith.constant 0 : index
    %c0_61 = arith.constant 0 : index
    %c0_62 = arith.constant 0 : index
    %c0_63 = arith.constant 0 : index
    %62 = vector.load %arg8[%c0_60, %c0_61, %c0_62, %c0_63] : memref<1x1x2x32xf32, #tpu.memory_space<vmem>>, vector<1x1x2x32xf32>
    %63 = vector.shape_cast %62 : vector<1x1x2x32xf32> to vector<2x32xf32>
    %64 = vector.shape_cast %61 : vector<2x32xf32> to vector<1x1x2x32xf32>
    tpu.vector_store %arg8[%c0_60, %c0_61, %c0_62, %c0_63], %64 {strides = array<i32>} : memref<1x1x2x32xf32, #tpu.memory_space<vmem>>, vector<1x1x2x32xf32>,
    return
  }
  func.func @transform_0(%arg0: i32, %arg1: i32, %arg2: i32) -> (i32, i32, i32, i32) {
    %c0_i32 = arith.constant 0 : i32
    %0 = arith.addi %arg1, %c0_i32 : i32
    %c0_i32_0 = arith.constant 0 : i32
    %c0_i32_1 = arith.constant 0 : i32
    %c0_i32_2 = arith.constant 0 : i32
    return %arg0, %0, %c0_i32_0, %c0_i32_1 : i32, i32, i32, i32
  }
  func.func @transform_1(%arg0: i32, %arg1: i32, %arg2: i32) -> (i32, i32, i32, i32) {
    %c1_i32 = arith.constant 1 : i32
    %0 = arith.addi %arg1, %c1_i32 : i32
    %c0_i32 = arith.constant 0 : i32
    %c0_i32_0 = arith.constant 0 : i32
    %c0_i32_1 = arith.constant 0 : i32
    return %arg0, %0, %c0_i32, %c0_i32_0 : i32, i32, i32, i32
  }
  func.func @transform_2(%arg0: i32, %arg1: i32, %arg2: i32) -> (i32, i32, i32, i32) {
    %c2_i32 = arith.constant 2 : i32
    %0 = arith.addi %arg1, %c2_i32 : i32
    %c0_i32 = arith.constant 0 : i32
    %c0_i32_0 = arith.constant 0 : i32
    %c0_i32_1 = arith.constant 0 : i32
    return %arg0, %0, %c0_i32, %c0_i32_0 : i32, i32, i32, i32
  }
  func.func @transform_3(%arg0: i32, %arg1: i32, %arg2: i32) -> (i32, i32, i32, i32) {
    %c0_i32 = arith.constant 0 : i32
    %c0_i32_0 = arith.constant 0 : i32
    %c0_i32_1 = arith.constant 0 : i32
    %c0_i32_2 = arith.constant 0 : i32
    return %c0_i32, %c0_i32_0, %c0_i32_1, %arg2 : i32, i32, i32, i32
  }
  func.func @transform_4(%arg0: i32, %arg1: i32, %arg2: i32) -> (i32, i32, i32, i32) {
    %c0_i32 = arith.constant 0 : i32
    %c0_i32_0 = arith.constant 0 : i32
    return %arg0, %arg1, %c0_i32, %arg2 : i32, i32, i32, i32
  }
  func.func @transform_5(%arg0: i32, %arg1: i32, %arg2: i32) -> (i32, i32, i32, i32) {
    %c0_i32 = arith.constant 0 : i32
    %c0_i32_0 = arith.constant 0 : i32
    return %arg0, %arg1, %c0_i32, %arg2 : i32, i32, i32, i32
  }
}

</mosaic_0001>

<llo_original>
// kernel: tile.45
$region0: #{tile.45}
  %s0 = inlined_call_operand.vmem [shape: f32[4,8], index: 0, kind: input, shape index: {}]
  %s1 = inlined_call_operand.vmem [shape: f32[32], index: 1, kind: output, shape index: {}]
  $region1: #{tile.45} parent=0
    #allocation0 [shape = 'u8[4096]{0}', space=vmem, size = 0x1000, scoped, tag = 'scoped mem for output reshape']
    #allocation1 [shape = 'u8[4096]{0}', space=vmem, size = 0x1000, scoped, tag = 'scoped mem for input reshape']
    %s3 = sshll.u32 1, 4
    %s4 = ssub.s32 %s3, 1
    %v5 = vld [vmem:[%s0] sm:%s4]
    %6 = vst [vmem:[#allocation1] sm:%s4] %v5
    %v7 = vld [vmem:[#allocation1] sm:$0x1]
    %vm8 = vcmask 64512
    %9 = vst.msk [vmem:[#allocation0] sm:$0x1] %vm8, %v7
    %s10 = scalar_lea.vmem [#allocation1], 3
    %v11 = vld [vmem:[%s10] sm:$0x1]
    %12 = vrot.lane.b32.xlu0 %v11, 24
    %v13 = vpop.permute.xlu0 %12
    %vm14 = vcmask 261312
    %15 = vst.msk [vmem:[#allocation0] sm:$0x1] %vm14, %v13
    %s16 = scalar_lea.vmem [#allocation1], 2
    %v17 = vld [vmem:[%s16] sm:$0x1]
    %18 = vrot.lane.b32.xlu0 %v17, 16
    %v19 = vpop.permute.xlu0 %18
    %vm20 = vcmask 195712
    %21 = vst.msk [vmem:[#allocation0] sm:$0x1] %vm20, %v19
    %s22 = scalar_lea.vmem [#allocation1], 1
    %v23 = vld [vmem:[%s22] sm:$0x1]
    %24 = vrot.lane.b32.xlu0 %v23, 8
    %v25 = vpop.permute.xlu0 %24
    %vm26 = vcmask 130112
    %27 = vst.msk [vmem:[#allocation0] sm:$0x1] %vm26, %v25
    %s29 = sshll.u32 1, 1
    %s30 = ssub.s32 %s29, 1
    %v32 = vld [vmem:[#allocation0] sm:%s30]
    %s33 = sshll.u32 1, 1
    %s34 = ssub.s32 %s33, 1
    %35 = vst [vmem:[%s1] sm:%s34] %v32

// kernel: tile.46
$region0: #{tile.46}
  #allocation0 [shape = 's32[1]{0}', space=sflag, size = 0x4, scoped, tag = 'scoped memory for tile.46']
  %s0 = inlined_call_operand.vmem [shape: f32[32], index: 0, kind: input, shape index: {}]
  %s1 = inlined_call_operand.vmem [shape: f32[4,32], index: 1, kind: output, shape index: {}]
  // Predicated region
  $region2: #{tile.46} parent=0 // pred_check
    _
  $region3: #{tile.46} parent=0 // pred_check_branch
    %3 = sbr.rel (0) target = $region5
  $region4: #{tile.46} parent=0 // pred_region
    _
  $region5: #{tile.46} parent=0 // pred_fallthru
    _
  %v4 = vld [vmem:[%s0] ss:$0 sm:$0xff]
  %5 = vst [vmem:[%s1] sm:$0xf] %v4

// kernel: tile.50
$region0: #{tile.50}
  %s0 = inlined_call_operand.vmem [shape: f32[4,32], index: 0, kind: input, shape index: {}]
  %s1 = inlined_call_operand.vmem [shape: f32[1,128], index: 1, kind: output, shape index: {}]
  $region1: #{tile.50} parent=0
    #allocation0 [shape = 'u8[4096]{0}', space=vmem, size = 0x1000, scoped, tag = 'scoped mem for output reshape']
    #allocation1 [shape = 'u8[4096]{0}', space=vmem, size = 0x1000, scoped, tag = 'scoped mem for input reshape']
    %s3 = sshll.u32 1, 4
    %s4 = ssub.s32 %s3, 1
    %v5 = vld [vmem:[%s0] sm:%s4]
    %6 = vst [vmem:[#allocation1] sm:%s4] %v5
    %v7 = vld [vmem:[#allocation1] sm:$0x1]
    %vm8 = vcmask 261120
    %9 = vst.msk [vmem:[#allocation0] sm:$0x1] %vm8, %v7
    %s10 = scalar_lea.vmem [#allocation1], 3
    %v11 = vld [vmem:[%s10] sm:$0x1]
    %12 = vrot.lane.b32.xlu0 %v11, 96
    %v13 = vpop.permute.xlu0 %12
    %vm14 = vcmask 1048320
    %15 = vst.msk [vmem:[#allocation0] sm:$0x1] %vm14, %v13
    %s16 = scalar_lea.vmem [#allocation1], 2
    %v17 = vld [vmem:[%s16] sm:$0x1]
    %18 = vrot.lane.b32.xlu0 %v17, 64
    %v19 = vpop.permute.xlu0 %18
    %vm20 = vcmask 785920
    %21 = vst.msk [vmem:[#allocation0] sm:$0x1] %vm20, %v19
    %s22 = scalar_lea.vmem [#allocation1], 1
    %v23 = vld [vmem:[%s22] sm:$0x1]
    %24 = vrot.lane.b32.xlu0 %v23, 32
    %v25 = vpop.permute.xlu0 %24
    %vm26 = vcmask 523520
    %27 = vst.msk [vmem:[#allocation0] sm:$0x1] %vm26, %v25
    %s29 = sshll.u32 1, 1
    %s30 = ssub.s32 %s29, 1
    %v32 = vld [vmem:[#allocation0] sm:%s30]
    %s33 = sshll.u32 1, 1
    %s34 = ssub.s32 %s33, 1
    %35 = vst [vmem:[%s1] sm:%s34] %v32

// kernel: expansion_block_forward.7
$region0: #{expansion_block_forward.7}
  #allocation0 [shape = 'u32[]', space=smem, size = 0x4, offset = 0x4, fixed_abs, tag = 'smem constant byte address 0x4 - core index']
  #allocation1 [shape = 'u32[144,128]{1,0:T(1,128)}', space=vmem, size = 0x12000, scoped, tag = 'internal scratch']
  %s0 = inlined_call_operand.vmem [shape: bf16[32,128], index: 0, kind: input, shape index: {}]
  %s1 = inlined_call_operand.vmem [shape: f32[1,128], index: 1, kind: input, shape index: {}]
  %s2 = inlined_call_operand.vmem [shape: f32[1,128], index: 2, kind: input, shape index: {}]
  %s3 = inlined_call_operand.vmem [shape: bf16[32,128], index: 3, kind: output, shape index: {}]
  %s4 = sld [smem:[#allocation0]]
  $region22: #{expansion_block_forward.7} parent=0
    _
  %s6 = ssub.s32 1, %s4
  %s7 = scalar_select 0, %s6, %s4
  // Predicated region
  $region2: #{expansion_block_forward.7} parent=0 // pred_check
    _
  $region3: #{expansion_block_forward.7} parent=0 // pred_check_branch
    %9 = sbr.rel (0) target = $region5
  $region4: #{expansion_block_forward.7} parent=0 // pred_region
    _
  $region5: #{expansion_block_forward.7} parent=0 // pred_fallthru
    _
  // Predicated region
  $region6: #{expansion_block_forward.7} parent=0 // pred_check
    _
  $region7: #{expansion_block_forward.7} parent=0 // pred_check_branch
    %11 = sbr.rel (0) target = $region9
  $region8: #{expansion_block_forward.7} parent=0 // pred_region
    _
  $region9: #{expansion_block_forward.7} parent=0 // pred_fallthru
    _
  // Predicated region
  $region10: #{expansion_block_forward.7} parent=0 // pred_check
    _
  $region11: #{expansion_block_forward.7} parent=0 // pred_check_branch
    %13 = sbr.rel (0) target = $region13
  $region12: #{expansion_block_forward.7} parent=0 // pred_region
    _
  $region13: #{expansion_block_forward.7} parent=0 // pred_fallthru
    _
  %v14 = vld [vmem:[%s0] sm:$0xf]
  %v15 = vld [vmem:[%s0 + $0x4] sm:$0xf]
  %v16 = vld [vmem:[%s0 + $0x8] sm:$0xf]
  %v17 = vld [vmem:[%s0 + $0xc] sm:$0xf]
  %v18 = vunpack.c.l.bf16 %v14
  %v19 = vunpack.c.l.bf16 %v15
  %v20 = vunpack.c.l.bf16 %v16
  %v21 = vunpack.c.l.bf16 %v17
  %v22 = vld [vmem:[%s1] sm:$0x1]
  %v24 = vlaneseq
  %v25 = vshrl.u32 %v24, 7
  %v26 = vsub.s32 0, %v25
  %v27 = vrot.slane %v22, %v26
  %v29 = vmul.f32 %v18, %v27
  %v30 = vmul.f32 %v19, %v27
  %v31 = vmul.f32 %v20, %v27
  %v32 = vmul.f32 %v21, %v27
  %v33 = vld [vmem:[%s2] sm:$0x1]
  %v35 = vlaneseq
  %v36 = vshrl.u32 %v35, 7
  %v37 = vsub.s32 0, %v36
  %v38 = vrot.slane %v33, %v37
  %v40 = vadd.f32 %v29, %v38
  %v41 = vadd.f32 %v30, %v38
  %v42 = vadd.f32 %v31, %v38
  %v43 = vadd.f32 %v32, %v38
  %v44 = vmax.f32 %v40, 0.0
  %v45 = vmax.f32 %v41, 0.0
  %v46 = vmax.f32 %v42, 0.0
  %v47 = vmax.f32 %v43, 0.0
  %v48 = vpack.c.bf16 %v45, %v44
  %v49 = vpack.c.bf16 %v47, %v46
  %v52 = vunpack.c.l.b16 %v48
  %v53 = vunpack.c.h.b16 %v48
  %v54 = vunpack.c.l.b16 %v49
  %v55 = vunpack.c.h.b16 %v49
  %v56 = vpack.c.b16 %v52, %v52
  %v57 = vpack.c.b16 %v53, %v53
  %v58 = vpack.c.b16 %v54, %v54
  %v59 = vpack.c.b16 %v55, %v55
  %64 = vst [vmem:[%s3] sm:$0xf] %v56
  %65 = vst [vmem:[%s3 + $0x4] sm:$0xf] %v57
  %66 = vst [vmem:[%s3 + $0x8] sm:$0xf] %v58
  %67 = vst [vmem:[%s3 + $0xc] sm:$0xf] %v59
  // Predicated region
  $region14: #{expansion_block_forward.7} parent=0 // pred_check
    _
  $region15: #{expansion_block_forward.7} parent=0 // pred_check_branch
    %69 = sbr.rel (0) target = $region17
  $region16: #{expansion_block_forward.7} parent=0 // pred_region
    _
  $region17: #{expansion_block_forward.7} parent=0 // pred_fallthru
    _
  // Predicated region
  $region18: #{expansion_block_forward.7} parent=0 // pred_check
    _
  $region19: #{expansion_block_forward.7} parent=0 // pred_check_branch
    %71 = sbr.rel (0) target = $region21
  $region20: #{expansion_block_forward.7} parent=0 // pred_region
    _
  $region21: #{expansion_block_forward.7} parent=0 // pred_fallthru
    _

// kernel: expansion_block_forward.6
$region0: #{expansion_block_forward.6}
  #allocation0 [shape = 'u32[]', space=smem, size = 0x4, offset = 0x4, fixed_abs, tag = 'smem constant byte address 0x4 - core index']
  #allocation1 [shape = 'u32[144,128]{1,0:T(1,128)}', space=vmem, size = 0x12000, scoped, tag = 'internal scratch']
  %s0 = inlined_call_operand.vmem [shape: bf16[128,8], index: 0, kind: input, shape index: {}]
  %s1 = inlined_call_operand.vmem [shape: bf16[8,32], index: 1, kind: input, shape index: {}]
  %s2 = inlined_call_operand.vmem [shape: bf16[128,32], index: 2, kind: output, shape index: {0}]
  %s3 = inlined_call_operand.vmem [shape: f32[1,2,32], index: 3, kind: output, shape index: {1}]
  %4 = xla_tuple %s2, %s3
  %s5 = sld [smem:[#allocation0]]
  $region26: #{expansion_block_forward.6} parent=0
    _
  %s7 = ssub.s32 1, %s5
  %s8 = scalar_select 0, %s7, %s5
  // Predicated region
  $region2: #{expansion_block_forward.6} parent=0 // pred_check
    _
  $region3: #{expansion_block_forward.6} parent=0 // pred_check_branch
    %10 = sbr.rel (0) target = $region5
  $region4: #{expansion_block_forward.6} parent=0 // pred_region
    _
  $region5: #{expansion_block_forward.6} parent=0 // pred_fallthru
    _
  // Predicated region
  $region6: #{expansion_block_forward.6} parent=0 // pred_check
    _
  $region7: #{expansion_block_forward.6} parent=0 // pred_check_branch
    %12 = sbr.rel (0) target = $region9
  $region8: #{expansion_block_forward.6} parent=0 // pred_region
    _
  $region9: #{expansion_block_forward.6} parent=0 // pred_fallthru
    _
  %v14 = vld [vmem:[%s0] sm:$0xf]
  %v15 = vld [vmem:[%s0 + $0x4] sm:$0xf]
  %v16 = vld [vmem:[%s0 + $0x8] sm:$0xf]
  %v17 = vld [vmem:[%s0 + $0xc] sm:$0xf]
  %v18 = vld [vmem:[%s0 + $0x10] sm:$0xf]
  %v19 = vld [vmem:[%s0 + $0x14] sm:$0xf]
  %v20 = vld [vmem:[%s0 + $0x18] sm:$0xf]
  %v21 = vld [vmem:[%s0 + $0x1c] sm:$0xf]
  %v22 = vld [vmem:[%s0 + $0x20] sm:$0xf]
  %v23 = vld [vmem:[%s0 + $0x24] sm:$0xf]
  %v24 = vld [vmem:[%s0 + $0x28] sm:$0xf]
  %v25 = vld [vmem:[%s0 + $0x2c] sm:$0xf]
  %v26 = vld [vmem:[%s0 + $0x30] sm:$0xf]
  %v27 = vld [vmem:[%s0 + $0x34] sm:$0xf]
  %v28 = vld [vmem:[%s0 + $0x38] sm:$0xf]
  %v29 = vld [vmem:[%s0 + $0x3c] sm:$0xf]
  %v30 = vld [vmem:[%s1] sm:$0xf]
  %v47 = vunpack.c.l.b16 %v14
  %v48 = vunpack.c.l.b16 %v15
  %v49 = vunpack.c.l.b16 %v16
  %v50 = vunpack.c.l.b16 %v17
  %v51 = vunpack.c.l.b16 %v18
  %v52 = vunpack.c.l.b16 %v19
  %v53 = vunpack.c.l.b16 %v20
  %v54 = vunpack.c.l.b16 %v21
  %v55 = vunpack.c.l.b16 %v22
  %v56 = vunpack.c.l.b16 %v23
  %v57 = vunpack.c.l.b16 %v24
  %v58 = vunpack.c.l.b16 %v25
  %v59 = vunpack.c.l.b16 %v26
  %v60 = vunpack.c.l.b16 %v27
  %v61 = vunpack.c.l.b16 %v28
  %v62 = vunpack.c.l.b16 %v29
  %v63 = vpack.c.b16 %v48, %v47
  %v64 = vpack.c.b16 %v50, %v49
  %v65 = vpack.c.b16 %v52, %v51
  %v66 = vpack.c.b16 %v54, %v53
  %v67 = vpack.c.b16 %v56, %v55
  %v68 = vpack.c.b16 %v58, %v57
  %v69 = vpack.c.b16 %v60, %v59
  %v70 = vpack.c.b16 %v62, %v61
  %vm71 = vcmask 64512
  %v73 = vsel %vm71, %v63, 0
  %v76 = vsel %vm71, %v64, 0
  %v79 = vsel %vm71, %v65, 0
  %v82 = vsel %vm71, %v66, 0
  %v85 = vsel %vm71, %v67, 0
  %v88 = vsel %vm71, %v68, 0
  %v91 = vsel %vm71, %v69, 0
  %v94 = vsel %vm71, %v70, 0
  %vm96 = vcmask 1043456
  %v98 = vsel %vm96, %v30, 0
  %100 = vmatprep.subr.bf16.mxu0 0
  %101 = vmatpush1.bf16.msra.mxu0 0
  %102 = vmatprep.subr.bf16.mxu0 0
  %103 = vmatpush1.bf16.msra.mxu0 0
  %104 = vmatprep.subr.bf16.mxu0 0
  %105 = vmatpush1.bf16.msra.mxu0 0
  %106 = vmatprep.subr.bf16.mxu0 0
  %107 = vmatpush1.bf16.msra.mxu0 0
  %108 = vmatprep.subr.bf16.mxu0 0
  %109 = vmatpush1.bf16.msra.mxu0 0
  %110 = vmatprep.subr.bf16.mxu0 0
  %111 = vmatpush1.bf16.msra.mxu0 0
  %112 = vmatprep.subr.bf16.mxu0 0
  %113 = vmatpush1.bf16.msra.mxu0 0
  %114 = vmatprep.subr.bf16.mxu0 0
  %115 = vmatpush1.bf16.msra.mxu0 %v98
  %116 = vmatprep.subr.bf16.mxu0 0
  %117 = vmatpush2.bf16.msra.mxu0 0
  %118 = vmatprep.subr.bf16.mxu0 0
  %119 = vmatpush2.bf16.msra.mxu0 0
  %120 = vmatprep.subr.bf16.mxu0 0
  %121 = vmatpush2.bf16.msra.mxu0 0
  %122 = vmatprep.subr.bf16.mxu0 0
  %123 = vmatpush2.bf16.msra.mxu0 0
  %124 = vmatprep.subr.bf16.mxu0 0
  %125 = vmatpush2.bf16.msra.mxu0 0
  %126 = vmatprep.subr.bf16.mxu0 0
  %127 = vmatpush2.bf16.msra.mxu0 0
  %128 = vmatprep.subr.bf16.mxu0 0
  %129 = vmatpush2.bf16.msra.mxu0 0
  %130 = vmatprep.subr.bf16.mxu0 0
  %131 = vmatpush2.bf16.msra.mxu0 0
  %132 = vmatprep.mubr.bf16.mxu0 0
  %133 = vmatmul.mubr.bf16.gmra.mxu0 %v73
  %v134 = vpop.f32.mrf.mxu0
  %v135 = vadd.f32 0.0, %v134
  %v136 = vpop.f32.mrf.mxu0
  %v137 = vpop.f32.mrf.mxu0
  %v138 = vadd.f32 0.0, %v137
  %v139 = vpop.f32.mrf.mxu0
  %140 = vmatprep.mubr.bf16.mxu0 0
  %141 = vmatmul.mubr.bf16.gmra.mxu0 %v76
  %v142 = vpop.f32.mrf.mxu0
  %v143 = vadd.f32 0.0, %v142
  %v144 = vpop.f32.mrf.mxu0
  %v145 = vpop.f32.mrf.mxu0
  %v146 = vadd.f32 0.0, %v145
  %v147 = vpop.f32.mrf.mxu0
  %148 = vmatprep.mubr.bf16.mxu0 0
  %149 = vmatmul.mubr.bf16.gmra.mxu0 %v79
  %v150 = vpop.f32.mrf.mxu0
  %v151 = vadd.f32 0.0, %v150
  %v152 = vpop.f32.mrf.mxu0
  %v153 = vpop.f32.mrf.mxu0
  %v154 = vadd.f32 0.0, %v153
  %v155 = vpop.f32.mrf.mxu0
  %156 = vmatprep.mubr.bf16.mxu0 0
  %157 = vmatmul.mubr.bf16.gmra.mxu0 %v82
  %v158 = vpop.f32.mrf.mxu0
  %v159 = vadd.f32 0.0, %v158
  %v160 = vpop.f32.mrf.mxu0
  %v161 = vpop.f32.mrf.mxu0
  %v162 = vadd.f32 0.0, %v161
  %v163 = vpop.f32.mrf.mxu0
  %164 = vmatprep.mubr.bf16.mxu0 0
  %165 = vmatmul.mubr.bf16.gmra.mxu0 %v85
  %v166 = vpop.f32.mrf.mxu0
  %v167 = vadd.f32 0.0, %v166
  %v168 = vpop.f32.mrf.mxu0
  %v169 = vpop.f32.mrf.mxu0
  %v170 = vadd.f32 0.0, %v169
  %v171 = vpop.f32.mrf.mxu0
  %172 = vmatprep.mubr.bf16.mxu0 0
  %173 = vmatmul.mubr.bf16.gmra.mxu0 %v88
  %v174 = vpop.f32.mrf.mxu0
  %v175 = vadd.f32 0.0, %v174
  %v176 = vpop.f32.mrf.mxu0
  %v177 = vpop.f32.mrf.mxu0
  %v178 = vadd.f32 0.0, %v177
  %v179 = vpop.f32.mrf.mxu0
  %180 = vmatprep.mubr.bf16.mxu0 0
  %181 = vmatmul.mubr.bf16.gmra.mxu0 %v91
  %v182 = vpop.f32.mrf.mxu0
  %v183 = vadd.f32 0.0, %v182
  %v184 = vpop.f32.mrf.mxu0
  %v185 = vpop.f32.mrf.mxu0
  %v186 = vadd.f32 0.0, %v185
  %v187 = vpop.f32.mrf.mxu0
  %188 = vmatprep.mubr.bf16.mxu0 0
  %189 = vmatmul.mubr.bf16.gmra.mxu0 %v94
  %v190 = vpop.f32.mrf.mxu0
  %v191 = vadd.f32 0.0, %v190
  %v192 = vpop.f32.mrf.mxu0
  %v193 = vpop.f32.mrf.mxu0
  %v194 = vadd.f32 0.0, %v193
  %v195 = vpop.f32.mrf.mxu0
  %196 = vdwg.mxu0
  %v197 = vpack.c.bf16 %v138, %v135
  %v198 = vpack.c.bf16 %v146, %v143
  %v199 = vpack.c.bf16 %v154, %v151
  %v200 = vpack.c.bf16 %v162, %v159
  %v201 = vpack.c.bf16 %v170, %v167
  %v202 = vpack.c.bf16 %v178, %v175
  %v203 = vpack.c.bf16 %v186, %v183
  %v204 = vpack.c.bf16 %v194, %v191
  %v213 = vunpack.c.l.b16 %v197
  %v214 = vunpack.c.h.b16 %v197
  %v215 = vunpack.c.l.b16 %v198
  %v216 = vunpack.c.h.b16 %v198
  %v217 = vunpack.c.l.b16 %v199
  %v218 = vunpack.c.h.b16 %v199
  %v219 = vunpack.c.l.b16 %v200
  %v220 = vunpack.c.h.b16 %v200
  %v221 = vunpack.c.l.b16 %v201
  %v222 = vunpack.c.h.b16 %v201
  %v223 = vunpack.c.l.b16 %v202
  %v224 = vunpack.c.h.b16 %v202
  %v225 = vunpack.c.l.b16 %v203
  %v226 = vunpack.c.h.b16 %v203
  %v227 = vunpack.c.l.b16 %v204
  %v228 = vunpack.c.h.b16 %v204
  %v229 = vpack.c.b16 %v213, %v213
  %v230 = vpack.c.b16 %v214, %v214
  %v231 = vpack.c.b16 %v215, %v215
  %v232 = vpack.c.b16 %v216, %v216
  %v233 = vpack.c.b16 %v217, %v217
  %v234 = vpack.c.b16 %v218, %v218
  %v235 = vpack.c.b16 %v219, %v219
  %v236 = vpack.c.b16 %v220, %v220
  %v237 = vpack.c.b16 %v221, %v221
  %v238 = vpack.c.b16 %v222, %v222
  %v239 = vpack.c.b16 %v223, %v223
  %v240 = vpack.c.b16 %v224, %v224
  %v241 = vpack.c.b16 %v225, %v225
  %v242 = vpack.c.b16 %v226, %v226
  %v243 = vpack.c.b16 %v227, %v227
  %v244 = vpack.c.b16 %v228, %v228
  %vm261 = vcmask 257024
  %262 = vst.msk [vmem:[%s2] sm:$0xf] %vm261, %v229
  %263 = vst.msk [vmem:[%s2 + $0x4] sm:$0xf] %vm261, %v230
  %264 = vst.msk [vmem:[%s2 + $0x8] sm:$0xf] %vm261, %v231
  %265 = vst.msk [vmem:[%s2 + $0xc] sm:$0xf] %vm261, %v232
  %266 = vst.msk [vmem:[%s2 + $0x10] sm:$0xf] %vm261, %v233
  %267 = vst.msk [vmem:[%s2 + $0x14] sm:$0xf] %vm261, %v234
  %268 = vst.msk [vmem:[%s2 + $0x18] sm:$0xf] %vm261, %v235
  %269 = vst.msk [vmem:[%s2 + $0x1c] sm:$0xf] %vm261, %v236
  %270 = vst.msk [vmem:[%s2 + $0x20] sm:$0xf] %vm261, %v237
  %271 = vst.msk [vmem:[%s2 + $0x24] sm:$0xf] %vm261, %v238
  %272 = vst.msk [vmem:[%s2 + $0x28] sm:$0xf] %vm261, %v239
  %273 = vst.msk [vmem:[%s2 + $0x2c] sm:$0xf] %vm261, %v240
  %274 = vst.msk [vmem:[%s2 + $0x30] sm:$0xf] %vm261, %v241
  %275 = vst.msk [vmem:[%s2 + $0x34] sm:$0xf] %vm261, %v242
  %276 = vst.msk [vmem:[%s2 + $0x38] sm:$0xf] %vm261, %v243
  %277 = vst.msk [vmem:[%s2 + $0x3c] sm:$0xf] %vm261, %v244
  %vm278 = vcmask 261120
  %v279 = vsel %vm278, %v135, 0.0
  %v280 = vsel %vm278, %v138, 0.0
  %v281 = vadd.f32 %v279, %v280
  %v282 = vsel %vm278, %v143, 0.0
  %v283 = vadd.f32 %v281, %v282
  %v284 = vsel %vm278, %v146, 0.0
  %v285 = vadd.f32 %v283, %v284
  %v286 = vsel %vm278, %v151, 0.0
  %v287 = vadd.f32 %v285, %v286
  %v288 = vsel %vm278, %v154, 0.0
  %v289 = vadd.f32 %v287, %v288
  %v290 = vsel %vm278, %v159, 0.0
  %v291 = vadd.f32 %v289, %v290
  %v292 = vsel %vm278, %v162, 0.0
  %v293 = vadd.f32 %v291, %v292
  %v294 = vsel %vm278, %v167, 0.0
  %v295 = vadd.f32 %v293, %v294
  %v296 = vsel %vm278, %v170, 0.0
  %v297 = vadd.f32 %v295, %v296
  %v298 = vsel %vm278, %v175, 0.0
  %v299 = vadd.f32 %v297, %v298
  %v300 = vsel %vm278, %v178, 0.0
  %v301 = vadd.f32 %v299, %v300
  %v302 = vsel %vm278, %v183, 0.0
  %v303 = vadd.f32 %v301, %v302
  %v304 = vsel %vm278, %v186, 0.0
  %v305 = vadd.f32 %v303, %v304
  %v306 = vsel %vm278, %v191, 0.0
  %v307 = vadd.f32 %v305, %v306
  %v308 = vsel %vm278, %v194, 0.0
  %v309 = vadd.f32 %v307, %v308
  %v310 = vrot.slane %v309, 4
  %v311 = vadd.f32 %v309, %v310
  %v312 = vrot.slane %v311, 2
  %v313 = vadd.f32 %v311, %v312
  %v314 = vrot.slane %v313, 1
  %v315 = vadd.f32 %v313, %v314
  %v316 = vmul.f32 %v135, %v135
  %v317 = vmul.f32 %v138, %v138
  %v318 = vmul.f32 %v143, %v143
  %v319 = vmul.f32 %v146, %v146
  %v320 = vmul.f32 %v151, %v151
  %v321 = vmul.f32 %v154, %v154
  %v322 = vmul.f32 %v159, %v159
  %v323 = vmul.f32 %v162, %v162
  %v324 = vmul.f32 %v167, %v167
  %v325 = vmul.f32 %v170, %v170
  %v326 = vmul.f32 %v175, %v175
  %v327 = vmul.f32 %v178, %v178
  %v328 = vmul.f32 %v183, %v183
  %v329 = vmul.f32 %v186, %v186
  %v330 = vmul.f32 %v191, %v191
  %v331 = vmul.f32 %v194, %v194
  %v332 = vsel %vm278, %v316, 0.0
  %v333 = vsel %vm278, %v317, 0.0
  %v334 = vadd.f32 %v332, %v333
  %v335 = vsel %vm278, %v318, 0.0
  %v336 = vadd.f32 %v334, %v335
  %v337 = vsel %vm278, %v319, 0.0
  %v338 = vadd.f32 %v336, %v337
  %v339 = vsel %vm278, %v320, 0.0
  %v340 = vadd.f32 %v338, %v339
  %v341 = vsel %vm278, %v321, 0.0
  %v342 = vadd.f32 %v340, %v341
  %v343 = vsel %vm278, %v322, 0.0
  %v344 = vadd.f32 %v342, %v343
  %v345 = vsel %vm278, %v323, 0.0
  %v346 = vadd.f32 %v344, %v345
  %v347 = vsel %vm278, %v324, 0.0
  %v348 = vadd.f32 %v346, %v347
  %v349 = vsel %vm278, %v325, 0.0
  %v350 = vadd.f32 %v348, %v349
  %v351 = vsel %vm278, %v326, 0.0
  %v352 = vadd.f32 %v350, %v351
  %v353 = vsel %vm278, %v327, 0.0
  %v354 = vadd.f32 %v352, %v353
  %v355 = vsel %vm278, %v328, 0.0
  %v356 = vadd.f32 %v354, %v355
  %v357 = vsel %vm278, %v329, 0.0
  %v358 = vadd.f32 %v356, %v357
  %v359 = vsel %vm278, %v330, 0.0
  %v360 = vadd.f32 %v358, %v359
  %v361 = vsel %vm278, %v331, 0.0
  %v362 = vadd.f32 %v360, %v361
  %v363 = vrot.slane %v362, 4
  %v364 = vadd.f32 %v362, %v363
  %v365 = vrot.slane %v364, 2
  %v366 = vadd.f32 %v364, %v365
  %v367 = vrot.slane %v366, 1
  %v368 = vadd.f32 %v366, %v367
  %vm369 = vcmask 1040384
  %v370 = vsel %vm369, %v315, %v368
  %vm371 = vcmask 254976
  %372 = vst.msk [vmem:[%s3] sm:$0x3] %vm371, %v370
  // Predicated region
  $region10: #{expansion_block_forward.6} parent=0 // pred_check
    _
  $region11: #{expansion_block_forward.6} parent=0 // pred_check_branch
    %374 = sbr.rel (0) target = $region13
  $region12: #{expansion_block_forward.6} parent=0 // pred_region
    _
  $region13: #{expansion_block_forward.6} parent=0 // pred_fallthru
    _
  // Predicated region
  $region14: #{expansion_block_forward.6} parent=0 // pred_check
    _
  $region15: #{expansion_block_forward.6} parent=0 // pred_check_branch
    %376 = sbr.rel (0) target = $region17
  $region16: #{expansion_block_forward.6} parent=0 // pred_region
    _
  $region17: #{expansion_block_forward.6} parent=0 // pred_fallthru
    _
  // Predicated region
  $region18: #{expansion_block_forward.6} parent=0 // pred_check
    _
  $region19: #{expansion_block_forward.6} parent=0 // pred_check_branch
    %378 = sbr.rel (0) target = $region21
  $region20: #{expansion_block_forward.6} parent=0 // pred_region
    _
  $region21: #{expansion_block_forward.6} parent=0 // pred_fallthru
    _
  // Predicated region
  $region22: #{expansion_block_forward.6} parent=0 // pred_check
    _
  $region23: #{expansion_block_forward.6} parent=0 // pred_check_branch
    %380 = sbr.rel (0) target = $region25
  $region24: #{expansion_block_forward.6} parent=0 // pred_region
    _
  $region25: #{expansion_block_forward.6} parent=0 // pred_fallthru
    _

// kernel: tile.55
$region0: #{tile.55}
  #allocation0 [shape = 's32[1]{0}', space=sflag, size = 0x4, scoped, tag = 'scoped memory for tile.55']
  %s0 = inlined_call_operand.vmem [shape: f32[4], index: 0, kind: input, shape index: {}]
  %s1 = inlined_call_operand.vmem [shape: f32[8,4], index: 1, kind: output, shape index: {}]
  // Predicated region
  $region2: #{tile.55} parent=0 // pred_check
    _
  $region3: #{tile.55} parent=0 // pred_check_branch
    %3 = sbr.rel (0) target = $region5
  $region4: #{tile.55} parent=0 // pred_region
    _
  $region5: #{tile.55} parent=0 // pred_fallthru
    _
  %v4 = vld [vmem:[%s0] ss:$0 sm:$0xff]
  %5 = vst [vmem:[%s1] sm:$0xff] %v4

// kernel: tile.62
$region0: #{tile.62}
  %s0 = inlined_call_operand.vmem [shape: f32[8,4], index: 0, kind: input, shape index: {}]
  %s1 = inlined_call_operand.vmem [shape: f32[32], index: 1, kind: output, shape index: {}]
  $region1: #{tile.62} parent=0
    #allocation0 [shape = 'u8[4096]{0}', space=vmem, size = 0x1000, scoped, tag = 'scoped mem for output reshape']
    %v2 = vld [vmem:[%s0] sm:$0x1]
    %vm3 = vcmask 31744
    %4 = vst.msk [vmem:[#allocation0] sm:$0x1] %vm3, %v2
    %s5 = scalar_lea.vmem %s0, 7
    %v6 = vld [vmem:[%s5] sm:$0x1]
    %7 = vrot.lane.b32.xlu0 %v6, 28
    %v8 = vpop.permute.xlu0 %7
    %vm9 = vcmask 261344
    %10 = vst.msk [vmem:[#allocation0] sm:$0x1] %vm9, %v8
    %s11 = scalar_lea.vmem %s0, 6
    %v12 = vld [vmem:[%s11] sm:$0x1]
    %13 = vrot.lane.b32.xlu0 %v12, 24
    %v14 = vpop.permute.xlu0 %13
    %vm15 = vcmask 228544
    %16 = vst.msk [vmem:[#allocation0] sm:$0x1] %vm15, %v14
    %s17 = scalar_lea.vmem %s0, 5
    %v18 = vld [vmem:[%s17] sm:$0x1]
    %19 = vrot.lane.b32.xlu0 %v18, 20
    %v20 = vpop.permute.xlu0 %19
    %vm21 = vcmask 195744
    %22 = vst.msk [vmem:[#allocation0] sm:$0x1] %vm21, %v20
    %s23 = scalar_lea.vmem %s0, 4
    %v24 = vld [vmem:[%s23] sm:$0x1]
    %25 = vrot.lane.b32.xlu0 %v24, 16
    %v26 = vpop.permute.xlu0 %25
    %vm27 = vcmask 162944
    %28 = vst.msk [vmem:[#allocation0] sm:$0x1] %vm27, %v26
    %s29 = scalar_lea.vmem %s0, 3
    %v30 = vld [vmem:[%s29] sm:$0x1]
    %31 = vrot.lane.b32.xlu0 %v30, 12
    %v32 = vpop.permute.xlu0 %31
    %vm33 = vcmask 130144
    %34 = vst.msk [vmem:[#allocation0] sm:$0x1] %vm33, %v32
    %s35 = scalar_lea.vmem %s0, 2
    %v36 = vld [vmem:[%s35] sm:$0x1]
    %37 = vrot.lane.b32.xlu0 %v36, 8
    %v38 = vpop.permute.xlu0 %37
    %vm39 = vcmask 97344
    %40 = vst.msk [vmem:[#allocation0] sm:$0x1] %vm39, %v38
    %s41 = scalar_lea.vmem %s0, 1
    %v42 = vld [vmem:[%s41] sm:$0x1]
    %43 = vrot.lane.b32.xlu0 %v42, 4
    %v44 = vpop.permute.xlu0 %43
    %vm45 = vcmask 64544
    %46 = vst.msk [vmem:[#allocation0] sm:$0x1] %vm45, %v44
    %s48 = sshll.u32 1, 1
    %s49 = ssub.s32 %s48, 1
    %v51 = vld [vmem:[#allocation0] sm:%s49]
    %s52 = sshll.u32 1, 1
    %s53 = ssub.s32 %s52, 1
    %54 = vst [vmem:[%s1] sm:%s53] %v51

// kernel: expansion_block_forward.8
$region0: #{expansion_block_forward.8}
  #allocation0 [shape = 'u32[]', space=smem, size = 0x4, offset = 0x4, fixed_abs, tag = 'smem constant byte address 0x4 - core index']
  #allocation1 [shape = 'u32[144,128]{1,0:T(1,128)}', space=vmem, size = 0x12000, scoped, tag = 'internal scratch']
  %s0 = inlined_call_operand.vmem [shape: bf16[2,10,10,40], index: 0, kind: input, shape index: {}, may-alias: {0,1,2}]
  %s1 = inlined_call_operand.vmem [shape: bf16[2,10,10,40], index: 1, kind: input, shape index: {}, may-alias: {0,1,2}]
  %s2 = inlined_call_operand.vmem [shape: bf16[2,10,10,40], index: 2, kind: input, shape index: {}, may-alias: {0,1,2}]
  %s3 = inlined_call_operand.vmem [shape: bf16[3,3,40,32], index: 3, kind: input, shape index: {}]
  %s4 = inlined_call_operand.vmem [shape: bf16[2,10,10,40], index: 4, kind: input, shape index: {}, may-alias: {4,5,6}]
  %s5 = inlined_call_operand.vmem [shape: bf16[2,10,10,40], index: 5, kind: input, shape index: {}, may-alias: {4,5,6}]
  %s6 = inlined_call_operand.vmem [shape: bf16[2,10,10,40], index: 6, kind: input, shape index: {}, may-alias: {4,5,6}]
  %s7 = inlined_call_operand.vmem [shape: bf16[3,3,40,32], index: 7, kind: input, shape index: {}]
  %s8 = inlined_call_operand.vmem [shape: bf16[2,8,8,32], index: 8, kind: output, shape index: {0}]
  %s9 = inlined_call_operand.vmem [shape: f32[2,8,2,32], index: 9, kind: output, shape index: {1}]
  %10 = xla_tuple %s8, %s9
  %s11 = sld [smem:[#allocation0]]
  $region73: #{expansion_block_forward.8} parent=0
    _
  %s13 = ssub.s32 1, %s11
  %s14 = scalar_select 0, %s13, %s11
  loop: start=0, step=1, limit=18
  $region2: #{expansion_block_forward.8} parent=0 // loop_pre_header
    _
  $region3: #{expansion_block_forward.8} parent=0 // loop_header
    %s16 = sphi 0, %s20
    %p17 = scmp.ge.s32.totalorder %s16, 18
    %s23 = sphi 0, %s42
    %s24 = sphi 0, %s38
    %s25 = sphi 0, %s34
    %s26 = sphi 0, %s23
    %s27 = sphi 0, %s24
    %s28 = sphi 0, %s25
    %s29 = sphi 0, %s26
    %s30 = sphi 0, %s27
    %s31 = sphi 0, %s28
    %s47 = sphi 0, %s49
    %s50 = sphi 0, %s47
    %s51 = sphi 0, %s50
    %s67 = sphi 0, %s51
    %s77 = sphi 0, %s79
    %s80 = sphi 0, %s77
    %s81 = sphi 0, %s80
    %s97 = sphi 0, %s81
    %s107 = sphi 0, %s109
    %s110 = sphi 0, %s107
    %s111 = sphi 0, %s110
    %s127 = sphi 0, %s111
    %s133 = sphi 0, %s135
    %s136 = sphi 0, %s133
    %s137 = sphi 0, %s136
    %s153 = sphi 0, %s137
    %s161 = sphi 0, %s163
    %s164 = sphi 0, %s161
    %s165 = sphi 0, %s164
    %s181 = sphi 0, %s165
    %s191 = sphi 0, %s193
    %s194 = sphi 0, %s191
    %s195 = sphi 0, %s194
    %s211 = sphi 0, %s195
    %s221 = sphi 0, %s223
    %s224 = sphi 0, %s221
    %s225 = sphi 0, %s224
    %s241 = sphi 0, %s225
    %s247 = sphi 0, %s249
    %s250 = sphi 0, %s247
    %s251 = sphi 0, %s250
    %s267 = sphi 0, %s251
    %s277 = sphi 0, %s279
    %s280 = sphi 0, %s277
    %s281 = sphi 0, %s280
    %s297 = sphi 0, %s281
    %s307 = sphi 0, %s309
    %s310 = sphi 0, %s307
    %s311 = sphi 0, %s310
    %s327 = sphi 0, %s311
  $region4: #{expansion_block_forward.8} parent=0 // loop_header_branch
    %19 = sbr.rel (%p17) target = $region8
  $region5: #{expansion_block_forward.8} parent=0 // loop_body
    %s21 = ssub.s32 %s16, 1
    %s22 = ssub.s32 %s16, 2
    %s32 = sadd.s32 1, %s25
    %p33 = scmp.ge.s32.totalorder %s32, 1
    %s34 = scalar_select %p33, 0, %s32
    %s35 = sadd.s32 1, %s24
    %s36 = scalar_select %p33, %s35, %s24
    %p37 = scmp.ge.s32.totalorder %s36, 8
    %s38 = scalar_select %p37, 0, %s36
    %s39 = sadd.s32 1, %s23
    %s40 = scalar_select %p37, %s39, %s23
    %p41 = scmp.ge.s32.totalorder %s40, 2
    %s42 = scalar_select %p41, 0, %s40
    %s43 = ssub.s32 %s23, %s42
    %s44 = ssub.s32 %s24, %s38
    %s45 = sor.u32 %s43, %s44
    %p46 = scmp.eq.s32.totalorder %s45, 0
    %s48 = sadd.s32 %s47, 1
    %s49 = scalar_select %p46, %s47, %s48
    %p52 = pneg %p46
    %p53 = scmp.eq.s32.totalorder %s16, 15
    %p54 = por %p52, %p53
    %p55 = scmp.ne.s32.totalorder %s47, %s50
    %p56 = scmp.eq.s32.totalorder %s16, 0
    %p57 = por %p55, %p56
    %p58 = scmp.ne.s32.totalorder %s47, %s50
    %p59 = scmp.eq.s32.totalorder %s21, 15
    %p60 = por %p58, %p59
    %p61 = scmp.ne.s32.totalorder %s50, %s51
    %p62 = scmp.eq.s32.totalorder %s21, 0
    %p63 = por %p61, %p62
    %p64 = scmp.ne.s32.totalorder %s50, %s51
    %p65 = scmp.eq.s32.totalorder %s22, 15
    %p66 = por %p64, %p65
    %p68 = scmp.ne.s32.totalorder %s51, %s67
    %p69 = scmp.eq.s32.totalorder %s22, 0
    %p70 = por %p68, %p69
    %s71 = sadd.s32 %s24, 1
    %s72 = sadd.s32 %s38, 1
    %s73 = ssub.s32 %s23, %s42
    %s74 = ssub.s32 %s71, %s72
    %s75 = sor.u32 %s73, %s74
    %p76 = scmp.eq.s32.totalorder %s75, 0
    %s78 = sadd.s32 %s77, 1
    %s79 = scalar_select %p76, %s77, %s78
    %p82 = pneg %p76
    %p83 = scmp.eq.s32.totalorder %s16, 15
    %p84 = por %p82, %p83
    %p85 = scmp.ne.s32.totalorder %s77, %s80
    %p86 = scmp.eq.s32.totalorder %s16, 0
    %p87 = por %p85, %p86
    %p88 = scmp.ne.s32.totalorder %s77, %s80
    %p89 = scmp.eq.s32.totalorder %s21, 15
    %p90 = por %p88, %p89
    %p91 = scmp.ne.s32.totalorder %s80, %s81
    %p92 = scmp.eq.s32.totalorder %s21, 0
    %p93 = por %p91, %p92
    %p94 = scmp.ne.s32.totalorder %s80, %s81
    %p95 = scmp.eq.s32.totalorder %s22, 15
    %p96 = por %p94, %p95
    %p98 = scmp.ne.s32.totalorder %s81, %s97
    %p99 = scmp.eq.s32.totalorder %s22, 0
    %p100 = por %p98, %p99
    %s101 = sadd.s32 %s24, 2
    %s102 = sadd.s32 %s38, 2
    %s103 = ssub.s32 %s23, %s42
    %s104 = ssub.s32 %s101, %s102
    %s105 = sor.u32 %s103, %s104
    %p106 = scmp.eq.s32.totalorder %s105, 0
    %s108 = sadd.s32 %s107, 1
    %s109 = scalar_select %p106, %s107, %s108
    %p112 = pneg %p106
    %p113 = scmp.eq.s32.totalorder %s16, 15
    %p114 = por %p112, %p113
    %p115 = scmp.ne.s32.totalorder %s107, %s110
    %p116 = scmp.eq.s32.totalorder %s16, 0
    %p117 = por %p115, %p116
    %p118 = scmp.ne.s32.totalorder %s107, %s110
    %p119 = scmp.eq.s32.totalorder %s21, 15
    %p120 = por %p118, %p119
    %p121 = scmp.ne.s32.totalorder %s110, %s111
    %p122 = scmp.eq.s32.totalorder %s21, 0
    %p123 = por %p121, %p122
    %p124 = scmp.ne.s32.totalorder %s110, %s111
    %p125 = scmp.eq.s32.totalorder %s22, 15
    %p126 = por %p124, %p125
    %p128 = scmp.ne.s32.totalorder %s111, %s127
    %p129 = scmp.eq.s32.totalorder %s22, 0
    %p130 = por %p128, %p129
    %s131 = ssub.s32 %s25, %s34
    %p132 = scmp.eq.s32.totalorder %s131, 0
    %s134 = sadd.s32 %s133, 1
    %s135 = scalar_select %p132, %s133, %s134
    %p138 = pneg %p132
    %p139 = scmp.eq.s32.totalorder %s16, 15
    %p140 = por %p138, %p139
    %p141 = scmp.ne.s32.totalorder %s133, %s136
    %p142 = scmp.eq.s32.totalorder %s16, 0
    %p143 = por %p141, %p142
    %p144 = scmp.ne.s32.totalorder %s133, %s136
    %p145 = scmp.eq.s32.totalorder %s21, 15
    %p146 = por %p144, %p145
    %p147 = scmp.ne.s32.totalorder %s136, %s137
    %p148 = scmp.eq.s32.totalorder %s21, 0
    %p149 = por %p147, %p148
    %p150 = scmp.ne.s32.totalorder %s136, %s137
    %p151 = scmp.eq.s32.totalorder %s22, 15
    %p152 = por %p150, %p151
    %p154 = scmp.ne.s32.totalorder %s137, %s153
    %p155 = scmp.eq.s32.totalorder %s22, 0
    %p156 = por %p154, %p155
    %s157 = ssub.s32 %s23, %s42
    %s158 = ssub.s32 %s24, %s38
    %s159 = sor.u32 %s157, %s158
    %p160 = scmp.eq.s32.totalorder %s159, 0
    %s162 = sadd.s32 %s161, 1
    %s163 = scalar_select %p160, %s161, %s162
    %p166 = pneg %p160
    %p167 = scmp.eq.s32.totalorder %s16, 15
    %p168 = por %p166, %p167
    %p169 = scmp.ne.s32.totalorder %s161, %s164
    %p170 = scmp.eq.s32.totalorder %s16, 0
    %p171 = por %p169, %p170
    %p172 = scmp.ne.s32.totalorder %s161, %s164
    %p173 = scmp.eq.s32.totalorder %s21, 15
    %p174 = por %p172, %p173
    %p175 = scmp.ne.s32.totalorder %s164, %s165
    %p176 = scmp.eq.s32.totalorder %s21, 0
    %p177 = por %p175, %p176
    %p178 = scmp.ne.s32.totalorder %s164, %s165
    %p179 = scmp.eq.s32.totalorder %s22, 15
    %p180 = por %p178, %p179
    %p182 = scmp.ne.s32.totalorder %s165, %s181
    %p183 = scmp.eq.s32.totalorder %s22, 0
    %p184 = por %p182, %p183
    %s185 = sadd.s32 %s24, 1
    %s186 = sadd.s32 %s38, 1
    %s187 = ssub.s32 %s23, %s42
    %s188 = ssub.s32 %s185, %s186
    %s189 = sor.u32 %s187, %s188
    %p190 = scmp.eq.s32.totalorder %s189, 0
    %s192 = sadd.s32 %s191, 1
    %s193 = scalar_select %p190, %s191, %s192
    %p196 = pneg %p190
    %p197 = scmp.eq.s32.totalorder %s16, 15
    %p198 = por %p196, %p197
    %p199 = scmp.ne.s32.totalorder %s191, %s194
    %p200 = scmp.eq.s32.totalorder %s16, 0
    %p201 = por %p199, %p200
    %p202 = scmp.ne.s32.totalorder %s191, %s194
    %p203 = scmp.eq.s32.totalorder %s21, 15
    %p204 = por %p202, %p203
    %p205 = scmp.ne.s32.totalorder %s194, %s195
    %p206 = scmp.eq.s32.totalorder %s21, 0
    %p207 = por %p205, %p206
    %p208 = scmp.ne.s32.totalorder %s194, %s195
    %p209 = scmp.eq.s32.totalorder %s22, 15
    %p210 = por %p208, %p209
    %p212 = scmp.ne.s32.totalorder %s195, %s211
    %p213 = scmp.eq.s32.totalorder %s22, 0
    %p214 = por %p212, %p213
    %s215 = sadd.s32 %s24, 2
    %s216 = sadd.s32 %s38, 2
    %s217 = ssub.s32 %s23, %s42
    %s218 = ssub.s32 %s215, %s216
    %s219 = sor.u32 %s217, %s218
    %p220 = scmp.eq.s32.totalorder %s219, 0
    %s222 = sadd.s32 %s221, 1
    %s223 = scalar_select %p220, %s221, %s222
    %p226 = pneg %p220
    %p227 = scmp.eq.s32.totalorder %s16, 15
    %p228 = por %p226, %p227
    %p229 = scmp.ne.s32.totalorder %s221, %s224
    %p230 = scmp.eq.s32.totalorder %s16, 0
    %p231 = por %p229, %p230
    %p232 = scmp.ne.s32.totalorder %s221, %s224
    %p233 = scmp.eq.s32.totalorder %s21, 15
    %p234 = por %p232, %p233
    %p235 = scmp.ne.s32.totalorder %s224, %s225
    %p236 = scmp.eq.s32.totalorder %s21, 0
    %p237 = por %p235, %p236
    %p238 = scmp.ne.s32.totalorder %s224, %s225
    %p239 = scmp.eq.s32.totalorder %s22, 15
    %p240 = por %p238, %p239
    %p242 = scmp.ne.s32.totalorder %s225, %s241
    %p243 = scmp.eq.s32.totalorder %s22, 0
    %p244 = por %p242, %p243
    %s245 = ssub.s32 %s25, %s34
    %p246 = scmp.eq.s32.totalorder %s245, 0
    %s248 = sadd.s32 %s247, 1
    %s249 = scalar_select %p246, %s247, %s248
    %p252 = pneg %p246
    %p253 = scmp.eq.s32.totalorder %s16, 15
    %p254 = por %p252, %p253
    %p255 = scmp.ne.s32.totalorder %s247, %s250
    %p256 = scmp.eq.s32.totalorder %s16, 0
    %p257 = por %p255, %p256
    %p258 = scmp.ne.s32.totalorder %s247, %s250
    %p259 = scmp.eq.s32.totalorder %s21, 15
    %p260 = por %p258, %p259
    %p261 = scmp.ne.s32.totalorder %s250, %s251
    %p262 = scmp.eq.s32.totalorder %s21, 0
    %p263 = por %p261, %p262
    %p264 = scmp.ne.s32.totalorder %s250, %s251
    %p265 = scmp.eq.s32.totalorder %s22, 15
    %p266 = por %p264, %p265
    %p268 = scmp.ne.s32.totalorder %s251, %s267
    %p269 = scmp.eq.s32.totalorder %s22, 0
    %p270 = por %p268, %p269
    %s271 = ssub.s32 %s23, %s42
    %s272 = ssub.s32 %s24, %s38
    %s273 = sor.u32 %s271, %s272
    %s274 = ssub.s32 %s25, %s34
    %s275 = sor.u32 %s273, %s274
    %p276 = scmp.eq.s32.totalorder %s275, 0
    %s278 = sadd.s32 %s277, 1
    %s279 = scalar_select %p276, %s277, %s278
    %p282 = pneg %p276
    %p283 = scmp.eq.s32.totalorder %s16, 15
    %p284 = por %p282, %p283
    %p285 = scmp.ne.s32.totalorder %s277, %s280
    %p286 = scmp.eq.s32.totalorder %s16, 0
    %p287 = por %p285, %p286
    %p288 = scmp.ne.s32.totalorder %s277, %s280
    %p289 = scmp.eq.s32.totalorder %s21, 15
    %p290 = por %p288, %p289
    %p291 = scmp.ne.s32.totalorder %s280, %s281
    %p292 = scmp.eq.s32.totalorder %s21, 0
    %p293 = por %p291, %p292
    %p294 = scmp.ne.s32.totalorder %s280, %s281
    %p295 = scmp.eq.s32.totalorder %s22, 15
    %p296 = por %p294, %p295
    %p298 = scmp.ne.s32.totalorder %s281, %s297
    %p299 = scmp.eq.s32.totalorder %s22, 0
    %p300 = por %p298, %p299
    %s301 = ssub.s32 %s23, %s42
    %s302 = ssub.s32 %s24, %s38
    %s303 = sor.u32 %s301, %s302
    %s304 = ssub.s32 %s25, %s34
    %s305 = sor.u32 %s303, %s304
    %p306 = scmp.eq.s32.totalorder %s305, 0
    %s308 = sadd.s32 %s307, 1
    %s309 = scalar_select %p306, %s307, %s308
    %p312 = pneg %p306
    %p313 = scmp.eq.s32.totalorder %s16, 15
    %p314 = por %p312, %p313
    %p315 = scmp.ne.s32.totalorder %s307, %s310
    %p316 = scmp.eq.s32.totalorder %s16, 0
    %p317 = por %p315, %p316
    %p318 = scmp.ne.s32.totalorder %s307, %s310
    %p319 = scmp.eq.s32.totalorder %s21, 15
    %p320 = por %p318, %p319
    %p321 = scmp.ne.s32.totalorder %s310, %s311
    %p322 = scmp.eq.s32.totalorder %s21, 0
    %p323 = por %p321, %p322
    %p324 = scmp.ne.s32.totalorder %s310, %s311
    %p325 = scmp.eq.s32.totalorder %s22, 15
    %p326 = por %p324, %p325
    %p328 = scmp.ne.s32.totalorder %s311, %s327
    %p329 = scmp.eq.s32.totalorder %s22, 0
    %p330 = por %p328, %p329
    %p331 = scmp.le.s32.totalorder 1, %s16
    %p332 = scmp.lt.s32.totalorder %s16, 17
    %p333 = pnand %p331, %p332
    %p334 = pneg %p333
    // Predicated region
    $region9: #{expansion_block_forward.8} parent=5 // pred_check
      _
    $region10: #{expansion_block_forward.8} parent=5 // pred_check_branch
      %336 = sbr.rel (%p333) target = $region12
    $region11: #{expansion_block_forward.8} parent=5 // pred_region
      %s337 = ssub.s32 %s16, 1
      // Predicated region
      $region13: #{expansion_block_forward.8} parent=11 // pred_check
        %p338 = pneg %p149
      $region14: #{expansion_block_forward.8} parent=11 // pred_check_branch
        %340 = sbr.rel (%p338) target = $region16
      $region15: #{expansion_block_forward.8} parent=11 // pred_region
        %p341 = scmp.lt.s32.totalorder %s28, 0
        %s342 = scalar_select %p341, %s28, 0
        %s343 = smul.addr %s342, 4
        %s344 = scalar_lea.vmem %s3, %s343
      $region16: #{expansion_block_forward.8} parent=11 // pred_fallthru
        _
      // Predicated region
      $region17: #{expansion_block_forward.8} parent=11 // pred_check
        %p345 = pneg %p263
      $region18: #{expansion_block_forward.8} parent=11 // pred_check_branch
        %347 = sbr.rel (%p345) target = $region20
      $region19: #{expansion_block_forward.8} parent=11 // pred_region
        %p348 = scmp.lt.s32.totalorder %s28, 0
        %s349 = scalar_select %p348, %s28, 0
        %s350 = smul.addr %s349, 4
        %s351 = scalar_lea.vmem %s7, %s350
      $region20: #{expansion_block_forward.8} parent=11 // pred_fallthru
        _
    $region12: #{expansion_block_forward.8} parent=5 // pred_fallthru
      _
    %p352 = scmp.lt.s32.totalorder %s16, 16
    // Predicated region
    $region21: #{expansion_block_forward.8} parent=5 // pred_check
      %p353 = pneg %p352
    $region22: #{expansion_block_forward.8} parent=5 // pred_check_branch
      %355 = sbr.rel (%p353) target = $region24
    $region23: #{expansion_block_forward.8} parent=5 // pred_region
      // Predicated region
      $region25: #{expansion_block_forward.8} parent=23 // pred_check
        %p356 = pneg %p57
      $region26: #{expansion_block_forward.8} parent=23 // pred_check_branch
        %358 = sbr.rel (%p356) target = $region28
      $region27: #{expansion_block_forward.8} parent=23 // pred_region
        %p359 = scmp.lt.s32.totalorder %s23, 1
        %s360 = scalar_select %p359, %s23, 1
        %p361 = scmp.lt.s32.totalorder %s24, 9
        %s362 = scalar_select %p361, %s24, 9
        %s363 = smul.addr %s362, 2
        %s364 = smul.addr %s360, 20
        %s365 = sadd.s32 %s363, %s364
        %s366 = smul.addr %s365, 4
        %s367 = scalar_lea.vmem %s0, %s366
      $region28: #{expansion_block_forward.8} parent=23 // pred_fallthru
        _
      // Predicated region
      $region29: #{expansion_block_forward.8} parent=23 // pred_check
        %p368 = pneg %p87
      $region30: #{expansion_block_forward.8} parent=23 // pred_check_branch
        %370 = sbr.rel (%p368) target = $region32
      $region31: #{expansion_block_forward.8} parent=23 // pred_region
        %s371 = sadd.s32 %s24, 1
        %p372 = scmp.lt.s32.totalorder %s23, 1
        %s373 = scalar_select %p372, %s23, 1
        %p374 = scmp.lt.s32.totalorder %s371, 9
        %s375 = scalar_select %p374, %s371, 9
        %s376 = smul.addr %s375, 2
        %s377 = smul.addr %s373, 20
        %s378 = sadd.s32 %s376, %s377
        %s379 = smul.addr %s378, 4
        %s380 = scalar_lea.vmem %s1, %s379
        %s381 = sadd.s32 %s24, 1
      $region32: #{expansion_block_forward.8} parent=23 // pred_fallthru
        _
      // Predicated region
      $region33: #{expansion_block_forward.8} parent=23 // pred_check
        %p382 = pneg %p117
      $region34: #{expansion_block_forward.8} parent=23 // pred_check_branch
        %384 = sbr.rel (%p382) target = $region36
      $region35: #{expansion_block_forward.8} parent=23 // pred_region
        %s385 = sadd.s32 %s24, 2
        %p386 = scmp.lt.s32.totalorder %s23, 1
        %s387 = scalar_select %p386, %s23, 1
        %p388 = scmp.lt.s32.totalorder %s385, 9
        %s389 = scalar_select %p388, %s385, 9
        %s390 = smul.addr %s389, 2
        %s391 = smul.addr %s387, 20
        %s392 = sadd.s32 %s390, %s391
        %s393 = smul.addr %s392, 4
        %s394 = scalar_lea.vmem %s2, %s393
        %s395 = sadd.s32 %s24, 2
      $region36: #{expansion_block_forward.8} parent=23 // pred_fallthru
        _
      // Predicated region
      $region37: #{expansion_block_forward.8} parent=23 // pred_check
        %p396 = pneg %p171
      $region38: #{expansion_block_forward.8} parent=23 // pred_check_branch
        %398 = sbr.rel (%p396) target = $region40
      $region39: #{expansion_block_forward.8} parent=23 // pred_region
        %p399 = scmp.lt.s32.totalorder %s23, 1
        %s400 = scalar_select %p399, %s23, 1
        %p401 = scmp.lt.s32.totalorder %s24, 9
        %s402 = scalar_select %p401, %s24, 9
        %s403 = smul.addr %s402, 2
        %s404 = smul.addr %s400, 20
        %s405 = sadd.s32 %s403, %s404
        %s406 = smul.addr %s405, 4
        %s407 = scalar_lea.vmem %s4, %s406
      $region40: #{expansion_block_forward.8} parent=23 // pred_fallthru
        _
      // Predicated region
      $region41: #{expansion_block_forward.8} parent=23 // pred_check
        %p408 = pneg %p201
      $region42: #{expansion_block_forward.8} parent=23 // pred_check_branch
        %410 = sbr.rel (%p408) target = $region44
      $region43: #{expansion_block_forward.8} parent=23 // pred_region
        %s411 = sadd.s32 %s24, 1
        %p412 = scmp.lt.s32.totalorder %s23, 1
        %s413 = scalar_select %p412, %s23, 1
        %p414 = scmp.lt.s32.totalorder %s411, 9
        %s415 = scalar_select %p414, %s411, 9
        %s416 = smul.addr %s415, 2
        %s417 = smul.addr %s413, 20
        %s418 = sadd.s32 %s416, %s417
        %s419 = smul.addr %s418, 4
        %s420 = scalar_lea.vmem %s5, %s419
        %s421 = sadd.s32 %s24, 1
      $region44: #{expansion_block_forward.8} parent=23 // pred_fallthru
        _
      // Predicated region
      $region45: #{expansion_block_forward.8} parent=23 // pred_check
        %p422 = pneg %p231
      $region46: #{expansion_block_forward.8} parent=23 // pred_check_branch
        %424 = sbr.rel (%p422) target = $region48
      $region47: #{expansion_block_forward.8} parent=23 // pred_region
        %s425 = sadd.s32 %s24, 2
        %p426 = scmp.lt.s32.totalorder %s23, 1
        %s427 = scalar_select %p426, %s23, 1
        %p428 = scmp.lt.s32.totalorder %s425, 9
        %s429 = scalar_select %p428, %s425, 9
        %s430 = smul.addr %s429, 2
        %s431 = smul.addr %s427, 20
        %s432 = sadd.s32 %s430, %s431
        %s433 = smul.addr %s432, 4
        %s434 = scalar_lea.vmem %s6, %s433
        %s435 = sadd.s32 %s24, 2
      $region48: #{expansion_block_forward.8} parent=23 // pred_fallthru
        _
    $region24: #{expansion_block_forward.8} parent=5 // pred_fallthru
      _
    %p436 = scmp.le.s32.totalorder 1, %s16
    %p437 = scmp.lt.s32.totalorder %s16, 17
    %p438 = pnand %p436, %p437
    %p439 = pneg %p438
    // Predicated region
    $region49: #{expansion_block_forward.8} parent=5 // pred_check
      _
    $region50: #{expansion_block_forward.8} parent=5 // pred_check_branch
      %441 = sbr.rel (%p438) target = $region52
    $region51: #{expansion_block_forward.8} parent=5 // pred_region
      %s442 = ssub.s32 %s16, 1
      %p443 = scmp.lt.s32.totalorder %s26, 1
      %s444 = scalar_select %p443, %s26, 1
      %p445 = scmp.lt.s32.totalorder %s27, 9
      %s446 = scalar_select %p445, %s27, 9
      %s447 = smul.addr %s446, 2
      %s448 = smul.addr %s444, 20
      %s449 = sadd.s32 %s447, %s448
      %s450 = smul.addr %s449, 4
      %s451 = scalar_lea.vmem %s0, %s450
      %p452 = pneg %p63
      %p453 = pneg %p60
      %s454 = sadd.s32 %s27, 1
      %p455 = scmp.lt.s32.totalorder %s26, 1
      %s456 = scalar_select %p455, %s26, 1
      %p457 = scmp.lt.s32.totalorder %s454, 9
      %s458 = scalar_select %p457, %s454, 9
      %s459 = smul.addr %s458, 2
      %s460 = smul.addr %s456, 20
      %s461 = sadd.s32 %s459, %s460
      %s462 = smul.addr %s461, 4
      %s463 = scalar_lea.vmem %s1, %s462
      %p464 = pneg %p93
      %p465 = pneg %p90
      %s466 = sadd.s32 %s27, 2
      %p467 = scmp.lt.s32.totalorder %s26, 1
      %s468 = scalar_select %p467, %s26, 1
      %p469 = scmp.lt.s32.totalorder %s466, 9
      %s470 = scalar_select %p469, %s466, 9
      %s471 = smul.addr %s470, 2
      %s472 = smul.addr %s468, 20
      %s473 = sadd.s32 %s471, %s472
      %s474 = smul.addr %s473, 4
      %s475 = scalar_lea.vmem %s2, %s474
      %p476 = pneg %p123
      %p477 = pneg %p120
      %p478 = scmp.lt.s32.totalorder %s28, 0
      %s479 = scalar_select %p478, %s28, 0
      %s480 = smul.addr %s479, 4
      %s481 = scalar_lea.vmem %s3, %s480
      %p482 = pneg %p149
      %p483 = pneg %p146
      %p484 = scmp.lt.s32.totalorder %s26, 1
      %s485 = scalar_select %p484, %s26, 1
      %p486 = scmp.lt.s32.totalorder %s27, 9
      %s487 = scalar_select %p486, %s27, 9
      %s488 = smul.addr %s487, 2
      %s489 = smul.addr %s485, 20
      %s490 = sadd.s32 %s488, %s489
      %s491 = smul.addr %s490, 4
      %s492 = scalar_lea.vmem %s4, %s491
      %p493 = pneg %p177
      %p494 = pneg %p174
      %s495 = sadd.s32 %s27, 1
      %p496 = scmp.lt.s32.totalorder %s26, 1
      %s497 = scalar_select %p496, %s26, 1
      %p498 = scmp.lt.s32.totalorder %s495, 9
      %s499 = scalar_select %p498, %s495, 9
      %s500 = smul.addr %s499, 2
      %s501 = smul.addr %s497, 20
      %s502 = sadd.s32 %s500, %s501
      %s503 = smul.addr %s502, 4
      %s504 = scalar_lea.vmem %s5, %s503
      %p505 = pneg %p207
      %p506 = pneg %p204
      %s507 = sadd.s32 %s27, 2
      %p508 = scmp.lt.s32.totalorder %s26, 1
      %s509 = scalar_select %p508, %s26, 1
      %p510 = scmp.lt.s32.totalorder %s507, 9
      %s511 = scalar_select %p510, %s507, 9
      %s512 = smul.addr %s511, 2
      %s513 = smul.addr %s509, 20
      %s514 = sadd.s32 %s512, %s513
      %s515 = smul.addr %s514, 4
      %s516 = scalar_lea.vmem %s6, %s515
      %p517 = pneg %p237
      %p518 = pneg %p234
      %p519 = scmp.lt.s32.totalorder %s28, 0
      %s520 = scalar_select %p519, %s28, 0
      %s521 = smul.addr %s520, 4
      %s522 = scalar_lea.vmem %s7, %s521
      %p523 = pneg %p263
      %p524 = pneg %p260
      %p525 = pneg %p293
      %p526 = pneg %p290
      %p527 = scmp.lt.s32.totalorder %s26, 1
      %s528 = scalar_select %p527, %s26, 1
      %p529 = scmp.lt.s32.totalorder %s27, 7
      %s530 = scalar_select %p529, %s27, 7
      %p531 = scmp.lt.s32.totalorder %s28, 0
      %s532 = scalar_select %p531, %s28, 0
      %s533 = sadd.s32 %s532, %s530
      %s534 = smul.addr %s528, 8
      %s535 = sadd.s32 %s533, %s534
      %s536 = smul.addr %s535, 4
      %s537 = scalar_lea.vmem %s8, %s536
      %p538 = pneg %p323
      %p539 = pneg %p320
      %p540 = scmp.lt.s32.totalorder %s26, 1
      %s541 = scalar_select %p540, %s26, 1
      %p542 = scmp.lt.s32.totalorder %s27, 7
      %s543 = scalar_select %p542, %s27, 7
      %p544 = scmp.lt.s32.totalorder %s28, 0
      %s545 = scalar_select %p544, %s28, 0
      %s546 = sadd.s32 %s545, %s543
      %s547 = smul.addr %s541, 8
      %s548 = sadd.s32 %s546, %s547
      %s549 = smul.addr %s548, 2
      %s550 = scalar_lea.vmem %s9, %s549
      %p551 = scmp.lt.s32.totalorder %s26, 1
      %s552 = scalar_select %p551, %s26, 1
      %p553 = scmp.lt.s32.totalorder %s27, 9
      %s554 = scalar_select %p553, %s27, 9
      %s555 = smul.addr %s554, 2
      %s556 = smul.addr %s552, 20
      %s557 = sadd.s32 %s555, %s556
      %s558 = smul.addr %s557, 4
      %s559 = scalar_lea.vmem %s0, %s558
      %s560 = sadd.s32 %s27, 1
      %p561 = scmp.lt.s32.totalorder %s26, 1
      %s562 = scalar_select %p561, %s26, 1
      %p563 = scmp.lt.s32.totalorder %s560, 9
      %s564 = scalar_select %p563, %s560, 9
      %s565 = smul.addr %s564, 2
      %s566 = smul.addr %s562, 20
      %s567 = sadd.s32 %s565, %s566
      %s568 = smul.addr %s567, 4
      %s569 = scalar_lea.vmem %s1, %s568
      %s570 = sadd.s32 %s27, 1
      %s571 = sadd.s32 %s27, 2
      %p572 = scmp.lt.s32.totalorder %s26, 1
      %s573 = scalar_select %p572, %s26, 1
      %p574 = scmp.lt.s32.totalorder %s571, 9
      %s575 = scalar_select %p574, %s571, 9
      %s576 = smul.addr %s575, 2
      %s577 = smul.addr %s573, 20
      %s578 = sadd.s32 %s576, %s577
      %s579 = smul.addr %s578, 4
      %s580 = scalar_lea.vmem %s2, %s579
      %s581 = sadd.s32 %s27, 2
      %p582 = scmp.lt.s32.totalorder %s28, 0
      %s583 = scalar_select %p582, %s28, 0
      %s584 = smul.addr %s583, 4
      %s585 = scalar_lea.vmem %s3, %s584
      %p586 = scmp.lt.s32.totalorder %s26, 1
      %s587 = scalar_select %p586, %s26, 1
      %p588 = scmp.lt.s32.totalorder %s27, 9
      %s589 = scalar_select %p588, %s27, 9
      %s590 = smul.addr %s589, 2
      %s591 = smul.addr %s587, 20
      %s592 = sadd.s32 %s590, %s591
      %s593 = smul.addr %s592, 4
      %s594 = scalar_lea.vmem %s4, %s593
      %s595 = sadd.s32 %s27, 1
      %p596 = scmp.lt.s32.totalorder %s26, 1
      %s597 = scalar_select %p596, %s26, 1
      %p598 = scmp.lt.s32.totalorder %s595, 9
      %s599 = scalar_select %p598, %s595, 9
      %s600 = smul.addr %s599, 2
      %s601 = smul.addr %s597, 20
      %s602 = sadd.s32 %s600, %s601
      %s603 = smul.addr %s602, 4
      %s604 = scalar_lea.vmem %s5, %s603
      %s605 = sadd.s32 %s27, 1
      %s606 = sadd.s32 %s27, 2
      %p607 = scmp.lt.s32.totalorder %s26, 1
      %s608 = scalar_select %p607, %s26, 1
      %p609 = scmp.lt.s32.totalorder %s606, 9
      %s610 = scalar_select %p609, %s606, 9
      %s611 = smul.addr %s610, 2
      %s612 = smul.addr %s608, 20
      %s613 = sadd.s32 %s611, %s612
      %s614 = smul.addr %s613, 4
      %s615 = scalar_lea.vmem %s6, %s614
      %s616 = sadd.s32 %s27, 2
      %p617 = scmp.lt.s32.totalorder %s28, 0
      %s618 = scalar_select %p617, %s28, 0
      %s619 = smul.addr %s618, 4
      %s620 = scalar_lea.vmem %s7, %s619
      %p621 = scmp.lt.s32.totalorder %s26, 1
      %s622 = scalar_select %p621, %s26, 1
      %p623 = scmp.lt.s32.totalorder %s27, 7
      %s624 = scalar_select %p623, %s27, 7
      %p625 = scmp.lt.s32.totalorder %s28, 0
      %s626 = scalar_select %p625, %s28, 0
      %s627 = sadd.s32 %s626, %s624
      %s628 = smul.addr %s622, 8
      %s629 = sadd.s32 %s627, %s628
      %s630 = smul.addr %s629, 4
      %s631 = scalar_lea.vmem %s8, %s630
      %p632 = scmp.lt.s32.totalorder %s26, 1
      %s633 = scalar_select %p632, %s26, 1
      %p634 = scmp.lt.s32.totalorder %s27, 7
      %s635 = scalar_select %p634, %s27, 7
      %p636 = scmp.lt.s32.totalorder %s28, 0
      %s637 = scalar_select %p636, %s28, 0
      %s638 = sadd.s32 %s637, %s635
      %s639 = smul.addr %s633, 8
      %s640 = sadd.s32 %s638, %s639
      %s641 = smul.addr %s640, 2
      %s642 = scalar_lea.vmem %s9, %s641
      %v644 = vld [vmem:[%s559] sm:$0xf]
      %v645 = vld [vmem:[%s559 + $0x4] sm:$0x1]
      %v646 = vld [vmem:[%s585] sm:$0xf]
      %v647 = vld [vmem:[%s585 + $0x4] sm:$0xf]
      %v648 = vld [vmem:[%s585 + $0x8] sm:$0xf]
      %v649 = vld [vmem:[%s585 + $0xc] sm:$0xf]
      %v650 = vld [vmem:[%s585 + $0x10] sm:$0xf]
      %s651 = scalar_lea.vmem %s585, 20
      %v652 = vld [vmem:[%s651] sm:$0xf]
      %v653 = vld [vmem:[%s651 + $0x4] sm:$0xf]
      %v654 = vld [vmem:[%s651 + $0x8] sm:$0xf]
      %v655 = vld [vmem:[%s651 + $0xc] sm:$0xf]
      %v656 = vld [vmem:[%s651 + $0x10] sm:$0xf]
      %v659 = vunpack.c.l.b16 %v644
      %v660 = vunpack.c.l.b16 %v645
      %v661 = vpack.c.b16 %v660, %v659
      %v663 = vshrl.u32 %v661, 16
      %v665 = vshll.u32 %v661, 16
      %v667 = vrot.slane %v665, 1
      %v668 = vor.u32 %v663, %v667
      %v674 = vunpack.c.l.b16 %v652
      %v675 = vunpack.c.l.b16 %v653
      %v676 = vunpack.c.l.b16 %v654
      %v677 = vunpack.c.l.b16 %v655
      %v678 = vunpack.c.l.b16 %v656
      %v679 = vpack.c.b16 %v675, %v674
      %v680 = vpack.c.b16 %v677, %v676
      %v681 = vpack.c.b16 %v678, %v678
      %vm684 = vcmask 326656
      %v686 = vsel %vm684, %v668, 0
      %vm688 = vcmask 1043456
      %v690 = vsel %vm688, %v681, 0
      %692 = vmatprep.subr.bf16.mxu0 0
      %693 = vmatpush1.bf16.msra.mxu0 0
      %694 = vmatprep.subr.bf16.mxu0 0
      %695 = vmatpush1.bf16.msra.mxu0 0
      %696 = vmatprep.subr.bf16.mxu0 0
      %697 = vmatpush1.bf16.msra.mxu0 0
      %698 = vmatprep.subr.bf16.mxu0 0
      %699 = vmatpush1.bf16.msra.mxu0 0
      %700 = vmatprep.subr.bf16.mxu0 0
      %701 = vmatpush1.bf16.msra.mxu0 0
      %702 = vmatprep.subr.bf16.mxu0 0
      %703 = vmatpush1.bf16.msra.mxu0 %v690
      %704 = vmatprep.subr.bf16.mxu0 0
      %705 = vmatpush1.bf16.msra.mxu0 %v680
      %706 = vmatprep.subr.bf16.mxu0 0
      %707 = vmatpush1.bf16.msra.mxu0 %v679
      %708 = vmatprep.subr.bf16.mxu0 0
      %709 = vmatpush2.bf16.msra.mxu0 0
      %710 = vmatprep.subr.bf16.mxu0 0
      %711 = vmatpush2.bf16.msra.mxu0 0
      %712 = vmatprep.subr.bf16.mxu0 0
      %713 = vmatpush2.bf16.msra.mxu0 0
      %714 = vmatprep.subr.bf16.mxu0 0
      %715 = vmatpush2.bf16.msra.mxu0 0
      %716 = vmatprep.subr.bf16.mxu0 0
      %717 = vmatpush2.bf16.msra.mxu0 0
      %718 = vmatprep.subr.bf16.mxu0 0
      %719 = vmatpush2.bf16.msra.mxu0 0
      %720 = vmatprep.subr.bf16.mxu0 0
      %721 = vmatpush2.bf16.msra.mxu0 0
      %722 = vmatprep.subr.bf16.mxu0 0
      %723 = vmatpush2.bf16.msra.mxu0 0
      %724 = vmatprep.mubr.bf16.mxu0 0
      %725 = vmatmul.mubr.bf16.gmra.mxu0 %v686
      %v726 = vpop.f32.mrf.mxu0
      %v727 = vadd.f32 0.0, %v726
      %v728 = vpop.f32.mrf.mxu0
      %v729 = vpop.f32.mrf.mxu0
      %v730 = vpop.f32.mrf.mxu0
      %731 = vdwg.mxu0
      %v737 = vunpack.c.l.b16 %v646
      %v738 = vunpack.c.l.b16 %v647
      %v739 = vunpack.c.l.b16 %v648
      %v740 = vunpack.c.l.b16 %v649
      %v741 = vunpack.c.l.b16 %v650
      %v742 = vpack.c.b16 %v738, %v737
      %v743 = vpack.c.b16 %v740, %v739
      %v744 = vpack.c.b16 %v741, %v741
      %v748 = vsel %vm684, %v644, 0
      %v751 = vsel %vm688, %v744, 0
      %753 = vmatprep.subr.bf16.mxu0 0
      %754 = vmatpush1.bf16.msra.mxu0 0
      %755 = vmatprep.subr.bf16.mxu0 0
      %756 = vmatpush1.bf16.msra.mxu0 0
      %757 = vmatprep.subr.bf16.mxu0 0
      %758 = vmatpush1.bf16.msra.mxu0 0
      %759 = vmatprep.subr.bf16.mxu0 0
      %760 = vmatpush1.bf16.msra.mxu0 0
      %761 = vmatprep.subr.bf16.mxu0 0
      %762 = vmatpush1.bf16.msra.mxu0 0
      %763 = vmatprep.subr.bf16.mxu0 0
      %764 = vmatpush1.bf16.msra.mxu0 %v751
      %765 = vmatprep.subr.bf16.mxu0 0
      %766 = vmatpush1.bf16.msra.mxu0 %v743
      %767 = vmatprep.subr.bf16.mxu0 0
      %768 = vmatpush1.bf16.msra.mxu0 %v742
      %769 = vmatprep.subr.bf16.mxu0 0
      %770 = vmatpush2.bf16.msra.mxu0 0
      %771 = vmatprep.subr.bf16.mxu0 0
      %772 = vmatpush2.bf16.msra.mxu0 0
      %773 = vmatprep.subr.bf16.mxu0 0
      %774 = vmatpush2.bf16.msra.mxu0 0
      %775 = vmatprep.subr.bf16.mxu0 0
      %776 = vmatpush2.bf16.msra.mxu0 0
      %777 = vmatprep.subr.bf16.mxu0 0
      %778 = vmatpush2.bf16.msra.mxu0 0
      %779 = vmatprep.subr.bf16.mxu0 0
      %780 = vmatpush2.bf16.msra.mxu0 0
      %781 = vmatprep.subr.bf16.mxu0 0
      %782 = vmatpush2.bf16.msra.mxu0 0
      %783 = vmatprep.subr.bf16.mxu0 0
      %784 = vmatpush2.bf16.msra.mxu0 0
      %785 = vmatprep.mubr.bf16.mxu0 0
      %786 = vmatmul.mubr.bf16.gmra.mxu0 %v748
      %v787 = vpop.f32.mrf.mxu0
      %v788 = vadd.f32 %v727, %v787
      %v789 = vpop.f32.mrf.mxu0
      %v790 = vpop.f32.mrf.mxu0
      %v791 = vpop.f32.mrf.mxu0
      %792 = vdwg.mxu0
      %s793 = scalar_lea.vmem %s585, 40
      %v794 = vld [vmem:[%s793] sm:$0xf]
      %v795 = vld [vmem:[%s793 + $0x4] sm:$0xf]
      %v796 = vld [vmem:[%s793 + $0x8] sm:$0xf]
      %v797 = vld [vmem:[%s793 + $0xc] sm:$0xf]
      %v798 = vld [vmem:[%s793 + $0x10] sm:$0xf]
      %v799 = vrot.slane %v661, 1
      %v805 = vunpack.c.l.b16 %v794
      %v806 = vunpack.c.l.b16 %v795
      %v807 = vunpack.c.l.b16 %v796
      %v808 = vunpack.c.l.b16 %v797
      %v809 = vunpack.c.l.b16 %v798
      %v810 = vpack.c.b16 %v806, %v805
      %v811 = vpack.c.b16 %v808, %v807
      %v812 = vpack.c.b16 %v809, %v809
      %v816 = vsel %vm684, %v799, 0
      %v819 = vsel %vm688, %v812, 0
      %821 = vmatprep.subr.bf16.mxu0 0
      %822 = vmatpush1.bf16.msra.mxu0 0
      %823 = vmatprep.subr.bf16.mxu0 0
      %824 = vmatpush1.bf16.msra.mxu0 0
      %825 = vmatprep.subr.bf16.mxu0 0
      %826 = vmatpush1.bf16.msra.mxu0 0
      %827 = vmatprep.subr.bf16.mxu0 0
      %828 = vmatpush1.bf16.msra.mxu0 0
      %829 = vmatprep.subr.bf16.mxu0 0
      %830 = vmatpush1.bf16.msra.mxu0 0
      %831 = vmatprep.subr.bf16.mxu0 0
      %832 = vmatpush1.bf16.msra.mxu0 %v819
      %833 = vmatprep.subr.bf16.mxu0 0
      %834 = vmatpush1.bf16.msra.mxu0 %v811
      %835 = vmatprep.subr.bf16.mxu0 0
      %836 = vmatpush1.bf16.msra.mxu0 %v810
      %837 = vmatprep.subr.bf16.mxu0 0
      %838 = vmatpush2.bf16.msra.mxu0 0
      %839 = vmatprep.subr.bf16.mxu0 0
      %840 = vmatpush2.bf16.msra.mxu0 0
      %841 = vmatprep.subr.bf16.mxu0 0
      %842 = vmatpush2.bf16.msra.mxu0 0
      %843 = vmatprep.subr.bf16.mxu0 0
      %844 = vmatpush2.bf16.msra.mxu0 0
      %845 = vmatprep.subr.bf16.mxu0 0
      %846 = vmatpush2.bf16.msra.mxu0 0
      %847 = vmatprep.subr.bf16.mxu0 0
      %848 = vmatpush2.bf16.msra.mxu0 0
      %849 = vmatprep.subr.bf16.mxu0 0
      %850 = vmatpush2.bf16.msra.mxu0 0
      %851 = vmatprep.subr.bf16.mxu0 0
      %852 = vmatpush2.bf16.msra.mxu0 0
      %853 = vmatprep.mubr.bf16.mxu0 0
      %854 = vmatmul.mubr.bf16.gmra.mxu0 %v816
      %v855 = vpop.f32.mrf.mxu0
      %v856 = vadd.f32 0.0, %v855
      %v857 = vpop.f32.mrf.mxu0
      %v858 = vpop.f32.mrf.mxu0
      %v859 = vpop.f32.mrf.mxu0
      %860 = vdwg.mxu0
      %v861 = vadd.f32 %v788, %v856
      %v862 = vld [vmem:[%s569] sm:$0xf]
      %v863 = vld [vmem:[%s569 + $0x4] sm:$0x1]
      %s864 = scalar_lea.vmem %s585, 60
      %v865 = vld [vmem:[%s864] sm:$0xf]
      %v866 = vld [vmem:[%s864 + $0x4] sm:$0xf]
      %v867 = vld [vmem:[%s864 + $0x8] sm:$0xf]
      %v868 = vld [vmem:[%s864 + $0xc] sm:$0xf]
      %v869 = vld [vmem:[%s864 + $0x10] sm:$0xf]
      %v875 = vunpack.c.l.b16 %v865
      %v876 = vunpack.c.l.b16 %v866
      %v877 = vunpack.c.l.b16 %v867
      %v878 = vunpack.c.l.b16 %v868
      %v879 = vunpack.c.l.b16 %v869
      %v880 = vpack.c.b16 %v876, %v875
      %v881 = vpack.c.b16 %v878, %v877
      %v882 = vpack.c.b16 %v879, %v879
      %v886 = vsel %vm684, %v862, 0
      %v889 = vsel %vm688, %v882, 0
      %891 = vmatprep.subr.bf16.mxu0 0
      %892 = vmatpush1.bf16.msra.mxu0 0
      %893 = vmatprep.subr.bf16.mxu0 0
      %894 = vmatpush1.bf16.msra.mxu0 0
      %895 = vmatprep.subr.bf16.mxu0 0
      %896 = vmatpush1.bf16.msra.mxu0 0
      %897 = vmatprep.subr.bf16.mxu0 0
      %898 = vmatpush1.bf16.msra.mxu0 0
      %899 = vmatprep.subr.bf16.mxu0 0
      %900 = vmatpush1.bf16.msra.mxu0 0
      %901 = vmatprep.subr.bf16.mxu0 0
      %902 = vmatpush1.bf16.msra.mxu0 %v889
      %903 = vmatprep.subr.bf16.mxu0 0
      %904 = vmatpush1.bf16.msra.mxu0 %v881
      %905 = vmatprep.subr.bf16.mxu0 0
      %906 = vmatpush1.bf16.msra.mxu0 %v880
      %907 = vmatprep.subr.bf16.mxu0 0
      %908 = vmatpush2.bf16.msra.mxu0 0
      %909 = vmatprep.subr.bf16.mxu0 0
      %910 = vmatpush2.bf16.msra.mxu0 0
      %911 = vmatprep.subr.bf16.mxu0 0
      %912 = vmatpush2.bf16.msra.mxu0 0
      %913 = vmatprep.subr.bf16.mxu0 0
      %914 = vmatpush2.bf16.msra.mxu0 0
      %915 = vmatprep.subr.bf16.mxu0 0
      %916 = vmatpush2.bf16.msra.mxu0 0
      %917 = vmatprep.subr.bf16.mxu0 0
      %918 = vmatpush2.bf16.msra.mxu0 0
      %919 = vmatprep.subr.bf16.mxu0 0
      %920 = vmatpush2.bf16.msra.mxu0 0
      %921 = vmatprep.subr.bf16.mxu0 0
      %922 = vmatpush2.bf16.msra.mxu0 0
      %923 = vmatprep.mubr.bf16.mxu0 0
      %924 = vmatmul.mubr.bf16.gmra.mxu0 %v886
      %v925 = vpop.f32.mrf.mxu0
      %v926 = vadd.f32 0.0, %v925
      %v927 = vpop.f32.mrf.mxu0
      %v928 = vpop.f32.mrf.mxu0
      %v929 = vpop.f32.mrf.mxu0
      %930 = vdwg.mxu0
      %v931 = vadd.f32 %v861, %v926
      %s932 = scalar_lea.vmem %s585, 80
      %v933 = vld [vmem:[%s932] sm:$0xf]
      %v934 = vld [vmem:[%s932 + $0x4] sm:$0xf]
      %v935 = vld [vmem:[%s932 + $0x8] sm:$0xf]
      %v936 = vld [vmem:[%s932 + $0xc] sm:$0xf]
      %v937 = vld [vmem:[%s932 + $0x10] sm:$0xf]
      %v940 = vunpack.c.l.b16 %v862
      %v941 = vunpack.c.l.b16 %v863
      %v942 = vpack.c.b16 %v941, %v940
      %v944 = vshrl.u32 %v942, 16
      %v946 = vshll.u32 %v942, 16
      %v948 = vrot.slane %v946, 1
      %v949 = vor.u32 %v944, %v948
      %v955 = vunpack.c.l.b16 %v933
      %v956 = vunpack.c.l.b16 %v934
      %v957 = vunpack.c.l.b16 %v935
      %v958 = vunpack.c.l.b16 %v936
      %v959 = vunpack.c.l.b16 %v937
      %v960 = vpack.c.b16 %v956, %v955
      %v961 = vpack.c.b16 %v958, %v957
      %v962 = vpack.c.b16 %v959, %v959
      %v966 = vsel %vm684, %v949, 0
      %v969 = vsel %vm688, %v962, 0
      %971 = vmatprep.subr.bf16.mxu0 0
      %972 = vmatpush1.bf16.msra.mxu0 0
      %973 = vmatprep.subr.bf16.mxu0 0
      %974 = vmatpush1.bf16.msra.mxu0 0
      %975 = vmatprep.subr.bf16.mxu0 0
      %976 = vmatpush1.bf16.msra.mxu0 0
      %977 = vmatprep.subr.bf16.mxu0 0
      %978 = vmatpush1.bf16.msra.mxu0 0
      %979 = vmatprep.subr.bf16.mxu0 0
      %980 = vmatpush1.bf16.msra.mxu0 0
      %981 = vmatprep.subr.bf16.mxu0 0
      %982 = vmatpush1.bf16.msra.mxu0 %v969
      %983 = vmatprep.subr.bf16.mxu0 0
      %984 = vmatpush1.bf16.msra.mxu0 %v961
      %985 = vmatprep.subr.bf16.mxu0 0
      %986 = vmatpush1.bf16.msra.mxu0 %v960
      %987 = vmatprep.subr.bf16.mxu0 0
      %988 = vmatpush2.bf16.msra.mxu0 0
      %989 = vmatprep.subr.bf16.mxu0 0
      %990 = vmatpush2.bf16.msra.mxu0 0
      %991 = vmatprep.subr.bf16.mxu0 0
      %992 = vmatpush2.bf16.msra.mxu0 0
      %993 = vmatprep.subr.bf16.mxu0 0
      %994 = vmatpush2.bf16.msra.mxu0 0
      %995 = vmatprep.subr.bf16.mxu0 0
      %996 = vmatpush2.bf16.msra.mxu0 0
      %997 = vmatprep.subr.bf16.mxu0 0
      %998 = vmatpush2.bf16.msra.mxu0 0
      %999 = vmatprep.subr.bf16.mxu0 0
      %1000 = vmatpush2.bf16.msra.mxu0 0
      %1001 = vmatprep.subr.bf16.mxu0 0
      %1002 = vmatpush2.bf16.msra.mxu0 0
      %1003 = vmatprep.mubr.bf16.mxu0 0
      %1004 = vmatmul.mubr.bf16.gmra.mxu0 %v966
      %v1005 = vpop.f32.mrf.mxu0
      %v1006 = vadd.f32 0.0, %v1005
      %v1007 = vpop.f32.mrf.mxu0
      %v1008 = vpop.f32.mrf.mxu0
      %v1009 = vpop.f32.mrf.mxu0
      %1010 = vdwg.mxu0
      %v1011 = vadd.f32 %v931, %v1006
      %s1012 = scalar_lea.vmem %s585, 100
      %v1013 = vld [vmem:[%s1012] sm:$0xf]
      %v1014 = vld [vmem:[%s1012 + $0x4] sm:$0xf]
      %v1015 = vld [vmem:[%s1012 + $0x8] sm:$0xf]
      %v1016 = vld [vmem:[%s1012 + $0xc] sm:$0xf]
      %v1017 = vld [vmem:[%s1012 + $0x10] sm:$0xf]
      %v1018 = vrot.slane %v942, 1
      %v1024 = vunpack.c.l.b16 %v1013
      %v1025 = vunpack.c.l.b16 %v1014
      %v1026 = vunpack.c.l.b16 %v1015
      %v1027 = vunpack.c.l.b16 %v1016
      %v1028 = vunpack.c.l.b16 %v1017
      %v1029 = vpack.c.b16 %v1025, %v1024
      %v1030 = vpack.c.b16 %v1027, %v1026
      %v1031 = vpack.c.b16 %v1028, %v1028
      %v1035 = vsel %vm684, %v1018, 0
      %v1038 = vsel %vm688, %v1031, 0
      %1040 = vmatprep.subr.bf16.mxu0 0
      %1041 = vmatpush1.bf16.msra.mxu0 0
      %1042 = vmatprep.subr.bf16.mxu0 0
      %1043 = vmatpush1.bf16.msra.mxu0 0
      %1044 = vmatprep.subr.bf16.mxu0 0
      %1045 = vmatpush1.bf16.msra.mxu0 0
      %1046 = vmatprep.subr.bf16.mxu0 0
      %1047 = vmatpush1.bf16.msra.mxu0 0
      %1048 = vmatprep.subr.bf16.mxu0 0
      %1049 = vmatpush1.bf16.msra.mxu0 0
      %1050 = vmatprep.subr.bf16.mxu0 0
      %1051 = vmatpush1.bf16.msra.mxu0 %v1038
      %1052 = vmatprep.subr.bf16.mxu0 0
      %1053 = vmatpush1.bf16.msra.mxu0 %v1030
      %1054 = vmatprep.subr.bf16.mxu0 0
      %1055 = vmatpush1.bf16.msra.mxu0 %v1029
      %1056 = vmatprep.subr.bf16.mxu0 0
      %1057 = vmatpush2.bf16.msra.mxu0 0
      %1058 = vmatprep.subr.bf16.mxu0 0
      %1059 = vmatpush2.bf16.msra.mxu0 0
      %1060 = vmatprep.subr.bf16.mxu0 0
      %1061 = vmatpush2.bf16.msra.mxu0 0
      %1062 = vmatprep.subr.bf16.mxu0 0
      %1063 = vmatpush2.bf16.msra.mxu0 0
      %1064 = vmatprep.subr.bf16.mxu0 0
      %1065 = vmatpush2.bf16.msra.mxu0 0
      %1066 = vmatprep.subr.bf16.mxu0 0
      %1067 = vmatpush2.bf16.msra.mxu0 0
      %1068 = vmatprep.subr.bf16.mxu0 0
      %1069 = vmatpush2.bf16.msra.mxu0 0
      %1070 = vmatprep.subr.bf16.mxu0 0
      %1071 = vmatpush2.bf16.msra.mxu0 0
      %1072 = vmatprep.mubr.bf16.mxu0 0
      %1073 = vmatmul.mubr.bf16.gmra.mxu0 %v1035
      %v1074 = vpop.f32.mrf.mxu0
      %v1075 = vadd.f32 0.0, %v1074
      %v1076 = vpop.f32.mrf.mxu0
      %v1077 = vpop.f32.mrf.mxu0
      %v1078 = vpop.f32.mrf.mxu0
      %1079 = vdwg.mxu0
      %v1080 = vadd.f32 %v1011, %v1075
      %v1081 = vld [vmem:[%s580] sm:$0xf]
      %v1082 = vld [vmem:[%s580 + $0x4] sm:$0x1]
      %s1083 = scalar_lea.vmem %s585, 120
      %v1084 = vld [vmem:[%s1083] sm:$0xf]
      %v1085 = vld [vmem:[%s1083 + $0x4] sm:$0xf]
      %v1086 = vld [vmem:[%s1083 + $0x8] sm:$0xf]
      %v1087 = vld [vmem:[%s1083 + $0xc] sm:$0xf]
      %v1088 = vld [vmem:[%s1083 + $0x10] sm:$0xf]
      %v1094 = vunpack.c.l.b16 %v1084
      %v1095 = vunpack.c.l.b16 %v1085
      %v1096 = vunpack.c.l.b16 %v1086
      %v1097 = vunpack.c.l.b16 %v1087
      %v1098 = vunpack.c.l.b16 %v1088
      %v1099 = vpack.c.b16 %v1095, %v1094
      %v1100 = vpack.c.b16 %v1097, %v1096
      %v1101 = vpack.c.b16 %v1098, %v1098
      %v1105 = vsel %vm684, %v1081, 0
      %v1108 = vsel %vm688, %v1101, 0
      %1110 = vmatprep.subr.bf16.mxu0 0
      %1111 = vmatpush1.bf16.msra.mxu0 0
      %1112 = vmatprep.subr.bf16.mxu0 0
      %1113 = vmatpush1.bf16.msra.mxu0 0
      %1114 = vmatprep.subr.bf16.mxu0 0
      %1115 = vmatpush1.bf16.msra.mxu0 0
      %1116 = vmatprep.subr.bf16.mxu0 0
      %1117 = vmatpush1.bf16.msra.mxu0 0
      %1118 = vmatprep.subr.bf16.mxu0 0
      %1119 = vmatpush1.bf16.msra.mxu0 0
      %1120 = vmatprep.subr.bf16.mxu0 0
      %1121 = vmatpush1.bf16.msra.mxu0 %v1108
      %1122 = vmatprep.subr.bf16.mxu0 0
      %1123 = vmatpush1.bf16.msra.mxu0 %v1100
      %1124 = vmatprep.subr.bf16.mxu0 0
      %1125 = vmatpush1.bf16.msra.mxu0 %v1099
      %1126 = vmatprep.subr.bf16.mxu0 0
      %1127 = vmatpush2.bf16.msra.mxu0 0
      %1128 = vmatprep.subr.bf16.mxu0 0
      %1129 = vmatpush2.bf16.msra.mxu0 0
      %1130 = vmatprep.subr.bf16.mxu0 0
      %1131 = vmatpush2.bf16.msra.mxu0 0
      %1132 = vmatprep.subr.bf16.mxu0 0
      %1133 = vmatpush2.bf16.msra.mxu0 0
      %1134 = vmatprep.subr.bf16.mxu0 0
      %1135 = vmatpush2.bf16.msra.mxu0 0
      %1136 = vmatprep.subr.bf16.mxu0 0
      %1137 = vmatpush2.bf16.msra.mxu0 0
      %1138 = vmatprep.subr.bf16.mxu0 0
      %1139 = vmatpush2.bf16.msra.mxu0 0
      %1140 = vmatprep.subr.bf16.mxu0 0
      %1141 = vmatpush2.bf16.msra.mxu0 0
      %1142 = vmatprep.mubr.bf16.mxu0 0
      %1143 = vmatmul.mubr.bf16.gmra.mxu0 %v1105
      %v1144 = vpop.f32.mrf.mxu0
      %v1145 = vadd.f32 0.0, %v1144
      %v1146 = vpop.f32.mrf.mxu0
      %v1147 = vpop.f32.mrf.mxu0
      %v1148 = vpop.f32.mrf.mxu0
      %1149 = vdwg.mxu0
      %v1150 = vadd.f32 %v1080, %v1145
      %s1151 = scalar_lea.vmem %s585, 140
      %v1152 = vld [vmem:[%s1151] sm:$0xf]
      %v1153 = vld [vmem:[%s1151 + $0x4] sm:$0xf]
      %v1154 = vld [vmem:[%s1151 + $0x8] sm:$0xf]
      %v1155 = vld [vmem:[%s1151 + $0xc] sm:$0xf]
      %v1156 = vld [vmem:[%s1151 + $0x10] sm:$0xf]
      %v1159 = vunpack.c.l.b16 %v1081
      %v1160 = vunpack.c.l.b16 %v1082
      %v1161 = vpack.c.b16 %v1160, %v1159
      %v1163 = vshrl.u32 %v1161, 16
      %v1165 = vshll.u32 %v1161, 16
      %v1167 = vrot.slane %v1165, 1
      %v1168 = vor.u32 %v1163, %v1167
      %v1174 = vunpack.c.l.b16 %v1152
      %v1175 = vunpack.c.l.b16 %v1153
      %v1176 = vunpack.c.l.b16 %v1154
      %v1177 = vunpack.c.l.b16 %v1155
      %v1178 = vunpack.c.l.b16 %v1156
      %v1179 = vpack.c.b16 %v1175, %v1174
      %v1180 = vpack.c.b16 %v1177, %v1176
      %v1181 = vpack.c.b16 %v1178, %v1178
      %v1185 = vsel %vm684, %v1168, 0
      %v1188 = vsel %vm688, %v1181, 0
      %1190 = vmatprep.subr.bf16.mxu0 0
      %1191 = vmatpush1.bf16.msra.mxu0 0
      %1192 = vmatprep.subr.bf16.mxu0 0
      %1193 = vmatpush1.bf16.msra.mxu0 0
      %1194 = vmatprep.subr.bf16.mxu0 0
      %1195 = vmatpush1.bf16.msra.mxu0 0
      %1196 = vmatprep.subr.bf16.mxu0 0
      %1197 = vmatpush1.bf16.msra.mxu0 0
      %1198 = vmatprep.subr.bf16.mxu0 0
      %1199 = vmatpush1.bf16.msra.mxu0 0
      %1200 = vmatprep.subr.bf16.mxu0 0
      %1201 = vmatpush1.bf16.msra.mxu0 %v1188
      %1202 = vmatprep.subr.bf16.mxu0 0
      %1203 = vmatpush1.bf16.msra.mxu0 %v1180
      %1204 = vmatprep.subr.bf16.mxu0 0
      %1205 = vmatpush1.bf16.msra.mxu0 %v1179
      %1206 = vmatprep.subr.bf16.mxu0 0
      %1207 = vmatpush2.bf16.msra.mxu0 0
      %1208 = vmatprep.subr.bf16.mxu0 0
      %1209 = vmatpush2.bf16.msra.mxu0 0
      %1210 = vmatprep.subr.bf16.mxu0 0
      %1211 = vmatpush2.bf16.msra.mxu0 0
      %1212 = vmatprep.subr.bf16.mxu0 0
      %1213 = vmatpush2.bf16.msra.mxu0 0
      %1214 = vmatprep.subr.bf16.mxu0 0
      %1215 = vmatpush2.bf16.msra.mxu0 0
      %1216 = vmatprep.subr.bf16.mxu0 0
      %1217 = vmatpush2.bf16.msra.mxu0 0
      %1218 = vmatprep.subr.bf16.mxu0 0
      %1219 = vmatpush2.bf16.msra.mxu0 0
      %1220 = vmatprep.subr.bf16.mxu0 0
      %1221 = vmatpush2.bf16.msra.mxu0 0
      %1222 = vmatprep.mubr.bf16.mxu0 0
      %1223 = vmatmul.mubr.bf16.gmra.mxu0 %v1185
      %v1224 = vpop.f32.mrf.mxu0
      %v1225 = vadd.f32 0.0, %v1224
      %v1226 = vpop.f32.mrf.mxu0
      %v1227 = vpop.f32.mrf.mxu0
      %v1228 = vpop.f32.mrf.mxu0
      %1229 = vdwg.mxu0
      %v1230 = vadd.f32 %v1150, %v1225
      %s1231 = scalar_lea.vmem %s585, 160
      %v1232 = vld [vmem:[%s1231] sm:$0xf]
      %v1233 = vld [vmem:[%s1231 + $0x4] sm:$0xf]
      %v1234 = vld [vmem:[%s1231 + $0x8] sm:$0xf]
      %v1235 = vld [vmem:[%s1231 + $0xc] sm:$0xf]
      %v1236 = vld [vmem:[%s1231 + $0x10] sm:$0xf]
      %v1237 = vrot.slane %v1161, 1
      %v1243 = vunpack.c.l.b16 %v1232
      %v1244 = vunpack.c.l.b16 %v1233
      %v1245 = vunpack.c.l.b16 %v1234
      %v1246 = vunpack.c.l.b16 %v1235
      %v1247 = vunpack.c.l.b16 %v1236
      %v1248 = vpack.c.b16 %v1244, %v1243
      %v1249 = vpack.c.b16 %v1246, %v1245
      %v1250 = vpack.c.b16 %v1247, %v1247
      %v1254 = vsel %vm684, %v1237, 0
      %v1257 = vsel %vm688, %v1250, 0
      %1259 = vmatprep.subr.bf16.mxu0 0
      %1260 = vmatpush1.bf16.msra.mxu0 0
      %1261 = vmatprep.subr.bf16.mxu0 0
      %1262 = vmatpush1.bf16.msra.mxu0 0
      %1263 = vmatprep.subr.bf16.mxu0 0
      %1264 = vmatpush1.bf16.msra.mxu0 0
      %1265 = vmatprep.subr.bf16.mxu0 0
      %1266 = vmatpush1.bf16.msra.mxu0 0
      %1267 = vmatprep.subr.bf16.mxu0 0
      %1268 = vmatpush1.bf16.msra.mxu0 0
      %1269 = vmatprep.subr.bf16.mxu0 0
      %1270 = vmatpush1.bf16.msra.mxu0 %v1257
      %1271 = vmatprep.subr.bf16.mxu0 0
      %1272 = vmatpush1.bf16.msra.mxu0 %v1249
      %1273 = vmatprep.subr.bf16.mxu0 0
      %1274 = vmatpush1.bf16.msra.mxu0 %v1248
      %1275 = vmatprep.subr.bf16.mxu0 0
      %1276 = vmatpush2.bf16.msra.mxu0 0
      %1277 = vmatprep.subr.bf16.mxu0 0
      %1278 = vmatpush2.bf16.msra.mxu0 0
      %1279 = vmatprep.subr.bf16.mxu0 0
      %1280 = vmatpush2.bf16.msra.mxu0 0
      %1281 = vmatprep.subr.bf16.mxu0 0
      %1282 = vmatpush2.bf16.msra.mxu0 0
      %1283 = vmatprep.subr.bf16.mxu0 0
      %1284 = vmatpush2.bf16.msra.mxu0 0
      %1285 = vmatprep.subr.bf16.mxu0 0
      %1286 = vmatpush2.bf16.msra.mxu0 0
      %1287 = vmatprep.subr.bf16.mxu0 0
      %1288 = vmatpush2.bf16.msra.mxu0 0
      %1289 = vmatprep.subr.bf16.mxu0 0
      %1290 = vmatpush2.bf16.msra.mxu0 0
      %1291 = vmatprep.mubr.bf16.mxu0 0
      %1292 = vmatmul.mubr.bf16.gmra.mxu0 %v1254
      %v1293 = vpop.f32.mrf.mxu0
      %v1294 = vadd.f32 0.0, %v1293
      %v1295 = vpop.f32.mrf.mxu0
      %v1296 = vpop.f32.mrf.mxu0
      %v1297 = vpop.f32.mrf.mxu0
      %1298 = vdwg.mxu0
      %v1299 = vadd.f32 %v1230, %v1294
      %v1300 = vld [vmem:[%s594] sm:$0xf]
      %v1301 = vld [vmem:[%s594 + $0x4] sm:$0x1]
      %v1302 = vld [vmem:[%s620] sm:$0xf]
      %v1303 = vld [vmem:[%s620 + $0x4] sm:$0xf]
      %v1304 = vld [vmem:[%s620 + $0x8] sm:$0xf]
      %v1305 = vld [vmem:[%s620 + $0xc] sm:$0xf]
      %v1306 = vld [vmem:[%s620 + $0x10] sm:$0xf]
      %v1312 = vunpack.c.l.b16 %v1302
      %v1313 = vunpack.c.l.b16 %v1303
      %v1314 = vunpack.c.l.b16 %v1304
      %v1315 = vunpack.c.l.b16 %v1305
      %v1316 = vunpack.c.l.b16 %v1306
      %v1317 = vpack.c.b16 %v1313, %v1312
      %v1318 = vpack.c.b16 %v1315, %v1314
      %v1319 = vpack.c.b16 %v1316, %v1316
      %v1323 = vsel %vm684, %v1300, 0
      %v1326 = vsel %vm688, %v1319, 0
      %1328 = vmatprep.subr.bf16.mxu0 0
      %1329 = vmatpush1.bf16.msra.mxu0 0
      %1330 = vmatprep.subr.bf16.mxu0 0
      %1331 = vmatpush1.bf16.msra.mxu0 0
      %1332 = vmatprep.subr.bf16.mxu0 0
      %1333 = vmatpush1.bf16.msra.mxu0 0
      %1334 = vmatprep.subr.bf16.mxu0 0
      %1335 = vmatpush1.bf16.msra.mxu0 0
      %1336 = vmatprep.subr.bf16.mxu0 0
      %1337 = vmatpush1.bf16.msra.mxu0 0
      %1338 = vmatprep.subr.bf16.mxu0 0
      %1339 = vmatpush1.bf16.msra.mxu0 %v1326
      %1340 = vmatprep.subr.bf16.mxu0 0
      %1341 = vmatpush1.bf16.msra.mxu0 %v1318
      %1342 = vmatprep.subr.bf16.mxu0 0
      %1343 = vmatpush1.bf16.msra.mxu0 %v1317
      %1344 = vmatprep.subr.bf16.mxu0 0
      %1345 = vmatpush2.bf16.msra.mxu0 0
      %1346 = vmatprep.subr.bf16.mxu0 0
      %1347 = vmatpush2.bf16.msra.mxu0 0
      %1348 = vmatprep.subr.bf16.mxu0 0
      %1349 = vmatpush2.bf16.msra.mxu0 0
      %1350 = vmatprep.subr.bf16.mxu0 0
      %1351 = vmatpush2.bf16.msra.mxu0 0
      %1352 = vmatprep.subr.bf16.mxu0 0
      %1353 = vmatpush2.bf16.msra.mxu0 0
      %1354 = vmatprep.subr.bf16.mxu0 0
      %1355 = vmatpush2.bf16.msra.mxu0 0
      %1356 = vmatprep.subr.bf16.mxu0 0
      %1357 = vmatpush2.bf16.msra.mxu0 0
      %1358 = vmatprep.subr.bf16.mxu0 0
      %1359 = vmatpush2.bf16.msra.mxu0 0
      %1360 = vmatprep.mubr.bf16.mxu0 0
      %1361 = vmatmul.mubr.bf16.gmra.mxu0 %v1323
      %v1362 = vpop.f32.mrf.mxu0
      %v1363 = vadd.f32 0.0, %v1362
      %v1364 = vpop.f32.mrf.mxu0
      %v1365 = vpop.f32.mrf.mxu0
      %v1366 = vpop.f32.mrf.mxu0
      %1367 = vdwg.mxu0
      %v1368 = vadd.f32 %v1299, %v1363
      %s1369 = scalar_lea.vmem %s620, 20
      %v1370 = vld [vmem:[%s1369] sm:$0xf]
      %v1371 = vld [vmem:[%s1369 + $0x4] sm:$0xf]
      %v1372 = vld [vmem:[%s1369 + $0x8] sm:$0xf]
      %v1373 = vld [vmem:[%s1369 + $0xc] sm:$0xf]
      %v1374 = vld [vmem:[%s1369 + $0x10] sm:$0xf]
      %v1377 = vunpack.c.l.b16 %v1300
      %v1378 = vunpack.c.l.b16 %v1301
      %v1379 = vpack.c.b16 %v1378, %v1377
      %v1381 = vshrl.u32 %v1379, 16
      %v1383 = vshll.u32 %v1379, 16
      %v1385 = vrot.slane %v1383, 1
      %v1386 = vor.u32 %v1381, %v1385
      %v1392 = vunpack.c.l.b16 %v1370
      %v1393 = vunpack.c.l.b16 %v1371
      %v1394 = vunpack.c.l.b16 %v1372
      %v1395 = vunpack.c.l.b16 %v1373
      %v1396 = vunpack.c.l.b16 %v1374
      %v1397 = vpack.c.b16 %v1393, %v1392
      %v1398 = vpack.c.b16 %v1395, %v1394
      %v1399 = vpack.c.b16 %v1396, %v1396
      %v1403 = vsel %vm684, %v1386, 0
      %v1406 = vsel %vm688, %v1399, 0
      %1408 = vmatprep.subr.bf16.mxu0 0
      %1409 = vmatpush1.bf16.msra.mxu0 0
      %1410 = vmatprep.subr.bf16.mxu0 0
      %1411 = vmatpush1.bf16.msra.mxu0 0
      %1412 = vmatprep.subr.bf16.mxu0 0
      %1413 = vmatpush1.bf16.msra.mxu0 0
      %1414 = vmatprep.subr.bf16.mxu0 0
      %1415 = vmatpush1.bf16.msra.mxu0 0
      %1416 = vmatprep.subr.bf16.mxu0 0
      %1417 = vmatpush1.bf16.msra.mxu0 0
      %1418 = vmatprep.subr.bf16.mxu0 0
      %1419 = vmatpush1.bf16.msra.mxu0 %v1406
      %1420 = vmatprep.subr.bf16.mxu0 0
      %1421 = vmatpush1.bf16.msra.mxu0 %v1398
      %1422 = vmatprep.subr.bf16.mxu0 0
      %1423 = vmatpush1.bf16.msra.mxu0 %v1397
      %1424 = vmatprep.subr.bf16.mxu0 0
      %1425 = vmatpush2.bf16.msra.mxu0 0
      %1426 = vmatprep.subr.bf16.mxu0 0
      %1427 = vmatpush2.bf16.msra.mxu0 0
      %1428 = vmatprep.subr.bf16.mxu0 0
      %1429 = vmatpush2.bf16.msra.mxu0 0
      %1430 = vmatprep.subr.bf16.mxu0 0
      %1431 = vmatpush2.bf16.msra.mxu0 0
      %1432 = vmatprep.subr.bf16.mxu0 0
      %1433 = vmatpush2.bf16.msra.mxu0 0
      %1434 = vmatprep.subr.bf16.mxu0 0
      %1435 = vmatpush2.bf16.msra.mxu0 0
      %1436 = vmatprep.subr.bf16.mxu0 0
      %1437 = vmatpush2.bf16.msra.mxu0 0
      %1438 = vmatprep.subr.bf16.mxu0 0
      %1439 = vmatpush2.bf16.msra.mxu0 0
      %1440 = vmatprep.mubr.bf16.mxu0 0
      %1441 = vmatmul.mubr.bf16.gmra.mxu0 %v1403
      %v1442 = vpop.f32.mrf.mxu0
      %v1443 = vadd.f32 0.0, %v1442
      %v1444 = vpop.f32.mrf.mxu0
      %v1445 = vpop.f32.mrf.mxu0
      %v1446 = vpop.f32.mrf.mxu0
      %1447 = vdwg.mxu0
      %v1448 = vadd.f32 %v1368, %v1443
      %s1449 = scalar_lea.vmem %s620, 40
      %v1450 = vld [vmem:[%s1449] sm:$0xf]
      %v1451 = vld [vmem:[%s1449 + $0x4] sm:$0xf]
      %v1452 = vld [vmem:[%s1449 + $0x8] sm:$0xf]
      %v1453 = vld [vmem:[%s1449 + $0xc] sm:$0xf]
      %v1454 = vld [vmem:[%s1449 + $0x10] sm:$0xf]
      %v1455 = vrot.slane %v1379, 1
      %v1461 = vunpack.c.l.b16 %v1450
      %v1462 = vunpack.c.l.b16 %v1451
      %v1463 = vunpack.c.l.b16 %v1452
      %v1464 = vunpack.c.l.b16 %v1453
      %v1465 = vunpack.c.l.b16 %v1454
      %v1466 = vpack.c.b16 %v1462, %v1461
      %v1467 = vpack.c.b16 %v1464, %v1463
      %v1468 = vpack.c.b16 %v1465, %v1465
      %v1472 = vsel %vm684, %v1455, 0
      %v1475 = vsel %vm688, %v1468, 0
      %1477 = vmatprep.subr.bf16.mxu0 0
      %1478 = vmatpush1.bf16.msra.mxu0 0
      %1479 = vmatprep.subr.bf16.mxu0 0
      %1480 = vmatpush1.bf16.msra.mxu0 0
      %1481 = vmatprep.subr.bf16.mxu0 0
      %1482 = vmatpush1.bf16.msra.mxu0 0
      %1483 = vmatprep.subr.bf16.mxu0 0
      %1484 = vmatpush1.bf16.msra.mxu0 0
      %1485 = vmatprep.subr.bf16.mxu0 0
      %1486 = vmatpush1.bf16.msra.mxu0 0
      %1487 = vmatprep.subr.bf16.mxu0 0
      %1488 = vmatpush1.bf16.msra.mxu0 %v1475
      %1489 = vmatprep.subr.bf16.mxu0 0
      %1490 = vmatpush1.bf16.msra.mxu0 %v1467
      %1491 = vmatprep.subr.bf16.mxu0 0
      %1492 = vmatpush1.bf16.msra.mxu0 %v1466
      %1493 = vmatprep.subr.bf16.mxu0 0
      %1494 = vmatpush2.bf16.msra.mxu0 0
      %1495 = vmatprep.subr.bf16.mxu0 0
      %1496 = vmatpush2.bf16.msra.mxu0 0
      %1497 = vmatprep.subr.bf16.mxu0 0
      %1498 = vmatpush2.bf16.msra.mxu0 0
      %1499 = vmatprep.subr.bf16.mxu0 0
      %1500 = vmatpush2.bf16.msra.mxu0 0
      %1501 = vmatprep.subr.bf16.mxu0 0
      %1502 = vmatpush2.bf16.msra.mxu0 0
      %1503 = vmatprep.subr.bf16.mxu0 0
      %1504 = vmatpush2.bf16.msra.mxu0 0
      %1505 = vmatprep.subr.bf16.mxu0 0
      %1506 = vmatpush2.bf16.msra.mxu0 0
      %1507 = vmatprep.subr.bf16.mxu0 0
      %1508 = vmatpush2.bf16.msra.mxu0 0
      %1509 = vmatprep.mubr.bf16.mxu0 0
      %1510 = vmatmul.mubr.bf16.gmra.mxu0 %v1472
      %v1511 = vpop.f32.mrf.mxu0
      %v1512 = vadd.f32 0.0, %v1511
      %v1513 = vpop.f32.mrf.mxu0
      %v1514 = vpop.f32.mrf.mxu0
      %v1515 = vpop.f32.mrf.mxu0
      %1516 = vdwg.mxu0
      %v1517 = vadd.f32 %v1448, %v1512
      %v1518 = vld [vmem:[%s604] sm:$0xf]
      %v1519 = vld [vmem:[%s604 + $0x4] sm:$0x1]
      %s1520 = scalar_lea.vmem %s620, 60
      %v1521 = vld [vmem:[%s1520] sm:$0xf]
      %v1522 = vld [vmem:[%s1520 + $0x4] sm:$0xf]
      %v1523 = vld [vmem:[%s1520 + $0x8] sm:$0xf]
      %v1524 = vld [vmem:[%s1520 + $0xc] sm:$0xf]
      %v1525 = vld [vmem:[%s1520 + $0x10] sm:$0xf]
      %v1531 = vunpack.c.l.b16 %v1521
      %v1532 = vunpack.c.l.b16 %v1522
      %v1533 = vunpack.c.l.b16 %v1523
      %v1534 = vunpack.c.l.b16 %v1524
      %v1535 = vunpack.c.l.b16 %v1525
      %v1536 = vpack.c.b16 %v1532, %v1531
      %v1537 = vpack.c.b16 %v1534, %v1533
      %v1538 = vpack.c.b16 %v1535, %v1535
      %v1542 = vsel %vm684, %v1518, 0
      %v1545 = vsel %vm688, %v1538, 0
      %1547 = vmatprep.subr.bf16.mxu0 0
      %1548 = vmatpush1.bf16.msra.mxu0 0
      %1549 = vmatprep.subr.bf16.mxu0 0
      %1550 = vmatpush1.bf16.msra.mxu0 0
      %1551 = vmatprep.subr.bf16.mxu0 0
      %1552 = vmatpush1.bf16.msra.mxu0 0
      %1553 = vmatprep.subr.bf16.mxu0 0
      %1554 = vmatpush1.bf16.msra.mxu0 0
      %1555 = vmatprep.subr.bf16.mxu0 0
      %1556 = vmatpush1.bf16.msra.mxu0 0
      %1557 = vmatprep.subr.bf16.mxu0 0
      %1558 = vmatpush1.bf16.msra.mxu0 %v1545
      %1559 = vmatprep.subr.bf16.mxu0 0
      %1560 = vmatpush1.bf16.msra.mxu0 %v1537
      %1561 = vmatprep.subr.bf16.mxu0 0
      %1562 = vmatpush1.bf16.msra.mxu0 %v1536
      %1563 = vmatprep.subr.bf16.mxu0 0
      %1564 = vmatpush2.bf16.msra.mxu0 0
      %1565 = vmatprep.subr.bf16.mxu0 0
      %1566 = vmatpush2.bf16.msra.mxu0 0
      %1567 = vmatprep.subr.bf16.mxu0 0
      %1568 = vmatpush2.bf16.msra.mxu0 0
      %1569 = vmatprep.subr.bf16.mxu0 0
      %1570 = vmatpush2.bf16.msra.mxu0 0
      %1571 = vmatprep.subr.bf16.mxu0 0
      %1572 = vmatpush2.bf16.msra.mxu0 0
      %1573 = vmatprep.subr.bf16.mxu0 0
      %1574 = vmatpush2.bf16.msra.mxu0 0
      %1575 = vmatprep.subr.bf16.mxu0 0
      %1576 = vmatpush2.bf16.msra.mxu0 0
      %1577 = vmatprep.subr.bf16.mxu0 0
      %1578 = vmatpush2.bf16.msra.mxu0 0
      %1579 = vmatprep.mubr.bf16.mxu0 0
      %1580 = vmatmul.mubr.bf16.gmra.mxu0 %v1542
      %v1581 = vpop.f32.mrf.mxu0
      %v1582 = vadd.f32 0.0, %v1581
      %v1583 = vpop.f32.mrf.mxu0
      %v1584 = vpop.f32.mrf.mxu0
      %v1585 = vpop.f32.mrf.mxu0
      %1586 = vdwg.mxu0
      %v1587 = vadd.f32 %v1517, %v1582
      %s1588 = scalar_lea.vmem %s620, 80
      %v1589 = vld [vmem:[%s1588] sm:$0xf]
      %v1590 = vld [vmem:[%s1588 + $0x4] sm:$0xf]
      %v1591 = vld [vmem:[%s1588 + $0x8] sm:$0xf]
      %v1592 = vld [vmem:[%s1588 + $0xc] sm:$0xf]
      %v1593 = vld [vmem:[%s1588 + $0x10] sm:$0xf]
      %v1596 = vunpack.c.l.b16 %v1518
      %v1597 = vunpack.c.l.b16 %v1519
      %v1598 = vpack.c.b16 %v1597, %v1596
      %v1600 = vshrl.u32 %v1598, 16
      %v1602 = vshll.u32 %v1598, 16
      %v1604 = vrot.slane %v1602, 1
      %v1605 = vor.u32 %v1600, %v1604
      %v1611 = vunpack.c.l.b16 %v1589
      %v1612 = vunpack.c.l.b16 %v1590
      %v1613 = vunpack.c.l.b16 %v1591
      %v1614 = vunpack.c.l.b16 %v1592
      %v1615 = vunpack.c.l.b16 %v1593
      %v1616 = vpack.c.b16 %v1612, %v1611
      %v1617 = vpack.c.b16 %v1614, %v1613
      %v1618 = vpack.c.b16 %v1615, %v1615
      %v1622 = vsel %vm684, %v1605, 0
      %v1625 = vsel %vm688, %v1618, 0
      %1627 = vmatprep.subr.bf16.mxu0 0
      %1628 = vmatpush1.bf16.msra.mxu0 0
      %1629 = vmatprep.subr.bf16.mxu0 0
      %1630 = vmatpush1.bf16.msra.mxu0 0
      %1631 = vmatprep.subr.bf16.mxu0 0
      %1632 = vmatpush1.bf16.msra.mxu0 0
      %1633 = vmatprep.subr.bf16.mxu0 0
      %1634 = vmatpush1.bf16.msra.mxu0 0
      %1635 = vmatprep.subr.bf16.mxu0 0
      %1636 = vmatpush1.bf16.msra.mxu0 0
      %1637 = vmatprep.subr.bf16.mxu0 0
      %1638 = vmatpush1.bf16.msra.mxu0 %v1625
      %1639 = vmatprep.subr.bf16.mxu0 0
      %1640 = vmatpush1.bf16.msra.mxu0 %v1617
      %1641 = vmatprep.subr.bf16.mxu0 0
      %1642 = vmatpush1.bf16.msra.mxu0 %v1616
      %1643 = vmatprep.subr.bf16.mxu0 0
      %1644 = vmatpush2.bf16.msra.mxu0 0
      %1645 = vmatprep.subr.bf16.mxu0 0
      %1646 = vmatpush2.bf16.msra.mxu0 0
      %1647 = vmatprep.subr.bf16.mxu0 0
      %1648 = vmatpush2.bf16.msra.mxu0 0
      %1649 = vmatprep.subr.bf16.mxu0 0
      %1650 = vmatpush2.bf16.msra.mxu0 0
      %1651 = vmatprep.subr.bf16.mxu0 0
      %1652 = vmatpush2.bf16.msra.mxu0 0
      %1653 = vmatprep.subr.bf16.mxu0 0
      %1654 = vmatpush2.bf16.msra.mxu0 0
      %1655 = vmatprep.subr.bf16.mxu0 0
      %1656 = vmatpush2.bf16.msra.mxu0 0
      %1657 = vmatprep.subr.bf16.mxu0 0
      %1658 = vmatpush2.bf16.msra.mxu0 0
      %1659 = vmatprep.mubr.bf16.mxu0 0
      %1660 = vmatmul.mubr.bf16.gmra.mxu0 %v1622
      %v1661 = vpop.f32.mrf.mxu0
      %v1662 = vadd.f32 0.0, %v1661
      %v1663 = vpop.f32.mrf.mxu0
      %v1664 = vpop.f32.mrf.mxu0
      %v1665 = vpop.f32.mrf.mxu0
      %1666 = vdwg.mxu0
      %v1667 = vadd.f32 %v1587, %v1662
      %s1668 = scalar_lea.vmem %s620, 100
      %v1669 = vld [vmem:[%s1668] sm:$0xf]
      %v1670 = vld [vmem:[%s1668 + $0x4] sm:$0xf]
      %v1671 = vld [vmem:[%s1668 + $0x8] sm:$0xf]
      %v1672 = vld [vmem:[%s1668 + $0xc] sm:$0xf]
      %v1673 = vld [vmem:[%s1668 + $0x10] sm:$0xf]
      %v1674 = vrot.slane %v1598, 1
      %v1680 = vunpack.c.l.b16 %v1669
      %v1681 = vunpack.c.l.b16 %v1670
      %v1682 = vunpack.c.l.b16 %v1671
      %v1683 = vunpack.c.l.b16 %v1672
      %v1684 = vunpack.c.l.b16 %v1673
      %v1685 = vpack.c.b16 %v1681, %v1680
      %v1686 = vpack.c.b16 %v1683, %v1682
      %v1687 = vpack.c.b16 %v1684, %v1684
      %v1691 = vsel %vm684, %v1674, 0
      %v1694 = vsel %vm688, %v1687, 0
      %1696 = vmatprep.subr.bf16.mxu0 0
      %1697 = vmatpush1.bf16.msra.mxu0 0
      %1698 = vmatprep.subr.bf16.mxu0 0
      %1699 = vmatpush1.bf16.msra.mxu0 0
      %1700 = vmatprep.subr.bf16.mxu0 0
      %1701 = vmatpush1.bf16.msra.mxu0 0
      %1702 = vmatprep.subr.bf16.mxu0 0
      %1703 = vmatpush1.bf16.msra.mxu0 0
      %1704 = vmatprep.subr.bf16.mxu0 0
      %1705 = vmatpush1.bf16.msra.mxu0 0
      %1706 = vmatprep.subr.bf16.mxu0 0
      %1707 = vmatpush1.bf16.msra.mxu0 %v1694
      %1708 = vmatprep.subr.bf16.mxu0 0
      %1709 = vmatpush1.bf16.msra.mxu0 %v1686
      %1710 = vmatprep.subr.bf16.mxu0 0
      %1711 = vmatpush1.bf16.msra.mxu0 %v1685
      %1712 = vmatprep.subr.bf16.mxu0 0
      %1713 = vmatpush2.bf16.msra.mxu0 0
      %1714 = vmatprep.subr.bf16.mxu0 0
      %1715 = vmatpush2.bf16.msra.mxu0 0
      %1716 = vmatprep.subr.bf16.mxu0 0
      %1717 = vmatpush2.bf16.msra.mxu0 0
      %1718 = vmatprep.subr.bf16.mxu0 0
      %1719 = vmatpush2.bf16.msra.mxu0 0
      %1720 = vmatprep.subr.bf16.mxu0 0
      %1721 = vmatpush2.bf16.msra.mxu0 0
      %1722 = vmatprep.subr.bf16.mxu0 0
      %1723 = vmatpush2.bf16.msra.mxu0 0
      %1724 = vmatprep.subr.bf16.mxu0 0
      %1725 = vmatpush2.bf16.msra.mxu0 0
      %1726 = vmatprep.subr.bf16.mxu0 0
      %1727 = vmatpush2.bf16.msra.mxu0 0
      %1728 = vmatprep.mubr.bf16.mxu0 0
      %1729 = vmatmul.mubr.bf16.gmra.mxu0 %v1691
      %v1730 = vpop.f32.mrf.mxu0
      %v1731 = vadd.f32 0.0, %v1730
      %v1732 = vpop.f32.mrf.mxu0
      %v1733 = vpop.f32.mrf.mxu0
      %v1734 = vpop.f32.mrf.mxu0
      %1735 = vdwg.mxu0
      %v1736 = vadd.f32 %v1667, %v1731
      %v1737 = vld [vmem:[%s615] sm:$0xf]
      %v1738 = vld [vmem:[%s615 + $0x4] sm:$0x1]
      %s1739 = scalar_lea.vmem %s620, 120
      %v1740 = vld [vmem:[%s1739] sm:$0xf]
      %v1741 = vld [vmem:[%s1739 + $0x4] sm:$0xf]
      %v1742 = vld [vmem:[%s1739 + $0x8] sm:$0xf]
      %v1743 = vld [vmem:[%s1739 + $0xc] sm:$0xf]
      %v1744 = vld [vmem:[%s1739 + $0x10] sm:$0xf]
      %v1750 = vunpack.c.l.b16 %v1740
      %v1751 = vunpack.c.l.b16 %v1741
      %v1752 = vunpack.c.l.b16 %v1742
      %v1753 = vunpack.c.l.b16 %v1743
      %v1754 = vunpack.c.l.b16 %v1744
      %v1755 = vpack.c.b16 %v1751, %v1750
      %v1756 = vpack.c.b16 %v1753, %v1752
      %v1757 = vpack.c.b16 %v1754, %v1754
      %v1761 = vsel %vm684, %v1737, 0
      %v1764 = vsel %vm688, %v1757, 0
      %1766 = vmatprep.subr.bf16.mxu0 0
      %1767 = vmatpush1.bf16.msra.mxu0 0
      %1768 = vmatprep.subr.bf16.mxu0 0
      %1769 = vmatpush1.bf16.msra.mxu0 0
      %1770 = vmatprep.subr.bf16.mxu0 0
      %1771 = vmatpush1.bf16.msra.mxu0 0
      %1772 = vmatprep.subr.bf16.mxu0 0
      %1773 = vmatpush1.bf16.msra.mxu0 0
      %1774 = vmatprep.subr.bf16.mxu0 0
      %1775 = vmatpush1.bf16.msra.mxu0 0
      %1776 = vmatprep.subr.bf16.mxu0 0
      %1777 = vmatpush1.bf16.msra.mxu0 %v1764
      %1778 = vmatprep.subr.bf16.mxu0 0
      %1779 = vmatpush1.bf16.msra.mxu0 %v1756
      %1780 = vmatprep.subr.bf16.mxu0 0
      %1781 = vmatpush1.bf16.msra.mxu0 %v1755
      %1782 = vmatprep.subr.bf16.mxu0 0
      %1783 = vmatpush2.bf16.msra.mxu0 0
      %1784 = vmatprep.subr.bf16.mxu0 0
      %1785 = vmatpush2.bf16.msra.mxu0 0
      %1786 = vmatprep.subr.bf16.mxu0 0
      %1787 = vmatpush2.bf16.msra.mxu0 0
      %1788 = vmatprep.subr.bf16.mxu0 0
      %1789 = vmatpush2.bf16.msra.mxu0 0
      %1790 = vmatprep.subr.bf16.mxu0 0
      %1791 = vmatpush2.bf16.msra.mxu0 0
      %1792 = vmatprep.subr.bf16.mxu0 0
      %1793 = vmatpush2.bf16.msra.mxu0 0
      %1794 = vmatprep.subr.bf16.mxu0 0
      %1795 = vmatpush2.bf16.msra.mxu0 0
      %1796 = vmatprep.subr.bf16.mxu0 0
      %1797 = vmatpush2.bf16.msra.mxu0 0
      %1798 = vmatprep.mubr.bf16.mxu0 0
      %1799 = vmatmul.mubr.bf16.gmra.mxu0 %v1761
      %v1800 = vpop.f32.mrf.mxu0
      %v1801 = vadd.f32 0.0, %v1800
      %v1802 = vpop.f32.mrf.mxu0
      %v1803 = vpop.f32.mrf.mxu0
      %v1804 = vpop.f32.mrf.mxu0
      %1805 = vdwg.mxu0
      %v1806 = vadd.f32 %v1736, %v1801
      %s1807 = scalar_lea.vmem %s620, 140
      %v1808 = vld [vmem:[%s1807] sm:$0xf]
      %v1809 = vld [vmem:[%s1807 + $0x4] sm:$0xf]
      %v1810 = vld [vmem:[%s1807 + $0x8] sm:$0xf]
      %v1811 = vld [vmem:[%s1807 + $0xc] sm:$0xf]
      %v1812 = vld [vmem:[%s1807 + $0x10] sm:$0xf]
      %v1815 = vunpack.c.l.b16 %v1737
      %v1816 = vunpack.c.l.b16 %v1738
      %v1817 = vpack.c.b16 %v1816, %v1815
      %v1819 = vshrl.u32 %v1817, 16
      %v1821 = vshll.u32 %v1817, 16
      %v1823 = vrot.slane %v1821, 1
      %v1824 = vor.u32 %v1819, %v1823
      %v1830 = vunpack.c.l.b16 %v1808
      %v1831 = vunpack.c.l.b16 %v1809
      %v1832 = vunpack.c.l.b16 %v1810
      %v1833 = vunpack.c.l.b16 %v1811
      %v1834 = vunpack.c.l.b16 %v1812
      %v1835 = vpack.c.b16 %v1831, %v1830
      %v1836 = vpack.c.b16 %v1833, %v1832
      %v1837 = vpack.c.b16 %v1834, %v1834
      %v1841 = vsel %vm684, %v1824, 0
      %v1844 = vsel %vm688, %v1837, 0
      %1846 = vmatprep.subr.bf16.mxu0 0
      %1847 = vmatpush1.bf16.msra.mxu0 0
      %1848 = vmatprep.subr.bf16.mxu0 0
      %1849 = vmatpush1.bf16.msra.mxu0 0
      %1850 = vmatprep.subr.bf16.mxu0 0
      %1851 = vmatpush1.bf16.msra.mxu0 0
      %1852 = vmatprep.subr.bf16.mxu0 0
      %1853 = vmatpush1.bf16.msra.mxu0 0
      %1854 = vmatprep.subr.bf16.mxu0 0
      %1855 = vmatpush1.bf16.msra.mxu0 0
      %1856 = vmatprep.subr.bf16.mxu0 0
      %1857 = vmatpush1.bf16.msra.mxu0 %v1844
      %1858 = vmatprep.subr.bf16.mxu0 0
      %1859 = vmatpush1.bf16.msra.mxu0 %v1836
      %1860 = vmatprep.subr.bf16.mxu0 0
      %1861 = vmatpush1.bf16.msra.mxu0 %v1835
      %1862 = vmatprep.subr.bf16.mxu0 0
      %1863 = vmatpush2.bf16.msra.mxu0 0
      %1864 = vmatprep.subr.bf16.mxu0 0
      %1865 = vmatpush2.bf16.msra.mxu0 0
      %1866 = vmatprep.subr.bf16.mxu0 0
      %1867 = vmatpush2.bf16.msra.mxu0 0
      %1868 = vmatprep.subr.bf16.mxu0 0
      %1869 = vmatpush2.bf16.msra.mxu0 0
      %1870 = vmatprep.subr.bf16.mxu0 0
      %1871 = vmatpush2.bf16.msra.mxu0 0
      %1872 = vmatprep.subr.bf16.mxu0 0
      %1873 = vmatpush2.bf16.msra.mxu0 0
      %1874 = vmatprep.subr.bf16.mxu0 0
      %1875 = vmatpush2.bf16.msra.mxu0 0
      %1876 = vmatprep.subr.bf16.mxu0 0
      %1877 = vmatpush2.bf16.msra.mxu0 0
      %1878 = vmatprep.mubr.bf16.mxu0 0
      %1879 = vmatmul.mubr.bf16.gmra.mxu0 %v1841
      %v1880 = vpop.f32.mrf.mxu0
      %v1881 = vadd.f32 0.0, %v1880
      %v1882 = vpop.f32.mrf.mxu0
      %v1883 = vpop.f32.mrf.mxu0
      %v1884 = vpop.f32.mrf.mxu0
      %1885 = vdwg.mxu0
      %v1886 = vadd.f32 %v1806, %v1881
      %s1887 = scalar_lea.vmem %s620, 160
      %v1888 = vld [vmem:[%s1887] sm:$0xf]
      %v1889 = vld [vmem:[%s1887 + $0x4] sm:$0xf]
      %v1890 = vld [vmem:[%s1887 + $0x8] sm:$0xf]
      %v1891 = vld [vmem:[%s1887 + $0xc] sm:$0xf]
      %v1892 = vld [vmem:[%s1887 + $0x10] sm:$0xf]
      %v1893 = vrot.slane %v1817, 1
      %v1899 = vunpack.c.l.b16 %v1888
      %v1900 = vunpack.c.l.b16 %v1889
      %v1901 = vunpack.c.l.b16 %v1890
      %v1902 = vunpack.c.l.b16 %v1891
      %v1903 = vunpack.c.l.b16 %v1892
      %v1904 = vpack.c.b16 %v1900, %v1899
      %v1905 = vpack.c.b16 %v1902, %v1901
      %v1906 = vpack.c.b16 %v1903, %v1903
      %v1910 = vsel %vm684, %v1893, 0
      %v1913 = vsel %vm688, %v1906, 0
      %1915 = vmatprep.subr.bf16.mxu0 0
      %1916 = vmatpush1.bf16.msra.mxu0 0
      %1917 = vmatprep.subr.bf16.mxu0 0
      %1918 = vmatpush1.bf16.msra.mxu0 0
      %1919 = vmatprep.subr.bf16.mxu0 0
      %1920 = vmatpush1.bf16.msra.mxu0 0
      %1921 = vmatprep.subr.bf16.mxu0 0
      %1922 = vmatpush1.bf16.msra.mxu0 0
      %1923 = vmatprep.subr.bf16.mxu0 0
      %1924 = vmatpush1.bf16.msra.mxu0 0
      %1925 = vmatprep.subr.bf16.mxu0 0
      %1926 = vmatpush1.bf16.msra.mxu0 %v1913
      %1927 = vmatprep.subr.bf16.mxu0 0
      %1928 = vmatpush1.bf16.msra.mxu0 %v1905
      %1929 = vmatprep.subr.bf16.mxu0 0
      %1930 = vmatpush1.bf16.msra.mxu0 %v1904
      %1931 = vmatprep.subr.bf16.mxu0 0
      %1932 = vmatpush2.bf16.msra.mxu0 0
      %1933 = vmatprep.subr.bf16.mxu0 0
      %1934 = vmatpush2.bf16.msra.mxu0 0
      %1935 = vmatprep.subr.bf16.mxu0 0
      %1936 = vmatpush2.bf16.msra.mxu0 0
      %1937 = vmatprep.subr.bf16.mxu0 0
      %1938 = vmatpush2.bf16.msra.mxu0 0
      %1939 = vmatprep.subr.bf16.mxu0 0
      %1940 = vmatpush2.bf16.msra.mxu0 0
      %1941 = vmatprep.subr.bf16.mxu0 0
      %1942 = vmatpush2.bf16.msra.mxu0 0
      %1943 = vmatprep.subr.bf16.mxu0 0
      %1944 = vmatpush2.bf16.msra.mxu0 0
      %1945 = vmatprep.subr.bf16.mxu0 0
      %1946 = vmatpush2.bf16.msra.mxu0 0
      %1947 = vmatprep.mubr.bf16.mxu0 0
      %1948 = vmatmul.mubr.bf16.gmra.mxu0 %v1910
      %v1949 = vpop.f32.mrf.mxu0
      %v1950 = vadd.f32 0.0, %v1949
      %v1951 = vpop.f32.mrf.mxu0
      %v1952 = vpop.f32.mrf.mxu0
      %v1953 = vpop.f32.mrf.mxu0
      %1954 = vdwg.mxu0
      %v1955 = vadd.f32 %v1886, %v1950
      %v1956 = vpack.c.bf16 %v1955, %v1955
      %vm1957 = vcmask 257024
      %1958 = vst.msk [vmem:[%s631] sm:$0xf] %vm1957, %v1956
      %vm1959 = vcmask 261120
      %v1960 = vsel %vm1959, %v1955, 0.0
      %v1961 = vrot.slane %v1960, 4
      %v1962 = vadd.f32 %v1960, %v1961
      %v1963 = vrot.slane %v1962, 2
      %v1964 = vadd.f32 %v1962, %v1963
      %v1965 = vrot.slane %v1964, 1
      %v1966 = vadd.f32 %v1964, %v1965
      %v1967 = vmul.f32 %v1955, %v1955
      %v1968 = vsel %vm1959, %v1967, 0.0
      %v1969 = vrot.slane %v1968, 4
      %v1970 = vadd.f32 %v1968, %v1969
      %v1971 = vrot.slane %v1970, 2
      %v1972 = vadd.f32 %v1970, %v1971
      %v1973 = vrot.slane %v1972, 1
      %v1974 = vadd.f32 %v1972, %v1973
      %vm1975 = vcmask 1040384
      %v1976 = vsel %vm1975, %v1966, %v1974
      %vm1977 = vcmask 254976
      %1978 = vst.msk [vmem:[%s642] sm:$0x3] %vm1977, %v1976
      %p1979 = scmp.lt.s32.totalorder %s26, 1
      %s1980 = scalar_select %p1979, %s26, 1
      %p1981 = scmp.lt.s32.totalorder %s27, 7
      %s1982 = scalar_select %p1981, %s27, 7
      %p1983 = scmp.lt.s32.totalorder %s28, 0
      %s1984 = scalar_select %p1983, %s28, 0
      %s1985 = sadd.s32 %s1984, %s1982
      %s1986 = smul.addr %s1980, 8
      %s1987 = sadd.s32 %s1985, %s1986
      %s1988 = smul.addr %s1987, 4
      %s1989 = scalar_lea.vmem %s8, %s1988
      %p1990 = scmp.lt.s32.totalorder %s26, 1
      %s1991 = scalar_select %p1990, %s26, 1
      %p1992 = scmp.lt.s32.totalorder %s27, 7
      %s1993 = scalar_select %p1992, %s27, 7
      %p1994 = scmp.lt.s32.totalorder %s28, 0
      %s1995 = scalar_select %p1994, %s28, 0
      %s1996 = sadd.s32 %s1995, %s1993
      %s1997 = smul.addr %s1991, 8
      %s1998 = sadd.s32 %s1996, %s1997
      %s1999 = smul.addr %s1998, 2
      %s2000 = scalar_lea.vmem %s9, %s1999
      // Predicated region
      $region53: #{expansion_block_forward.8} parent=51 // pred_check
        %p2001 = pneg %p290
      $region54: #{expansion_block_forward.8} parent=51 // pred_check_branch
        %2003 = sbr.rel (%p2001) target = $region56
      $region55: #{expansion_block_forward.8} parent=51 // pred_region
        _
      $region56: #{expansion_block_forward.8} parent=51 // pred_fallthru
        _
      // Predicated region
      $region57: #{expansion_block_forward.8} parent=51 // pred_check
        %p2004 = pneg %p320
      $region58: #{expansion_block_forward.8} parent=51 // pred_check_branch
        %2006 = sbr.rel (%p2004) target = $region60
      $region59: #{expansion_block_forward.8} parent=51 // pred_region
        _
      $region60: #{expansion_block_forward.8} parent=51 // pred_fallthru
        _
    $region52: #{expansion_block_forward.8} parent=5 // pred_fallthru
      _
    %p2007 = scmp.le.s32.totalorder 2, %s16
    // Predicated region
    $region61: #{expansion_block_forward.8} parent=5 // pred_check
      %p2008 = pneg %p2007
    $region62: #{expansion_block_forward.8} parent=5 // pred_check_branch
      %2010 = sbr.rel (%p2008) target = $region64
    $region63: #{expansion_block_forward.8} parent=5 // pred_region
      %s2011 = ssub.s32 %s16, 2
      // Predicated region
      $region65: #{expansion_block_forward.8} parent=63 // pred_check
        %p2012 = pneg %p296
      $region66: #{expansion_block_forward.8} parent=63 // pred_check_branch
        %2014 = sbr.rel (%p2012) target = $region68
      $region67: #{expansion_block_forward.8} parent=63 // pred_region
        %p2015 = scmp.lt.s32.totalorder %s29, 1
        %s2016 = scalar_select %p2015, %s29, 1
        %p2017 = scmp.lt.s32.totalorder %s30, 7
        %s2018 = scalar_select %p2017, %s30, 7
        %p2019 = scmp.lt.s32.totalorder %s31, 0
        %s2020 = scalar_select %p2019, %s31, 0
        %s2021 = sadd.s32 %s2020, %s2018
        %s2022 = smul.addr %s2016, 8
        %s2023 = sadd.s32 %s2021, %s2022
        %s2024 = smul.addr %s2023, 4
        %s2025 = scalar_lea.vmem %s8, %s2024
      $region68: #{expansion_block_forward.8} parent=63 // pred_fallthru
        _
      // Predicated region
      $region69: #{expansion_block_forward.8} parent=63 // pred_check
        %p2026 = pneg %p326
      $region70: #{expansion_block_forward.8} parent=63 // pred_check_branch
        %2028 = sbr.rel (%p2026) target = $region72
      $region71: #{expansion_block_forward.8} parent=63 // pred_region
        %p2029 = scmp.lt.s32.totalorder %s29, 1
        %s2030 = scalar_select %p2029, %s29, 1
        %p2031 = scmp.lt.s32.totalorder %s30, 7
        %s2032 = scalar_select %p2031, %s30, 7
        %p2033 = scmp.lt.s32.totalorder %s31, 0
        %s2034 = scalar_select %p2033, %s31, 0
        %s2035 = sadd.s32 %s2034, %s2032
        %s2036 = smul.addr %s2030, 8
        %s2037 = sadd.s32 %s2035, %s2036
        %s2038 = smul.addr %s2037, 2
        %s2039 = scalar_lea.vmem %s9, %s2038
      $region72: #{expansion_block_forward.8} parent=63 // pred_fallthru
        _
    $region64: #{expansion_block_forward.8} parent=5 // pred_fallthru
      _
  $region6: #{expansion_block_forward.8} parent=0 // loop_footer
    %s20 = sadd.s32 1, %s16
  $region7: #{expansion_block_forward.8} parent=0 // loop_footer_branch
    %15 = sbr.rel target = $region3
  $region8: #{expansion_block_forward.8} parent=0 // loop_exit
    _

// kernel: expansion_block_forward.10
$region0: #{expansion_block_forward.10}
  #allocation0 [shape = 'u32[]', space=smem, size = 0x4, offset = 0x4, fixed_abs, tag = 'smem constant byte address 0x4 - core index']
  #allocation1 [shape = 'u32[144,128]{1,0:T(1,128)}', space=vmem, size = 0x12000, scoped, tag = 'internal scratch']
  %s0 = inlined_call_operand.vmem [shape: bf16[2,10,10,40], index: 0, kind: input, shape index: {}, may-alias: {0,1,2}]
  %s1 = inlined_call_operand.vmem [shape: bf16[2,10,10,40], index: 1, kind: input, shape index: {}, may-alias: {0,1,2}]
  %s2 = inlined_call_operand.vmem [shape: bf16[2,10,10,40], index: 2, kind: input, shape index: {}, may-alias: {0,1,2}]
  %s3 = inlined_call_operand.vmem [shape: bf16[3,3,40,32], index: 3, kind: input, shape index: {}]
  %s4 = inlined_call_operand.vmem [shape: bf16[2,8,8,32], index: 4, kind: output, shape index: {0}]
  %s5 = inlined_call_operand.vmem [shape: f32[2,8,2,32], index: 5, kind: output, shape index: {1}]
  %6 = xla_tuple %s4, %s5
  %s7 = sld [smem:[#allocation0]]
  $region57: #{expansion_block_forward.10} parent=0
    _
  %s9 = ssub.s32 1, %s7
  %s10 = scalar_select 0, %s9, %s7
  loop: start=0, step=1, limit=18
  $region2: #{expansion_block_forward.10} parent=0 // loop_pre_header
    _
  $region3: #{expansion_block_forward.10} parent=0 // loop_header
    %s12 = sphi 0, %s16
    %p13 = scmp.ge.s32.totalorder %s12, 18
    %s19 = sphi 0, %s38
    %s20 = sphi 0, %s34
    %s21 = sphi 0, %s30
    %s22 = sphi 0, %s19
    %s23 = sphi 0, %s20
    %s24 = sphi 0, %s21
    %s25 = sphi 0, %s22
    %s26 = sphi 0, %s23
    %s27 = sphi 0, %s24
    %s43 = sphi 0, %s45
    %s46 = sphi 0, %s43
    %s47 = sphi 0, %s46
    %s63 = sphi 0, %s47
    %s73 = sphi 0, %s75
    %s76 = sphi 0, %s73
    %s77 = sphi 0, %s76
    %s93 = sphi 0, %s77
    %s103 = sphi 0, %s105
    %s106 = sphi 0, %s103
    %s107 = sphi 0, %s106
    %s123 = sphi 0, %s107
    %s129 = sphi 0, %s131
    %s132 = sphi 0, %s129
    %s133 = sphi 0, %s132
    %s149 = sphi 0, %s133
    %s159 = sphi 0, %s161
    %s162 = sphi 0, %s159
    %s163 = sphi 0, %s162
    %s179 = sphi 0, %s163
    %s189 = sphi 0, %s191
    %s192 = sphi 0, %s189
    %s193 = sphi 0, %s192
    %s209 = sphi 0, %s193
  $region4: #{expansion_block_forward.10} parent=0 // loop_header_branch
    %15 = sbr.rel (%p13) target = $region8
  $region5: #{expansion_block_forward.10} parent=0 // loop_body
    %s17 = ssub.s32 %s12, 1
    %s18 = ssub.s32 %s12, 2
    %s28 = sadd.s32 1, %s21
    %p29 = scmp.ge.s32.totalorder %s28, 1
    %s30 = scalar_select %p29, 0, %s28
    %s31 = sadd.s32 1, %s20
    %s32 = scalar_select %p29, %s31, %s20
    %p33 = scmp.ge.s32.totalorder %s32, 8
    %s34 = scalar_select %p33, 0, %s32
    %s35 = sadd.s32 1, %s19
    %s36 = scalar_select %p33, %s35, %s19
    %p37 = scmp.ge.s32.totalorder %s36, 2
    %s38 = scalar_select %p37, 0, %s36
    %s39 = ssub.s32 %s19, %s38
    %s40 = ssub.s32 %s20, %s34
    %s41 = sor.u32 %s39, %s40
    %p42 = scmp.eq.s32.totalorder %s41, 0
    %s44 = sadd.s32 %s43, 1
    %s45 = scalar_select %p42, %s43, %s44
    %p48 = pneg %p42
    %p49 = scmp.eq.s32.totalorder %s12, 15
    %p50 = por %p48, %p49
    %p51 = scmp.ne.s32.totalorder %s43, %s46
    %p52 = scmp.eq.s32.totalorder %s12, 0
    %p53 = por %p51, %p52
    %p54 = scmp.ne.s32.totalorder %s43, %s46
    %p55 = scmp.eq.s32.totalorder %s17, 15
    %p56 = por %p54, %p55
    %p57 = scmp.ne.s32.totalorder %s46, %s47
    %p58 = scmp.eq.s32.totalorder %s17, 0
    %p59 = por %p57, %p58
    %p60 = scmp.ne.s32.totalorder %s46, %s47
    %p61 = scmp.eq.s32.totalorder %s18, 15
    %p62 = por %p60, %p61
    %p64 = scmp.ne.s32.totalorder %s47, %s63
    %p65 = scmp.eq.s32.totalorder %s18, 0
    %p66 = por %p64, %p65
    %s67 = sadd.s32 %s20, 1
    %s68 = sadd.s32 %s34, 1
    %s69 = ssub.s32 %s19, %s38
    %s70 = ssub.s32 %s67, %s68
    %s71 = sor.u32 %s69, %s70
    %p72 = scmp.eq.s32.totalorder %s71, 0
    %s74 = sadd.s32 %s73, 1
    %s75 = scalar_select %p72, %s73, %s74
    %p78 = pneg %p72
    %p79 = scmp.eq.s32.totalorder %s12, 15
    %p80 = por %p78, %p79
    %p81 = scmp.ne.s32.totalorder %s73, %s76
    %p82 = scmp.eq.s32.totalorder %s12, 0
    %p83 = por %p81, %p82
    %p84 = scmp.ne.s32.totalorder %s73, %s76
    %p85 = scmp.eq.s32.totalorder %s17, 15
    %p86 = por %p84, %p85
    %p87 = scmp.ne.s32.totalorder %s76, %s77
    %p88 = scmp.eq.s32.totalorder %s17, 0
    %p89 = por %p87, %p88
    %p90 = scmp.ne.s32.totalorder %s76, %s77
    %p91 = scmp.eq.s32.totalorder %s18, 15
    %p92 = por %p90, %p91
    %p94 = scmp.ne.s32.totalorder %s77, %s93
    %p95 = scmp.eq.s32.totalorder %s18, 0
    %p96 = por %p94, %p95
    %s97 = sadd.s32 %s20, 2
    %s98 = sadd.s32 %s34, 2
    %s99 = ssub.s32 %s19, %s38
    %s100 = ssub.s32 %s97, %s98
    %s101 = sor.u32 %s99, %s100
    %p102 = scmp.eq.s32.totalorder %s101, 0
    %s104 = sadd.s32 %s103, 1
    %s105 = scalar_select %p102, %s103, %s104
    %p108 = pneg %p102
    %p109 = scmp.eq.s32.totalorder %s12, 15
    %p110 = por %p108, %p109
    %p111 = scmp.ne.s32.totalorder %s103, %s106
    %p112 = scmp.eq.s32.totalorder %s12, 0
    %p113 = por %p111, %p112
    %p114 = scmp.ne.s32.totalorder %s103, %s106
    %p115 = scmp.eq.s32.totalorder %s17, 15
    %p116 = por %p114, %p115
    %p117 = scmp.ne.s32.totalorder %s106, %s107
    %p118 = scmp.eq.s32.totalorder %s17, 0
    %p119 = por %p117, %p118
    %p120 = scmp.ne.s32.totalorder %s106, %s107
    %p121 = scmp.eq.s32.totalorder %s18, 15
    %p122 = por %p120, %p121
    %p124 = scmp.ne.s32.totalorder %s107, %s123
    %p125 = scmp.eq.s32.totalorder %s18, 0
    %p126 = por %p124, %p125
    %s127 = ssub.s32 %s21, %s30
    %p128 = scmp.eq.s32.totalorder %s127, 0
    %s130 = sadd.s32 %s129, 1
    %s131 = scalar_select %p128, %s129, %s130
    %p134 = pneg %p128
    %p135 = scmp.eq.s32.totalorder %s12, 15
    %p136 = por %p134, %p135
    %p137 = scmp.ne.s32.totalorder %s129, %s132
    %p138 = scmp.eq.s32.totalorder %s12, 0
    %p139 = por %p137, %p138
    %p140 = scmp.ne.s32.totalorder %s129, %s132
    %p141 = scmp.eq.s32.totalorder %s17, 15
    %p142 = por %p140, %p141
    %p143 = scmp.ne.s32.totalorder %s132, %s133
    %p144 = scmp.eq.s32.totalorder %s17, 0
    %p145 = por %p143, %p144
    %p146 = scmp.ne.s32.totalorder %s132, %s133
    %p147 = scmp.eq.s32.totalorder %s18, 15
    %p148 = por %p146, %p147
    %p150 = scmp.ne.s32.totalorder %s133, %s149
    %p151 = scmp.eq.s32.totalorder %s18, 0
    %p152 = por %p150, %p151
    %s153 = ssub.s32 %s19, %s38
    %s154 = ssub.s32 %s20, %s34
    %s155 = sor.u32 %s153, %s154
    %s156 = ssub.s32 %s21, %s30
    %s157 = sor.u32 %s155, %s156
    %p158 = scmp.eq.s32.totalorder %s157, 0
    %s160 = sadd.s32 %s159, 1
    %s161 = scalar_select %p158, %s159, %s160
    %p164 = pneg %p158
    %p165 = scmp.eq.s32.totalorder %s12, 15
    %p166 = por %p164, %p165
    %p167 = scmp.ne.s32.totalorder %s159, %s162
    %p168 = scmp.eq.s32.totalorder %s12, 0
    %p169 = por %p167, %p168
    %p170 = scmp.ne.s32.totalorder %s159, %s162
    %p171 = scmp.eq.s32.totalorder %s17, 15
    %p172 = por %p170, %p171
    %p173 = scmp.ne.s32.totalorder %s162, %s163
    %p174 = scmp.eq.s32.totalorder %s17, 0
    %p175 = por %p173, %p174
    %p176 = scmp.ne.s32.totalorder %s162, %s163
    %p177 = scmp.eq.s32.totalorder %s18, 15
    %p178 = por %p176, %p177
    %p180 = scmp.ne.s32.totalorder %s163, %s179
    %p181 = scmp.eq.s32.totalorder %s18, 0
    %p182 = por %p180, %p181
    %s183 = ssub.s32 %s19, %s38
    %s184 = ssub.s32 %s20, %s34
    %s185 = sor.u32 %s183, %s184
    %s186 = ssub.s32 %s21, %s30
    %s187 = sor.u32 %s185, %s186
    %p188 = scmp.eq.s32.totalorder %s187, 0
    %s190 = sadd.s32 %s189, 1
    %s191 = scalar_select %p188, %s189, %s190
    %p194 = pneg %p188
    %p195 = scmp.eq.s32.totalorder %s12, 15
    %p196 = por %p194, %p195
    %p197 = scmp.ne.s32.totalorder %s189, %s192
    %p198 = scmp.eq.s32.totalorder %s12, 0
    %p199 = por %p197, %p198
    %p200 = scmp.ne.s32.totalorder %s189, %s192
    %p201 = scmp.eq.s32.totalorder %s17, 15
    %p202 = por %p200, %p201
    %p203 = scmp.ne.s32.totalorder %s192, %s193
    %p204 = scmp.eq.s32.totalorder %s17, 0
    %p205 = por %p203, %p204
    %p206 = scmp.ne.s32.totalorder %s192, %s193
    %p207 = scmp.eq.s32.totalorder %s18, 15
    %p208 = por %p206, %p207
    %p210 = scmp.ne.s32.totalorder %s193, %s209
    %p211 = scmp.eq.s32.totalorder %s18, 0
    %p212 = por %p210, %p211
    %p213 = scmp.le.s32.totalorder 1, %s12
    %p214 = scmp.lt.s32.totalorder %s12, 17
    %p215 = pnand %p213, %p214
    %p216 = pneg %p215
    // Predicated region
    $region9: #{expansion_block_forward.10} parent=5 // pred_check
      _
    $region10: #{expansion_block_forward.10} parent=5 // pred_check_branch
      %218 = sbr.rel (%p215) target = $region12
    $region11: #{expansion_block_forward.10} parent=5 // pred_region
      %s219 = ssub.s32 %s12, 1
      // Predicated region
      $region13: #{expansion_block_forward.10} parent=11 // pred_check
        %p220 = pneg %p145
      $region14: #{expansion_block_forward.10} parent=11 // pred_check_branch
        %222 = sbr.rel (%p220) target = $region16
      $region15: #{expansion_block_forward.10} parent=11 // pred_region
        %p223 = scmp.lt.s32.totalorder %s24, 0
        %s224 = scalar_select %p223, %s24, 0
        %s225 = smul.addr %s224, 4
        %s226 = scalar_lea.vmem %s3, %s225
      $region16: #{expansion_block_forward.10} parent=11 // pred_fallthru
        _
    $region12: #{expansion_block_forward.10} parent=5 // pred_fallthru
      _
    %p227 = scmp.lt.s32.totalorder %s12, 16
    // Predicated region
    $region17: #{expansion_block_forward.10} parent=5 // pred_check
      %p228 = pneg %p227
    $region18: #{expansion_block_forward.10} parent=5 // pred_check_branch
      %230 = sbr.rel (%p228) target = $region20
    $region19: #{expansion_block_forward.10} parent=5 // pred_region
      // Predicated region
      $region21: #{expansion_block_forward.10} parent=19 // pred_check
        %p231 = pneg %p53
      $region22: #{expansion_block_forward.10} parent=19 // pred_check_branch
        %233 = sbr.rel (%p231) target = $region24
      $region23: #{expansion_block_forward.10} parent=19 // pred_region
        %p234 = scmp.lt.s32.totalorder %s19, 1
        %s235 = scalar_select %p234, %s19, 1
        %p236 = scmp.lt.s32.totalorder %s20, 9
        %s237 = scalar_select %p236, %s20, 9
        %s238 = smul.addr %s237, 2
        %s239 = smul.addr %s235, 20
        %s240 = sadd.s32 %s238, %s239
        %s241 = smul.addr %s240, 4
        %s242 = scalar_lea.vmem %s0, %s241
      $region24: #{expansion_block_forward.10} parent=19 // pred_fallthru
        _
      // Predicated region
      $region25: #{expansion_block_forward.10} parent=19 // pred_check
        %p243 = pneg %p83
      $region26: #{expansion_block_forward.10} parent=19 // pred_check_branch
        %245 = sbr.rel (%p243) target = $region28
      $region27: #{expansion_block_forward.10} parent=19 // pred_region
        %s246 = sadd.s32 %s20, 1
        %p247 = scmp.lt.s32.totalorder %s19, 1
        %s248 = scalar_select %p247, %s19, 1
        %p249 = scmp.lt.s32.totalorder %s246, 9
        %s250 = scalar_select %p249, %s246, 9
        %s251 = smul.addr %s250, 2
        %s252 = smul.addr %s248, 20
        %s253 = sadd.s32 %s251, %s252
        %s254 = smul.addr %s253, 4
        %s255 = scalar_lea.vmem %s1, %s254
        %s256 = sadd.s32 %s20, 1
      $region28: #{expansion_block_forward.10} parent=19 // pred_fallthru
        _
      // Predicated region
      $region29: #{expansion_block_forward.10} parent=19 // pred_check
        %p257 = pneg %p113
      $region30: #{expansion_block_forward.10} parent=19 // pred_check_branch
        %259 = sbr.rel (%p257) target = $region32
      $region31: #{expansion_block_forward.10} parent=19 // pred_region
        %s260 = sadd.s32 %s20, 2
        %p261 = scmp.lt.s32.totalorder %s19, 1
        %s262 = scalar_select %p261, %s19, 1
        %p263 = scmp.lt.s32.totalorder %s260, 9
        %s264 = scalar_select %p263, %s260, 9
        %s265 = smul.addr %s264, 2
        %s266 = smul.addr %s262, 20
        %s267 = sadd.s32 %s265, %s266
        %s268 = smul.addr %s267, 4
        %s269 = scalar_lea.vmem %s2, %s268
        %s270 = sadd.s32 %s20, 2
      $region32: #{expansion_block_forward.10} parent=19 // pred_fallthru
        _
    $region20: #{expansion_block_forward.10} parent=5 // pred_fallthru
      _
    %p271 = scmp.le.s32.totalorder 1, %s12
    %p272 = scmp.lt.s32.totalorder %s12, 17
    %p273 = pnand %p271, %p272
    %p274 = pneg %p273
    // Predicated region
    $region33: #{expansion_block_forward.10} parent=5 // pred_check
      _
    $region34: #{expansion_block_forward.10} parent=5 // pred_check_branch
      %276 = sbr.rel (%p273) target = $region36
    $region35: #{expansion_block_forward.10} parent=5 // pred_region
      %s277 = ssub.s32 %s12, 1
      %p278 = scmp.lt.s32.totalorder %s22, 1
      %s279 = scalar_select %p278, %s22, 1
      %p280 = scmp.lt.s32.totalorder %s23, 9
      %s281 = scalar_select %p280, %s23, 9
      %s282 = smul.addr %s281, 2
      %s283 = smul.addr %s279, 20
      %s284 = sadd.s32 %s282, %s283
      %s285 = smul.addr %s284, 4
      %s286 = scalar_lea.vmem %s0, %s285
      %p287 = pneg %p59
      %p288 = pneg %p56
      %s289 = sadd.s32 %s23, 1
      %p290 = scmp.lt.s32.totalorder %s22, 1
      %s291 = scalar_select %p290, %s22, 1
      %p292 = scmp.lt.s32.totalorder %s289, 9
      %s293 = scalar_select %p292, %s289, 9
      %s294 = smul.addr %s293, 2
      %s295 = smul.addr %s291, 20
      %s296 = sadd.s32 %s294, %s295
      %s297 = smul.addr %s296, 4
      %s298 = scalar_lea.vmem %s1, %s297
      %p299 = pneg %p89
      %p300 = pneg %p86
      %s301 = sadd.s32 %s23, 2
      %p302 = scmp.lt.s32.totalorder %s22, 1
      %s303 = scalar_select %p302, %s22, 1
      %p304 = scmp.lt.s32.totalorder %s301, 9
      %s305 = scalar_select %p304, %s301, 9
      %s306 = smul.addr %s305, 2
      %s307 = smul.addr %s303, 20
      %s308 = sadd.s32 %s306, %s307
      %s309 = smul.addr %s308, 4
      %s310 = scalar_lea.vmem %s2, %s309
      %p311 = pneg %p119
      %p312 = pneg %p116
      %p313 = scmp.lt.s32.totalorder %s24, 0
      %s314 = scalar_select %p313, %s24, 0
      %s315 = smul.addr %s314, 4
      %s316 = scalar_lea.vmem %s3, %s315
      %p317 = pneg %p145
      %p318 = pneg %p142
      %p319 = pneg %p175
      %p320 = pneg %p172
      %p321 = scmp.lt.s32.totalorder %s22, 1
      %s322 = scalar_select %p321, %s22, 1
      %p323 = scmp.lt.s32.totalorder %s23, 7
      %s324 = scalar_select %p323, %s23, 7
      %p325 = scmp.lt.s32.totalorder %s24, 0
      %s326 = scalar_select %p325, %s24, 0
      %s327 = sadd.s32 %s326, %s324
      %s328 = smul.addr %s322, 8
      %s329 = sadd.s32 %s327, %s328
      %s330 = smul.addr %s329, 4
      %s331 = scalar_lea.vmem %s4, %s330
      %p332 = pneg %p205
      %p333 = pneg %p202
      %p334 = scmp.lt.s32.totalorder %s22, 1
      %s335 = scalar_select %p334, %s22, 1
      %p336 = scmp.lt.s32.totalorder %s23, 7
      %s337 = scalar_select %p336, %s23, 7
      %p338 = scmp.lt.s32.totalorder %s24, 0
      %s339 = scalar_select %p338, %s24, 0
      %s340 = sadd.s32 %s339, %s337
      %s341 = smul.addr %s335, 8
      %s342 = sadd.s32 %s340, %s341
      %s343 = smul.addr %s342, 2
      %s344 = scalar_lea.vmem %s5, %s343
      %p345 = scmp.lt.s32.totalorder %s22, 1
      %s346 = scalar_select %p345, %s22, 1
      %p347 = scmp.lt.s32.totalorder %s23, 9
      %s348 = scalar_select %p347, %s23, 9
      %s349 = smul.addr %s348, 2
      %s350 = smul.addr %s346, 20
      %s351 = sadd.s32 %s349, %s350
      %s352 = smul.addr %s351, 4
      %s353 = scalar_lea.vmem %s0, %s352
      %s354 = sadd.s32 %s23, 1
      %p355 = scmp.lt.s32.totalorder %s22, 1
      %s356 = scalar_select %p355, %s22, 1
      %p357 = scmp.lt.s32.totalorder %s354, 9
      %s358 = scalar_select %p357, %s354, 9
      %s359 = smul.addr %s358, 2
      %s360 = smul.addr %s356, 20
      %s361 = sadd.s32 %s359, %s360
      %s362 = smul.addr %s361, 4
      %s363 = scalar_lea.vmem %s1, %s362
      %s364 = sadd.s32 %s23, 1
      %s365 = sadd.s32 %s23, 2
      %p366 = scmp.lt.s32.totalorder %s22, 1
      %s367 = scalar_select %p366, %s22, 1
      %p368 = scmp.lt.s32.totalorder %s365, 9
      %s369 = scalar_select %p368, %s365, 9
      %s370 = smul.addr %s369, 2
      %s371 = smul.addr %s367, 20
      %s372 = sadd.s32 %s370, %s371
      %s373 = smul.addr %s372, 4
      %s374 = scalar_lea.vmem %s2, %s373
      %s375 = sadd.s32 %s23, 2
      %p376 = scmp.lt.s32.totalorder %s24, 0
      %s377 = scalar_select %p376, %s24, 0
      %s378 = smul.addr %s377, 4
      %s379 = scalar_lea.vmem %s3, %s378
      %p380 = scmp.lt.s32.totalorder %s22, 1
      %s381 = scalar_select %p380, %s22, 1
      %p382 = scmp.lt.s32.totalorder %s23, 7
      %s383 = scalar_select %p382, %s23, 7
      %p384 = scmp.lt.s32.totalorder %s24, 0
      %s385 = scalar_select %p384, %s24, 0
      %s386 = sadd.s32 %s385, %s383
      %s387 = smul.addr %s381, 8
      %s388 = sadd.s32 %s386, %s387
      %s389 = smul.addr %s388, 4
      %s390 = scalar_lea.vmem %s4, %s389
      %p391 = scmp.lt.s32.totalorder %s22, 1
      %s392 = scalar_select %p391, %s22, 1
      %p393 = scmp.lt.s32.totalorder %s23, 7
      %s394 = scalar_select %p393, %s23, 7
      %p395 = scmp.lt.s32.totalorder %s24, 0
      %s396 = scalar_select %p395, %s24, 0
      %s397 = sadd.s32 %s396, %s394
      %s398 = smul.addr %s392, 8
      %s399 = sadd.s32 %s397, %s398
      %s400 = smul.addr %s399, 2
      %s401 = scalar_lea.vmem %s5, %s400
      %v403 = vld [vmem:[%s353] sm:$0xf]
      %v404 = vld [vmem:[%s353 + $0x4] sm:$0x1]
      %v405 = vld [vmem:[%s379] sm:$0xf]
      %v406 = vld [vmem:[%s379 + $0x4] sm:$0xf]
      %v407 = vld [vmem:[%s379 + $0x8] sm:$0xf]
      %v408 = vld [vmem:[%s379 + $0xc] sm:$0xf]
      %v409 = vld [vmem:[%s379 + $0x10] sm:$0xf]
      %s410 = scalar_lea.vmem %s379, 20
      %v411 = vld [vmem:[%s410] sm:$0xf]
      %v412 = vld [vmem:[%s410 + $0x4] sm:$0xf]
      %v413 = vld [vmem:[%s410 + $0x8] sm:$0xf]
      %v414 = vld [vmem:[%s410 + $0xc] sm:$0xf]
      %v415 = vld [vmem:[%s410 + $0x10] sm:$0xf]
      %v418 = vunpack.c.l.b16 %v403
      %v419 = vunpack.c.l.b16 %v404
      %v420 = vpack.c.b16 %v419, %v418
      %v422 = vshrl.u32 %v420, 16
      %v424 = vshll.u32 %v420, 16
      %v426 = vrot.slane %v424, 1
      %v427 = vor.u32 %v422, %v426
      %v433 = vunpack.c.l.b16 %v411
      %v434 = vunpack.c.l.b16 %v412
      %v435 = vunpack.c.l.b16 %v413
      %v436 = vunpack.c.l.b16 %v414
      %v437 = vunpack.c.l.b16 %v415
      %v438 = vpack.c.b16 %v434, %v433
      %v439 = vpack.c.b16 %v436, %v435
      %v440 = vpack.c.b16 %v437, %v437
      %vm443 = vcmask 326656
      %v445 = vsel %vm443, %v427, 0
      %vm447 = vcmask 1043456
      %v449 = vsel %vm447, %v440, 0
      %451 = vmatprep.subr.bf16.mxu0 0
      %452 = vmatpush1.bf16.msra.mxu0 0
      %453 = vmatprep.subr.bf16.mxu0 0
      %454 = vmatpush1.bf16.msra.mxu0 0
      %455 = vmatprep.subr.bf16.mxu0 0
      %456 = vmatpush1.bf16.msra.mxu0 0
      %457 = vmatprep.subr.bf16.mxu0 0
      %458 = vmatpush1.bf16.msra.mxu0 0
      %459 = vmatprep.subr.bf16.mxu0 0
      %460 = vmatpush1.bf16.msra.mxu0 0
      %461 = vmatprep.subr.bf16.mxu0 0
      %462 = vmatpush1.bf16.msra.mxu0 %v449
      %463 = vmatprep.subr.bf16.mxu0 0
      %464 = vmatpush1.bf16.msra.mxu0 %v439
      %465 = vmatprep.subr.bf16.mxu0 0
      %466 = vmatpush1.bf16.msra.mxu0 %v438
      %467 = vmatprep.subr.bf16.mxu0 0
      %468 = vmatpush2.bf16.msra.mxu0 0
      %469 = vmatprep.subr.bf16.mxu0 0
      %470 = vmatpush2.bf16.msra.mxu0 0
      %471 = vmatprep.subr.bf16.mxu0 0
      %472 = vmatpush2.bf16.msra.mxu0 0
      %473 = vmatprep.subr.bf16.mxu0 0
      %474 = vmatpush2.bf16.msra.mxu0 0
      %475 = vmatprep.subr.bf16.mxu0 0
      %476 = vmatpush2.bf16.msra.mxu0 0
      %477 = vmatprep.subr.bf16.mxu0 0
      %478 = vmatpush2.bf16.msra.mxu0 0
      %479 = vmatprep.subr.bf16.mxu0 0
      %480 = vmatpush2.bf16.msra.mxu0 0
      %481 = vmatprep.subr.bf16.mxu0 0
      %482 = vmatpush2.bf16.msra.mxu0 0
      %483 = vmatprep.mubr.bf16.mxu0 0
      %484 = vmatmul.mubr.bf16.gmra.mxu0 %v445
      %v485 = vpop.f32.mrf.mxu0
      %v486 = vadd.f32 0.0, %v485
      %v487 = vpop.f32.mrf.mxu0
      %v488 = vpop.f32.mrf.mxu0
      %v489 = vpop.f32.mrf.mxu0
      %490 = vdwg.mxu0
      %v496 = vunpack.c.l.b16 %v405
      %v497 = vunpack.c.l.b16 %v406
      %v498 = vunpack.c.l.b16 %v407
      %v499 = vunpack.c.l.b16 %v408
      %v500 = vunpack.c.l.b16 %v409
      %v501 = vpack.c.b16 %v497, %v496
      %v502 = vpack.c.b16 %v499, %v498
      %v503 = vpack.c.b16 %v500, %v500
      %v507 = vsel %vm443, %v403, 0
      %v510 = vsel %vm447, %v503, 0
      %512 = vmatprep.subr.bf16.mxu0 0
      %513 = vmatpush1.bf16.msra.mxu0 0
      %514 = vmatprep.subr.bf16.mxu0 0
      %515 = vmatpush1.bf16.msra.mxu0 0
      %516 = vmatprep.subr.bf16.mxu0 0
      %517 = vmatpush1.bf16.msra.mxu0 0
      %518 = vmatprep.subr.bf16.mxu0 0
      %519 = vmatpush1.bf16.msra.mxu0 0
      %520 = vmatprep.subr.bf16.mxu0 0
      %521 = vmatpush1.bf16.msra.mxu0 0
      %522 = vmatprep.subr.bf16.mxu0 0
      %523 = vmatpush1.bf16.msra.mxu0 %v510
      %524 = vmatprep.subr.bf16.mxu0 0
      %525 = vmatpush1.bf16.msra.mxu0 %v502
      %526 = vmatprep.subr.bf16.mxu0 0
      %527 = vmatpush1.bf16.msra.mxu0 %v501
      %528 = vmatprep.subr.bf16.mxu0 0
      %529 = vmatpush2.bf16.msra.mxu0 0
      %530 = vmatprep.subr.bf16.mxu0 0
      %531 = vmatpush2.bf16.msra.mxu0 0
      %532 = vmatprep.subr.bf16.mxu0 0
      %533 = vmatpush2.bf16.msra.mxu0 0
      %534 = vmatprep.subr.bf16.mxu0 0
      %535 = vmatpush2.bf16.msra.mxu0 0
      %536 = vmatprep.subr.bf16.mxu0 0
      %537 = vmatpush2.bf16.msra.mxu0 0
      %538 = vmatprep.subr.bf16.mxu0 0
      %539 = vmatpush2.bf16.msra.mxu0 0
      %540 = vmatprep.subr.bf16.mxu0 0
      %541 = vmatpush2.bf16.msra.mxu0 0
      %542 = vmatprep.subr.bf16.mxu0 0
      %543 = vmatpush2.bf16.msra.mxu0 0
      %544 = vmatprep.mubr.bf16.mxu0 0
      %545 = vmatmul.mubr.bf16.gmra.mxu0 %v507
      %v546 = vpop.f32.mrf.mxu0
      %v547 = vadd.f32 %v486, %v546
      %v548 = vpop.f32.mrf.mxu0
      %v549 = vpop.f32.mrf.mxu0
      %v550 = vpop.f32.mrf.mxu0
      %551 = vdwg.mxu0
      %s552 = scalar_lea.vmem %s379, 40
      %v553 = vld [vmem:[%s552] sm:$0xf]
      %v554 = vld [vmem:[%s552 + $0x4] sm:$0xf]
      %v555 = vld [vmem:[%s552 + $0x8] sm:$0xf]
      %v556 = vld [vmem:[%s552 + $0xc] sm:$0xf]
      %v557 = vld [vmem:[%s552 + $0x10] sm:$0xf]
      %v558 = vrot.slane %v420, 1
      %v564 = vunpack.c.l.b16 %v553
      %v565 = vunpack.c.l.b16 %v554
      %v566 = vunpack.c.l.b16 %v555
      %v567 = vunpack.c.l.b16 %v556
      %v568 = vunpack.c.l.b16 %v557
      %v569 = vpack.c.b16 %v565, %v564
      %v570 = vpack.c.b16 %v567, %v566
      %v571 = vpack.c.b16 %v568, %v568
      %v575 = vsel %vm443, %v558, 0
      %v578 = vsel %vm447, %v571, 0
      %580 = vmatprep.subr.bf16.mxu0 0
      %581 = vmatpush1.bf16.msra.mxu0 0
      %582 = vmatprep.subr.bf16.mxu0 0
      %583 = vmatpush1.bf16.msra.mxu0 0
      %584 = vmatprep.subr.bf16.mxu0 0
      %585 = vmatpush1.bf16.msra.mxu0 0
      %586 = vmatprep.subr.bf16.mxu0 0
      %587 = vmatpush1.bf16.msra.mxu0 0
      %588 = vmatprep.subr.bf16.mxu0 0
      %589 = vmatpush1.bf16.msra.mxu0 0
      %590 = vmatprep.subr.bf16.mxu0 0
      %591 = vmatpush1.bf16.msra.mxu0 %v578
      %592 = vmatprep.subr.bf16.mxu0 0
      %593 = vmatpush1.bf16.msra.mxu0 %v570
      %594 = vmatprep.subr.bf16.mxu0 0
      %595 = vmatpush1.bf16.msra.mxu0 %v569
      %596 = vmatprep.subr.bf16.mxu0 0
      %597 = vmatpush2.bf16.msra.mxu0 0
      %598 = vmatprep.subr.bf16.mxu0 0
      %599 = vmatpush2.bf16.msra.mxu0 0
      %600 = vmatprep.subr.bf16.mxu0 0
      %601 = vmatpush2.bf16.msra.mxu0 0
      %602 = vmatprep.subr.bf16.mxu0 0
      %603 = vmatpush2.bf16.msra.mxu0 0
      %604 = vmatprep.subr.bf16.mxu0 0
      %605 = vmatpush2.bf16.msra.mxu0 0
      %606 = vmatprep.subr.bf16.mxu0 0
      %607 = vmatpush2.bf16.msra.mxu0 0
      %608 = vmatprep.subr.bf16.mxu0 0
      %609 = vmatpush2.bf16.msra.mxu0 0
      %610 = vmatprep.subr.bf16.mxu0 0
      %611 = vmatpush2.bf16.msra.mxu0 0
      %612 = vmatprep.mubr.bf16.mxu0 0
      %613 = vmatmul.mubr.bf16.gmra.mxu0 %v575
      %v614 = vpop.f32.mrf.mxu0
      %v615 = vadd.f32 0.0, %v614
      %v616 = vpop.f32.mrf.mxu0
      %v617 = vpop.f32.mrf.mxu0
      %v618 = vpop.f32.mrf.mxu0
      %619 = vdwg.mxu0
      %v620 = vadd.f32 %v547, %v615
      %v621 = vld [vmem:[%s363] sm:$0xf]
      %v622 = vld [vmem:[%s363 + $0x4] sm:$0x1]
      %s623 = scalar_lea.vmem %s379, 60
      %v624 = vld [vmem:[%s623] sm:$0xf]
      %v625 = vld [vmem:[%s623 + $0x4] sm:$0xf]
      %v626 = vld [vmem:[%s623 + $0x8] sm:$0xf]
      %v627 = vld [vmem:[%s623 + $0xc] sm:$0xf]
      %v628 = vld [vmem:[%s623 + $0x10] sm:$0xf]
      %v634 = vunpack.c.l.b16 %v624
      %v635 = vunpack.c.l.b16 %v625
      %v636 = vunpack.c.l.b16 %v626
      %v637 = vunpack.c.l.b16 %v627
      %v638 = vunpack.c.l.b16 %v628
      %v639 = vpack.c.b16 %v635, %v634
      %v640 = vpack.c.b16 %v637, %v636
      %v641 = vpack.c.b16 %v638, %v638
      %v645 = vsel %vm443, %v621, 0
      %v648 = vsel %vm447, %v641, 0
      %650 = vmatprep.subr.bf16.mxu0 0
      %651 = vmatpush1.bf16.msra.mxu0 0
      %652 = vmatprep.subr.bf16.mxu0 0
      %653 = vmatpush1.bf16.msra.mxu0 0
      %654 = vmatprep.subr.bf16.mxu0 0
      %655 = vmatpush1.bf16.msra.mxu0 0
      %656 = vmatprep.subr.bf16.mxu0 0
      %657 = vmatpush1.bf16.msra.mxu0 0
      %658 = vmatprep.subr.bf16.mxu0 0
      %659 = vmatpush1.bf16.msra.mxu0 0
      %660 = vmatprep.subr.bf16.mxu0 0
      %661 = vmatpush1.bf16.msra.mxu0 %v648
      %662 = vmatprep.subr.bf16.mxu0 0
      %663 = vmatpush1.bf16.msra.mxu0 %v640
      %664 = vmatprep.subr.bf16.mxu0 0
      %665 = vmatpush1.bf16.msra.mxu0 %v639
      %666 = vmatprep.subr.bf16.mxu0 0
      %667 = vmatpush2.bf16.msra.mxu0 0
      %668 = vmatprep.subr.bf16.mxu0 0
      %669 = vmatpush2.bf16.msra.mxu0 0
      %670 = vmatprep.subr.bf16.mxu0 0
      %671 = vmatpush2.bf16.msra.mxu0 0
      %672 = vmatprep.subr.bf16.mxu0 0
      %673 = vmatpush2.bf16.msra.mxu0 0
      %674 = vmatprep.subr.bf16.mxu0 0
      %675 = vmatpush2.bf16.msra.mxu0 0
      %676 = vmatprep.subr.bf16.mxu0 0
      %677 = vmatpush2.bf16.msra.mxu0 0
      %678 = vmatprep.subr.bf16.mxu0 0
      %679 = vmatpush2.bf16.msra.mxu0 0
      %680 = vmatprep.subr.bf16.mxu0 0
      %681 = vmatpush2.bf16.msra.mxu0 0
      %682 = vmatprep.mubr.bf16.mxu0 0
      %683 = vmatmul.mubr.bf16.gmra.mxu0 %v645
      %v684 = vpop.f32.mrf.mxu0
      %v685 = vadd.f32 0.0, %v684
      %v686 = vpop.f32.mrf.mxu0
      %v687 = vpop.f32.mrf.mxu0
      %v688 = vpop.f32.mrf.mxu0
      %689 = vdwg.mxu0
      %v690 = vadd.f32 %v620, %v685
      %s691 = scalar_lea.vmem %s379, 80
      %v692 = vld [vmem:[%s691] sm:$0xf]
      %v693 = vld [vmem:[%s691 + $0x4] sm:$0xf]
      %v694 = vld [vmem:[%s691 + $0x8] sm:$0xf]
      %v695 = vld [vmem:[%s691 + $0xc] sm:$0xf]
      %v696 = vld [vmem:[%s691 + $0x10] sm:$0xf]
      %v699 = vunpack.c.l.b16 %v621
      %v700 = vunpack.c.l.b16 %v622
      %v701 = vpack.c.b16 %v700, %v699
      %v703 = vshrl.u32 %v701, 16
      %v705 = vshll.u32 %v701, 16
      %v707 = vrot.slane %v705, 1
      %v708 = vor.u32 %v703, %v707
      %v714 = vunpack.c.l.b16 %v692
      %v715 = vunpack.c.l.b16 %v693
      %v716 = vunpack.c.l.b16 %v694
      %v717 = vunpack.c.l.b16 %v695
      %v718 = vunpack.c.l.b16 %v696
      %v719 = vpack.c.b16 %v715, %v714
      %v720 = vpack.c.b16 %v717, %v716
      %v721 = vpack.c.b16 %v718, %v718
      %v725 = vsel %vm443, %v708, 0
      %v728 = vsel %vm447, %v721, 0
      %730 = vmatprep.subr.bf16.mxu0 0
      %731 = vmatpush1.bf16.msra.mxu0 0
      %732 = vmatprep.subr.bf16.mxu0 0
      %733 = vmatpush1.bf16.msra.mxu0 0
      %734 = vmatprep.subr.bf16.mxu0 0
      %735 = vmatpush1.bf16.msra.mxu0 0
      %736 = vmatprep.subr.bf16.mxu0 0
      %737 = vmatpush1.bf16.msra.mxu0 0
      %738 = vmatprep.subr.bf16.mxu0 0
      %739 = vmatpush1.bf16.msra.mxu0 0
      %740 = vmatprep.subr.bf16.mxu0 0
      %741 = vmatpush1.bf16.msra.mxu0 %v728
      %742 = vmatprep.subr.bf16.mxu0 0
      %743 = vmatpush1.bf16.msra.mxu0 %v720
      %744 = vmatprep.subr.bf16.mxu0 0
      %745 = vmatpush1.bf16.msra.mxu0 %v719
      %746 = vmatprep.subr.bf16.mxu0 0
      %747 = vmatpush2.bf16.msra.mxu0 0
      %748 = vmatprep.subr.bf16.mxu0 0
      %749 = vmatpush2.bf16.msra.mxu0 0
      %750 = vmatprep.subr.bf16.mxu0 0
      %751 = vmatpush2.bf16.msra.mxu0 0
      %752 = vmatprep.subr.bf16.mxu0 0
      %753 = vmatpush2.bf16.msra.mxu0 0
      %754 = vmatprep.subr.bf16.mxu0 0
      %755 = vmatpush2.bf16.msra.mxu0 0
      %756 = vmatprep.subr.bf16.mxu0 0
      %757 = vmatpush2.bf16.msra.mxu0 0
      %758 = vmatprep.subr.bf16.mxu0 0
      %759 = vmatpush2.bf16.msra.mxu0 0
      %760 = vmatprep.subr.bf16.mxu0 0
      %761 = vmatpush2.bf16.msra.mxu0 0
      %762 = vmatprep.mubr.bf16.mxu0 0
      %763 = vmatmul.mubr.bf16.gmra.mxu0 %v725
      %v764 = vpop.f32.mrf.mxu0
      %v765 = vadd.f32 0.0, %v764
      %v766 = vpop.f32.mrf.mxu0
      %v767 = vpop.f32.mrf.mxu0
      %v768 = vpop.f32.mrf.mxu0
      %769 = vdwg.mxu0
      %v770 = vadd.f32 %v690, %v765
      %s771 = scalar_lea.vmem %s379, 100
      %v772 = vld [vmem:[%s771] sm:$0xf]
      %v773 = vld [vmem:[%s771 + $0x4] sm:$0xf]
      %v774 = vld [vmem:[%s771 + $0x8] sm:$0xf]
      %v775 = vld [vmem:[%s771 + $0xc] sm:$0xf]
      %v776 = vld [vmem:[%s771 + $0x10] sm:$0xf]
      %v777 = vrot.slane %v701, 1
      %v783 = vunpack.c.l.b16 %v772
      %v784 = vunpack.c.l.b16 %v773
      %v785 = vunpack.c.l.b16 %v774
      %v786 = vunpack.c.l.b16 %v775
      %v787 = vunpack.c.l.b16 %v776
      %v788 = vpack.c.b16 %v784, %v783
      %v789 = vpack.c.b16 %v786, %v785
      %v790 = vpack.c.b16 %v787, %v787
      %v794 = vsel %vm443, %v777, 0
      %v797 = vsel %vm447, %v790, 0
      %799 = vmatprep.subr.bf16.mxu0 0
      %800 = vmatpush1.bf16.msra.mxu0 0
      %801 = vmatprep.subr.bf16.mxu0 0
      %802 = vmatpush1.bf16.msra.mxu0 0
      %803 = vmatprep.subr.bf16.mxu0 0
      %804 = vmatpush1.bf16.msra.mxu0 0
      %805 = vmatprep.subr.bf16.mxu0 0
      %806 = vmatpush1.bf16.msra.mxu0 0
      %807 = vmatprep.subr.bf16.mxu0 0
      %808 = vmatpush1.bf16.msra.mxu0 0
      %809 = vmatprep.subr.bf16.mxu0 0
      %810 = vmatpush1.bf16.msra.mxu0 %v797
      %811 = vmatprep.subr.bf16.mxu0 0
      %812 = vmatpush1.bf16.msra.mxu0 %v789
      %813 = vmatprep.subr.bf16.mxu0 0
      %814 = vmatpush1.bf16.msra.mxu0 %v788
      %815 = vmatprep.subr.bf16.mxu0 0
      %816 = vmatpush2.bf16.msra.mxu0 0
      %817 = vmatprep.subr.bf16.mxu0 0
      %818 = vmatpush2.bf16.msra.mxu0 0
      %819 = vmatprep.subr.bf16.mxu0 0
      %820 = vmatpush2.bf16.msra.mxu0 0
      %821 = vmatprep.subr.bf16.mxu0 0
      %822 = vmatpush2.bf16.msra.mxu0 0
      %823 = vmatprep.subr.bf16.mxu0 0
      %824 = vmatpush2.bf16.msra.mxu0 0
      %825 = vmatprep.subr.bf16.mxu0 0
      %826 = vmatpush2.bf16.msra.mxu0 0
      %827 = vmatprep.subr.bf16.mxu0 0
      %828 = vmatpush2.bf16.msra.mxu0 0
      %829 = vmatprep.subr.bf16.mxu0 0
      %830 = vmatpush2.bf16.msra.mxu0 0
      %831 = vmatprep.mubr.bf16.mxu0 0
      %832 = vmatmul.mubr.bf16.gmra.mxu0 %v794
      %v833 = vpop.f32.mrf.mxu0
      %v834 = vadd.f32 0.0, %v833
      %v835 = vpop.f32.mrf.mxu0
      %v836 = vpop.f32.mrf.mxu0
      %v837 = vpop.f32.mrf.mxu0
      %838 = vdwg.mxu0
      %v839 = vadd.f32 %v770, %v834
      %v840 = vld [vmem:[%s374] sm:$0xf]
      %v841 = vld [vmem:[%s374 + $0x4] sm:$0x1]
      %s842 = scalar_lea.vmem %s379, 120
      %v843 = vld [vmem:[%s842] sm:$0xf]
      %v844 = vld [vmem:[%s842 + $0x4] sm:$0xf]
      %v845 = vld [vmem:[%s842 + $0x8] sm:$0xf]
      %v846 = vld [vmem:[%s842 + $0xc] sm:$0xf]
      %v847 = vld [vmem:[%s842 + $0x10] sm:$0xf]
      %v853 = vunpack.c.l.b16 %v843
      %v854 = vunpack.c.l.b16 %v844
      %v855 = vunpack.c.l.b16 %v845
      %v856 = vunpack.c.l.b16 %v846
      %v857 = vunpack.c.l.b16 %v847
      %v858 = vpack.c.b16 %v854, %v853
      %v859 = vpack.c.b16 %v856, %v855
      %v860 = vpack.c.b16 %v857, %v857
      %v864 = vsel %vm443, %v840, 0
      %v867 = vsel %vm447, %v860, 0
      %869 = vmatprep.subr.bf16.mxu0 0
      %870 = vmatpush1.bf16.msra.mxu0 0
      %871 = vmatprep.subr.bf16.mxu0 0
      %872 = vmatpush1.bf16.msra.mxu0 0
      %873 = vmatprep.subr.bf16.mxu0 0
      %874 = vmatpush1.bf16.msra.mxu0 0
      %875 = vmatprep.subr.bf16.mxu0 0
      %876 = vmatpush1.bf16.msra.mxu0 0
      %877 = vmatprep.subr.bf16.mxu0 0
      %878 = vmatpush1.bf16.msra.mxu0 0
      %879 = vmatprep.subr.bf16.mxu0 0
      %880 = vmatpush1.bf16.msra.mxu0 %v867
      %881 = vmatprep.subr.bf16.mxu0 0
      %882 = vmatpush1.bf16.msra.mxu0 %v859
      %883 = vmatprep.subr.bf16.mxu0 0
      %884 = vmatpush1.bf16.msra.mxu0 %v858
      %885 = vmatprep.subr.bf16.mxu0 0
      %886 = vmatpush2.bf16.msra.mxu0 0
      %887 = vmatprep.subr.bf16.mxu0 0
      %888 = vmatpush2.bf16.msra.mxu0 0
      %889 = vmatprep.subr.bf16.mxu0 0
      %890 = vmatpush2.bf16.msra.mxu0 0
      %891 = vmatprep.subr.bf16.mxu0 0
      %892 = vmatpush2.bf16.msra.mxu0 0
      %893 = vmatprep.subr.bf16.mxu0 0
      %894 = vmatpush2.bf16.msra.mxu0 0
      %895 = vmatprep.subr.bf16.mxu0 0
      %896 = vmatpush2.bf16.msra.mxu0 0
      %897 = vmatprep.subr.bf16.mxu0 0
      %898 = vmatpush2.bf16.msra.mxu0 0
      %899 = vmatprep.subr.bf16.mxu0 0
      %900 = vmatpush2.bf16.msra.mxu0 0
      %901 = vmatprep.mubr.bf16.mxu0 0
      %902 = vmatmul.mubr.bf16.gmra.mxu0 %v864
      %v903 = vpop.f32.mrf.mxu0
      %v904 = vadd.f32 0.0, %v903
      %v905 = vpop.f32.mrf.mxu0
      %v906 = vpop.f32.mrf.mxu0
      %v907 = vpop.f32.mrf.mxu0
      %908 = vdwg.mxu0
      %v909 = vadd.f32 %v839, %v904
      %s910 = scalar_lea.vmem %s379, 140
      %v911 = vld [vmem:[%s910] sm:$0xf]
      %v912 = vld [vmem:[%s910 + $0x4] sm:$0xf]
      %v913 = vld [vmem:[%s910 + $0x8] sm:$0xf]
      %v914 = vld [vmem:[%s910 + $0xc] sm:$0xf]
      %v915 = vld [vmem:[%s910 + $0x10] sm:$0xf]
      %v918 = vunpack.c.l.b16 %v840
      %v919 = vunpack.c.l.b16 %v841
      %v920 = vpack.c.b16 %v919, %v918
      %v922 = vshrl.u32 %v920, 16
      %v924 = vshll.u32 %v920, 16
      %v926 = vrot.slane %v924, 1
      %v927 = vor.u32 %v922, %v926
      %v933 = vunpack.c.l.b16 %v911
      %v934 = vunpack.c.l.b16 %v912
      %v935 = vunpack.c.l.b16 %v913
      %v936 = vunpack.c.l.b16 %v914
      %v937 = vunpack.c.l.b16 %v915
      %v938 = vpack.c.b16 %v934, %v933
      %v939 = vpack.c.b16 %v936, %v935
      %v940 = vpack.c.b16 %v937, %v937
      %v944 = vsel %vm443, %v927, 0
      %v947 = vsel %vm447, %v940, 0
      %949 = vmatprep.subr.bf16.mxu0 0
      %950 = vmatpush1.bf16.msra.mxu0 0
      %951 = vmatprep.subr.bf16.mxu0 0
      %952 = vmatpush1.bf16.msra.mxu0 0
      %953 = vmatprep.subr.bf16.mxu0 0
      %954 = vmatpush1.bf16.msra.mxu0 0
      %955 = vmatprep.subr.bf16.mxu0 0
      %956 = vmatpush1.bf16.msra.mxu0 0
      %957 = vmatprep.subr.bf16.mxu0 0
      %958 = vmatpush1.bf16.msra.mxu0 0
      %959 = vmatprep.subr.bf16.mxu0 0
      %960 = vmatpush1.bf16.msra.mxu0 %v947
      %961 = vmatprep.subr.bf16.mxu0 0
      %962 = vmatpush1.bf16.msra.mxu0 %v939
      %963 = vmatprep.subr.bf16.mxu0 0
      %964 = vmatpush1.bf16.msra.mxu0 %v938
      %965 = vmatprep.subr.bf16.mxu0 0
      %966 = vmatpush2.bf16.msra.mxu0 0
      %967 = vmatprep.subr.bf16.mxu0 0
      %968 = vmatpush2.bf16.msra.mxu0 0
      %969 = vmatprep.subr.bf16.mxu0 0
      %970 = vmatpush2.bf16.msra.mxu0 0
      %971 = vmatprep.subr.bf16.mxu0 0
      %972 = vmatpush2.bf16.msra.mxu0 0
      %973 = vmatprep.subr.bf16.mxu0 0
      %974 = vmatpush2.bf16.msra.mxu0 0
      %975 = vmatprep.subr.bf16.mxu0 0
      %976 = vmatpush2.bf16.msra.mxu0 0
      %977 = vmatprep.subr.bf16.mxu0 0
      %978 = vmatpush2.bf16.msra.mxu0 0
      %979 = vmatprep.subr.bf16.mxu0 0
      %980 = vmatpush2.bf16.msra.mxu0 0
      %981 = vmatprep.mubr.bf16.mxu0 0
      %982 = vmatmul.mubr.bf16.gmra.mxu0 %v944
      %v983 = vpop.f32.mrf.mxu0
      %v984 = vadd.f32 0.0, %v983
      %v985 = vpop.f32.mrf.mxu0
      %v986 = vpop.f32.mrf.mxu0
      %v987 = vpop.f32.mrf.mxu0
      %988 = vdwg.mxu0
      %v989 = vadd.f32 %v909, %v984
      %s990 = scalar_lea.vmem %s379, 160
      %v991 = vld [vmem:[%s990] sm:$0xf]
      %v992 = vld [vmem:[%s990 + $0x4] sm:$0xf]
      %v993 = vld [vmem:[%s990 + $0x8] sm:$0xf]
      %v994 = vld [vmem:[%s990 + $0xc] sm:$0xf]
      %v995 = vld [vmem:[%s990 + $0x10] sm:$0xf]
      %v996 = vrot.slane %v920, 1
      %v1002 = vunpack.c.l.b16 %v991
      %v1003 = vunpack.c.l.b16 %v992
      %v1004 = vunpack.c.l.b16 %v993
      %v1005 = vunpack.c.l.b16 %v994
      %v1006 = vunpack.c.l.b16 %v995
      %v1007 = vpack.c.b16 %v1003, %v1002
      %v1008 = vpack.c.b16 %v1005, %v1004
      %v1009 = vpack.c.b16 %v1006, %v1006
      %v1013 = vsel %vm443, %v996, 0
      %v1016 = vsel %vm447, %v1009, 0
      %1018 = vmatprep.subr.bf16.mxu0 0
      %1019 = vmatpush1.bf16.msra.mxu0 0
      %1020 = vmatprep.subr.bf16.mxu0 0
      %1021 = vmatpush1.bf16.msra.mxu0 0
      %1022 = vmatprep.subr.bf16.mxu0 0
      %1023 = vmatpush1.bf16.msra.mxu0 0
      %1024 = vmatprep.subr.bf16.mxu0 0
      %1025 = vmatpush1.bf16.msra.mxu0 0
      %1026 = vmatprep.subr.bf16.mxu0 0
      %1027 = vmatpush1.bf16.msra.mxu0 0
      %1028 = vmatprep.subr.bf16.mxu0 0
      %1029 = vmatpush1.bf16.msra.mxu0 %v1016
      %1030 = vmatprep.subr.bf16.mxu0 0
      %1031 = vmatpush1.bf16.msra.mxu0 %v1008
      %1032 = vmatprep.subr.bf16.mxu0 0
      %1033 = vmatpush1.bf16.msra.mxu0 %v1007
      %1034 = vmatprep.subr.bf16.mxu0 0
      %1035 = vmatpush2.bf16.msra.mxu0 0
      %1036 = vmatprep.subr.bf16.mxu0 0
      %1037 = vmatpush2.bf16.msra.mxu0 0
      %1038 = vmatprep.subr.bf16.mxu0 0
      %1039 = vmatpush2.bf16.msra.mxu0 0
      %1040 = vmatprep.subr.bf16.mxu0 0
      %1041 = vmatpush2.bf16.msra.mxu0 0
      %1042 = vmatprep.subr.bf16.mxu0 0
      %1043 = vmatpush2.bf16.msra.mxu0 0
      %1044 = vmatprep.subr.bf16.mxu0 0
      %1045 = vmatpush2.bf16.msra.mxu0 0
      %1046 = vmatprep.subr.bf16.mxu0 0
      %1047 = vmatpush2.bf16.msra.mxu0 0
      %1048 = vmatprep.subr.bf16.mxu0 0
      %1049 = vmatpush2.bf16.msra.mxu0 0
      %1050 = vmatprep.mubr.bf16.mxu0 0
      %1051 = vmatmul.mubr.bf16.gmra.mxu0 %v1013
      %v1052 = vpop.f32.mrf.mxu0
      %v1053 = vadd.f32 0.0, %v1052
      %v1054 = vpop.f32.mrf.mxu0
      %v1055 = vpop.f32.mrf.mxu0
      %v1056 = vpop.f32.mrf.mxu0
      %1057 = vdwg.mxu0
      %v1058 = vadd.f32 %v989, %v1053
      %v1059 = vpack.c.bf16 %v1058, %v1058
      %vm1060 = vcmask 257024
      %1061 = vst.msk [vmem:[%s390] sm:$0xf] %vm1060, %v1059
      %vm1062 = vcmask 261120
      %v1063 = vsel %vm1062, %v1058, 0.0
      %v1064 = vrot.slane %v1063, 4
      %v1065 = vadd.f32 %v1063, %v1064
      %v1066 = vrot.slane %v1065, 2
      %v1067 = vadd.f32 %v1065, %v1066
      %v1068 = vrot.slane %v1067, 1
      %v1069 = vadd.f32 %v1067, %v1068
      %v1070 = vmul.f32 %v1058, %v1058
      %v1071 = vsel %vm1062, %v1070, 0.0
      %v1072 = vrot.slane %v1071, 4
      %v1073 = vadd.f32 %v1071, %v1072
      %v1074 = vrot.slane %v1073, 2
      %v1075 = vadd.f32 %v1073, %v1074
      %v1076 = vrot.slane %v1075, 1
      %v1077 = vadd.f32 %v1075, %v1076
      %vm1078 = vcmask 1040384
      %v1079 = vsel %vm1078, %v1069, %v1077
      %vm1080 = vcmask 254976
      %1081 = vst.msk [vmem:[%s401] sm:$0x3] %vm1080, %v1079
      %p1082 = scmp.lt.s32.totalorder %s22, 1
      %s1083 = scalar_select %p1082, %s22, 1
      %p1084 = scmp.lt.s32.totalorder %s23, 7
      %s1085 = scalar_select %p1084, %s23, 7
      %p1086 = scmp.lt.s32.totalorder %s24, 0
      %s1087 = scalar_select %p1086, %s24, 0
      %s1088 = sadd.s32 %s1087, %s1085
      %s1089 = smul.addr %s1083, 8
      %s1090 = sadd.s32 %s1088, %s1089
      %s1091 = smul.addr %s1090, 4
      %s1092 = scalar_lea.vmem %s4, %s1091
      %p1093 = scmp.lt.s32.totalorder %s22, 1
      %s1094 = scalar_select %p1093, %s22, 1
      %p1095 = scmp.lt.s32.totalorder %s23, 7
      %s1096 = scalar_select %p1095, %s23, 7
      %p1097 = scmp.lt.s32.totalorder %s24, 0
      %s1098 = scalar_select %p1097, %s24, 0
      %s1099 = sadd.s32 %s1098, %s1096
      %s1100 = smul.addr %s1094, 8
      %s1101 = sadd.s32 %s1099, %s1100
      %s1102 = smul.addr %s1101, 2
      %s1103 = scalar_lea.vmem %s5, %s1102
      // Predicated region
      $region37: #{expansion_block_forward.10} parent=35 // pred_check
        %p1104 = pneg %p172
      $region38: #{expansion_block_forward.10} parent=35 // pred_check_branch
        %1106 = sbr.rel (%p1104) target = $region40
      $region39: #{expansion_block_forward.10} parent=35 // pred_region
        _
      $region40: #{expansion_block_forward.10} parent=35 // pred_fallthru
        _
      // Predicated region
      $region41: #{expansion_block_forward.10} parent=35 // pred_check
        %p1107 = pneg %p202
      $region42: #{expansion_block_forward.10} parent=35 // pred_check_branch
        %1109 = sbr.rel (%p1107) target = $region44
      $region43: #{expansion_block_forward.10} parent=35 // pred_region
        _
      $region44: #{expansion_block_forward.10} parent=35 // pred_fallthru
        _
    $region36: #{expansion_block_forward.10} parent=5 // pred_fallthru
      _
    %p1110 = scmp.le.s32.totalorder 2, %s12
    // Predicated region
    $region45: #{expansion_block_forward.10} parent=5 // pred_check
      %p1111 = pneg %p1110
    $region46: #{expansion_block_forward.10} parent=5 // pred_check_branch
      %1113 = sbr.rel (%p1111) target = $region48
    $region47: #{expansion_block_forward.10} parent=5 // pred_region
      %s1114 = ssub.s32 %s12, 2
      // Predicated region
      $region49: #{expansion_block_forward.10} parent=47 // pred_check
        %p1115 = pneg %p178
      $region50: #{expansion_block_forward.10} parent=47 // pred_check_branch
        %1117 = sbr.rel (%p1115) target = $region52
      $region51: #{expansion_block_forward.10} parent=47 // pred_region
        %p1118 = scmp.lt.s32.totalorder %s25, 1
        %s1119 = scalar_select %p1118, %s25, 1
        %p1120 = scmp.lt.s32.totalorder %s26, 7
        %s1121 = scalar_select %p1120, %s26, 7
        %p1122 = scmp.lt.s32.totalorder %s27, 0
        %s1123 = scalar_select %p1122, %s27, 0
        %s1124 = sadd.s32 %s1123, %s1121
        %s1125 = smul.addr %s1119, 8
        %s1126 = sadd.s32 %s1124, %s1125
        %s1127 = smul.addr %s1126, 4
        %s1128 = scalar_lea.vmem %s4, %s1127
      $region52: #{expansion_block_forward.10} parent=47 // pred_fallthru
        _
      // Predicated region
      $region53: #{expansion_block_forward.10} parent=47 // pred_check
        %p1129 = pneg %p208
      $region54: #{expansion_block_forward.10} parent=47 // pred_check_branch
        %1131 = sbr.rel (%p1129) target = $region56
      $region55: #{expansion_block_forward.10} parent=47 // pred_region
        %p1132 = scmp.lt.s32.totalorder %s25, 1
        %s1133 = scalar_select %p1132, %s25, 1
        %p1134 = scmp.lt.s32.totalorder %s26, 7
        %s1135 = scalar_select %p1134, %s26, 7
        %p1136 = scmp.lt.s32.totalorder %s27, 0
        %s1137 = scalar_select %p1136, %s27, 0
        %s1138 = sadd.s32 %s1137, %s1135
        %s1139 = smul.addr %s1133, 8
        %s1140 = sadd.s32 %s1138, %s1139
        %s1141 = smul.addr %s1140, 2
        %s1142 = scalar_lea.vmem %s5, %s1141
      $region56: #{expansion_block_forward.10} parent=47 // pred_fallthru
        _
    $region48: #{expansion_block_forward.10} parent=5 // pred_fallthru
      _
  $region6: #{expansion_block_forward.10} parent=0 // loop_footer
    %s16 = sadd.s32 1, %s12
  $region7: #{expansion_block_forward.10} parent=0 // loop_footer_branch
    %11 = sbr.rel target = $region3
  $region8: #{expansion_block_forward.10} parent=0 // loop_exit
    _

</llo_original>
